<compile_context>
chip_gen: v6e
topology: v6e:2x2x1
jax: 0.10.0
libtpu: 0.0.40
codegen_flags: <defaults>
</compile_context>

<pallas_src>
import functools
import math

import jax
import jax.numpy as jnp
from jax.experimental import pallas as pl
from jax.experimental.pallas import tpu as pltpu


def _self_attention_kernel(q_ref, k_ref, v_ref,
                           wq_t_ref, bq_ref, wk_exp_ref, sel_ref, expand_ref,
                           wv_g_ref, bv_ref, o_ref, *, inv_sqrt_c):
    # Per-grid-step shapes (Bn = batch rows per step, C = channels, P = H*W,
    # D = C*P, flattened channel-major / position-minor, i.e. native NCHW order):
    #   q_ref: (Bn, C)      k_ref, v_ref: (Bn, D)
    #   wq_t_ref: (C, C)    bq_ref/bv_ref: (1, C)
    #   wk_exp_ref: (C, D)  wk_exp[o, c*P+h] = Wk[o, c]
    #   sel_ref:    (D, P)  sel[c*P+h, h'] = (h == h')   (channel segment-sum)
    #   expand_ref: (P, D)  expand[h, c*P+h'] = (h == h') (position broadcast)
    #   wv_g_ref:   (D, C)  wv_g[c*P+h, o] = Wv[o, c]
    #   o_ref: (Bn, C)
    f32 = jnp.float32
    q = q_ref[...]                                   # (Bn, C) original query (residual)
    k = k_ref[...].astype(f32)                       # (Bn, D)
    v = v_ref[...].astype(f32)                       # (Bn, D)

    # 1) query projection                                   (Bn,C)@(C,C)  [MXU]
    q_p = jnp.dot(q.astype(f32), wq_t_ref[...],
                  preferred_element_type=f32) + bq_ref[...]                    # (Bn, C)

    # 2) key projection folded onto the query side and replicated over positions:
    #    qk_exp[n, c*P+h] = (q_p @ Wk)[n, c]                (Bn,C)@(C,D)  [MXU]
    #    (bk is omitted: it adds the same constant to every logit of a row and
    #     cancels exactly in the softmax.)
    qk_exp = jnp.dot(q_p, wk_exp_ref[...], preferred_element_type=f32)         # (Bn, D)

    # 3) attention logits: contract over channels via an MXU segment-sum
    #    scores[n,h] = sum_c (q_p@Wk)[n,c] * key[n,c,h] / sqrt(C)
    scores = jnp.dot(qk_exp * k, sel_ref[...],
                     preferred_element_type=f32) * inv_sqrt_c                  # (Bn, P)

    # 4) softmax over spatial positions (lane axis); approx reciprocal -> EUP.
    m = jnp.max(scores, axis=-1, keepdims=True)
    e = jnp.exp(scores - m)
    att = e * pl.reciprocal(jnp.sum(e, axis=-1, keepdims=True), approx=True)   # (Bn, P)

    # 5) position-weighted sum of value with the value projection folded in:
    #    out_proj[n,o] = sum_{c,h} value[n,c,h] * att[n,h] * Wv[o,c]
    att_exp = jnp.dot(att, expand_ref[...], preferred_element_type=f32)        # (Bn, D)
    out_proj = jnp.dot(att_exp * v, wv_g_ref[...],
                       preferred_element_type=f32)                             # (Bn, C)

    # 6) residual with the ORIGINAL query, value bias has exact coefficient 1.
    o_ref[...] = (q.astype(f32) + out_proj + bv_ref[...]).astype(o_ref.dtype)


def _pick_block_n(n_batch, cap=64):
    """Largest batch block <= cap that divides N, is layout-friendly (multiple of
    8 sublanes, or the whole batch), and prefers >= 2 grid steps so both v7x
    TensorCores get work."""
    candidates = [bn for bn in range(1, min(n_batch, cap) + 1)
                  if n_batch % bn == 0 and (bn % 8 == 0 or bn == n_batch)]
    if not candidates:
        return n_batch
    multi_step = [bn for bn in candidates if bn < n_batch]
    return max(multi_step) if multi_step else max(candidates)


def self_attention_pallas(query, key, value, params, *, block_n=None):
    """query: (N, C); key, value: (N, C, H, W) in native NCHW layout."""
    N, C = query.shape
    Nv, Cv, H, W = value.shape
    assert (Nv, Cv) == (N, C) and key.shape == value.shape
    P = H * W
    D = C * P

    # --- data: FREE reshapes only (no transpose, no extra HBM pass) ---
    k2 = key.reshape(N, D)       # channel-major, position-minor (NCHW order)
    v2 = value.reshape(N, D)

    # --- parameters: one-time tiny precompute (parameter-side, not per-token) ---
    f32 = jnp.float32
    wq_t = params["wq"].astype(f32).T                               # (C, C)
    bq = params["bq"].astype(f32).reshape(1, C)
    wk_exp = jnp.repeat(params["wk"].astype(f32), P, axis=1)        # (C, D)
    sel = jnp.tile(jnp.eye(P, dtype=f32), (C, 1))                   # (D, P)
    expand = sel.T                                                  # (P, D)
    wv_g = jnp.repeat(params["wv"].astype(f32).T, P, axis=0)        # (D, C)
    bv = params["bv"].astype(f32).reshape(1, C)
    # NOTE: params["bk"] is intentionally unused (cancels in the softmax).

    if block_n is None:
        block_n = _pick_block_n(N)
    assert N % block_n == 0, f"block_n={block_n} must divide N={N}"
    grid = (N // block_n,)

    kernel = functools.partial(_self_attention_kernel, inv_sqrt_c=1.0 / math.sqrt(C))

    row = lambda i: (i, 0)      # batch-blocked operands
    inv = lambda i: (0, 0)      # grid-invariant operands (fetched once, stay resident)

    out = pl.pallas_call(
        kernel,
        out_shape=jax.ShapeDtypeStruct((N, C), query.dtype),
        grid_spec=pltpu.PrefetchScalarGridSpec(
            num_scalar_prefetch=0,
            grid=grid,
            in_specs=[
                pl.BlockSpec((block_n, C), row),   # query
                pl.BlockSpec((block_n, D), row),   # key   (lane-dense C*H*W)
                pl.BlockSpec((block_n, D), row),   # value (lane-dense C*H*W)
                pl.BlockSpec((C, C), inv),         # Wq^T
                pl.BlockSpec((1, C), inv),         # bq
                pl.BlockSpec((C, D), inv),         # Wk replicated over positions
                pl.BlockSpec((D, P), inv),         # channel segment-sum selector
                pl.BlockSpec((P, D), inv),         # position expander
                pl.BlockSpec((D, C), inv),         # Wv^T replicated over positions
                pl.BlockSpec((1, C), inv),         # bv
            ],
            out_specs=pl.BlockSpec((block_n, C), row),
            # NOTE: for C < 128 the output stores are lane-masked; output traffic
            # is only 1/(2*H*W) of the total so we keep the simple (Bn, C) slab.
        ),
        compiler_params=pltpu.CompilerParams(
            dimension_semantics=("parallel",),
        ),
    )(query, k2, v2, wq_t, bq, wk_exp, sel, expand, wv_g, bv)
    return out


def self_attention_reference(query, key, value, params):
    """Pure-JAX reference of the intended semantics (keeps bk explicitly)."""
    N, C, H, W = value.shape
    HW = H * W
    q = query @ params["wq"].T + params["bq"]                                   # (N, C)
    k = jnp.einsum("oc,nchw->nohw", params["wk"], key).reshape(N, C, HW) \
        + params["bk"][None, :, None]                                           # (N, C, HW)
    v = jnp.einsum("oc,nchw->nohw", params["wv"], value).reshape(N, C, HW) \
        + params["bv"][None, :, None]                                           # (N, C, HW)
    att = jnp.einsum("ncp,nc->np", k, q) / math.sqrt(C)                         # (N, HW)
    att = jax.nn.softmax(att, axis=-1)
    out = jnp.einsum("ncp,np->nc", v, att)                                      # (N, C)
    return query + out


if __name__ == "__main__":
    def _run_case(case_id, N, C, H, W):
        ks = jax.random.split(jax.random.fold_in(jax.random.PRNGKey(0), case_id), 9)
        scale = 1.0 / math.sqrt(C)
        params = {
            "wq": jax.random.uniform(ks[0], (C, C), jnp.float32, -scale, scale),
            "bq": jax.random.uniform(ks[1], (C,), jnp.float32, -scale, scale),
            "wk": jax.random.uniform(ks[2], (C, C), jnp.float32, -scale, scale),
            "bk": jax.random.uniform(ks[3], (C,), jnp.float32, -scale, scale),
            "wv": jax.random.uniform(ks[4], (C, C), jnp.float32, -scale, scale),
            "bv": jax.random.uniform(ks[5], (C,), jnp.float32, -scale, scale),
        }
        query = jax.random.normal(ks[6], (N, C), jnp.float32)
        key_in = jax.random.normal(ks[7], (N, C, H, W), jnp.float32)
        value_in = jax.random.normal(ks[8], (N, C, H, W), jnp.float32)

        out = jax.block_until_ready(
            self_attention_pallas(query, key_in, value_in, params))
        ref = self_attention_reference(query, key_in, value_in, params)
        assert out.shape == (N, C)
        err = float(jnp.max(jnp.abs(out - ref)))
        assert jnp.allclose(out, ref, atol=2e-3, rtol=2e-3), (
            f"mismatch N={N} C={C} H={H} W={W}: max abs err {err}")

    _run_case(0, N=16, C=128, H=4, W=4)   # main case: lane-dense output, 2 grid steps
    _run_case(1, N=32, C=32,  H=4, W=4)   # small-channel case, 2 grid steps
    print("KERNEL_OK")
</pallas_src>

<mosaic_0001>
module attributes {stable_mosaic.version = 11 : i64} {
  func.func @_self_attention_kernel(%arg0: i32, %arg1: memref<8x128xf32, #tpu.memory_space<vmem>>, %arg2: memref<8x2048xf32, #tpu.memory_space<vmem>>, %arg3: memref<8x2048xf32, #tpu.memory_space<vmem>>, %arg4: memref<128x128xf32, #tpu.memory_space<vmem>>, %arg5: memref<1x128xf32, #tpu.memory_space<vmem>>, %arg6: memref<128x2048xf32, #tpu.memory_space<vmem>>, %arg7: memref<2048x16xf32, #tpu.memory_space<vmem>>, %arg8: memref<16x2048xf32, #tpu.memory_space<vmem>>, %arg9: memref<2048x128xf32, #tpu.memory_space<vmem>>, %arg10: memref<1x128xf32, #tpu.memory_space<vmem>>, %arg11: memref<8x128xf32, #tpu.memory_space<vmem>>) attributes {dimension_semantics = [#tpu.dimension_semantics<parallel>], iteration_bounds = array<i64: 2>, scalar_prefetch = 0 : i64, scratch_operands = 0 : i64, tpu.core_type = #tpu.core_type<tc>, window_params = [{transform_indices = @transform_0, window_bounds = array<i64: 8, 128>}, {transform_indices = @transform_1, window_bounds = array<i64: 8, 2048>}, {transform_indices = @transform_2, window_bounds = array<i64: 8, 2048>}, {pipeline_mode = #tpu.pipeline_mode<synchronous>, transform_indices = @transform_3, window_bounds = array<i64: 128, 128>}, {pipeline_mode = #tpu.pipeline_mode<synchronous>, transform_indices = @transform_4, window_bounds = array<i64: 1, 128>}, {pipeline_mode = #tpu.pipeline_mode<synchronous>, transform_indices = @transform_5, window_bounds = array<i64: 128, 2048>}, {pipeline_mode = #tpu.pipeline_mode<synchronous>, transform_indices = @transform_6, window_bounds = array<i64: 2048, 16>}, {pipeline_mode = #tpu.pipeline_mode<synchronous>, transform_indices = @transform_7, window_bounds = array<i64: 16, 2048>}, {pipeline_mode = #tpu.pipeline_mode<synchronous>, transform_indices = @transform_8, window_bounds = array<i64: 2048, 128>}, {pipeline_mode = #tpu.pipeline_mode<synchronous>, transform_indices = @transform_9, window_bounds = array<i64: 1, 128>}, {transform_indices = @transform_10, window_bounds = array<i64: 8, 128>}]} {
    %c0 = arith.constant 0 : index
    %c0_0 = arith.constant 0 : index
    %0 = vector.load %arg1[%c0, %c0_0] : memref<8x128xf32, #tpu.memory_space<vmem>>, vector<8x128xf32>
    %c0_1 = arith.constant 0 : index
    %c0_2 = arith.constant 0 : index
    %1 = vector.load %arg2[%c0_1, %c0_2] : memref<8x2048xf32, #tpu.memory_space<vmem>>, vector<8x2048xf32>
    %c0_3 = arith.constant 0 : index
    %c0_4 = arith.constant 0 : index
    %2 = vector.load %arg3[%c0_3, %c0_4] : memref<8x2048xf32, #tpu.memory_space<vmem>>, vector<8x2048xf32>
    %c0_5 = arith.constant 0 : index
    %c0_6 = arith.constant 0 : index
    %3 = vector.load %arg4[%c0_5, %c0_6] : memref<128x128xf32, #tpu.memory_space<vmem>>, vector<128x128xf32>
    %cst = arith.constant dense<0.000000e+00> : vector<8x128xf32>
    %4 = tpu.matmul %0, %3, %cst {dimension_numbers = #tpu.dot_dimension_numbers<[1], [0], [0], [1], [0, 0, 1, 1], [], []>} : vector<8x128xf32>, vector<128x128xf32>, vector<8x128xf32> -> vector<8x128xf32>
    %c0_7 = arith.constant 0 : index
    %c0_8 = arith.constant 0 : index
    %5 = vector.load %arg5[%c0_7, %c0_8] : memref<1x128xf32, #tpu.memory_space<vmem>>, vector<1x128xf32>
    %6 = vector.broadcast %5 : vector<1x128xf32> to vector<8x128xf32>
    %7 = arith.addf %4, %6 : vector<8x128xf32>
    %c0_9 = arith.constant 0 : index
    %c0_10 = arith.constant 0 : index
    %8 = vector.load %arg6[%c0_9, %c0_10] : memref<128x2048xf32, #tpu.memory_space<vmem>>, vector<128x2048xf32>
    %cst_11 = arith.constant dense<0.000000e+00> : vector<8x2048xf32>
    %9 = tpu.matmul %7, %8, %cst_11 {dimension_numbers = #tpu.dot_dimension_numbers<[1], [0], [0], [1], [0, 0, 1, 1], [], []>} : vector<8x128xf32>, vector<128x2048xf32>, vector<8x2048xf32> -> vector<8x2048xf32>
    %10 = arith.mulf %9, %1 : vector<8x2048xf32>
    %c0_12 = arith.constant 0 : index
    %c0_13 = arith.constant 0 : index
    %11 = vector.load %arg7[%c0_12, %c0_13] : memref<2048x16xf32, #tpu.memory_space<vmem>>, vector<2048x16xf32>
    %cst_14 = arith.constant dense<0.000000e+00> : vector<8x16xf32>
    %12 = tpu.matmul %10, %11, %cst_14 {dimension_numbers = #tpu.dot_dimension_numbers<[1], [0], [0], [1], [0, 0, 1, 1], [], []>} : vector<8x2048xf32>, vector<2048x16xf32>, vector<8x16xf32> -> vector<8x16xf32>
    %cst_15 = arith.constant 0.0883883461 : f32
    %13 = vector.broadcast %cst_15 : f32 to vector<8x16xf32>
    %14 = arith.mulf %12, %13 : vector<8x16xf32>
    %cst_16 = arith.constant dense<0xFF800000> : vector<8xf32>
    %15 = vector.multi_reduction <maximumf>, %14, %cst_16 [1] : vector<8x16xf32> to vector<8xf32>
    %16 = vector.shape_cast %15 : vector<8xf32> to vector<8x1xf32>
    %17 = vector.broadcast %16 : vector<8x1xf32> to vector<8x16xf32>
    %18 = arith.subf %14, %17 : vector<8x16xf32>
    %19 = math.exp %18 : vector<8x16xf32>
    %cst_17 = arith.constant dense<0.000000e+00> : vector<8xf32>
    %20 = vector.multi_reduction <add>, %19, %cst_17 [1] : vector<8x16xf32> to vector<8xf32>
    %21 = vector.shape_cast %20 : vector<8xf32> to vector<8x1xf32>
    %22 = tpu.reciprocal %21 {approx = true} : vector<8x1xf32> -> vector<8x1xf32>
    %23 = vector.broadcast %22 : vector<8x1xf32> to vector<8x16xf32>
    %24 = arith.mulf %19, %23 : vector<8x16xf32>
    %c0_18 = arith.constant 0 : index
    %c0_19 = arith.constant 0 : index
    %25 = vector.load %arg8[%c0_18, %c0_19] : memref<16x2048xf32, #tpu.memory_space<vmem>>, vector<16x2048xf32>
    %cst_20 = arith.constant dense<0.000000e+00> : vector<8x2048xf32>
    %26 = tpu.matmul %24, %25, %cst_20 {dimension_numbers = #tpu.dot_dimension_numbers<[1], [0], [0], [1], [0, 0, 1, 1], [], []>} : vector<8x16xf32>, vector<16x2048xf32>, vector<8x2048xf32> -> vector<8x2048xf32>
    %27 = arith.mulf %26, %2 : vector<8x2048xf32>
    %c0_21 = arith.constant 0 : index
    %c0_22 = arith.constant 0 : index
    %28 = vector.load %arg9[%c0_21, %c0_22] : memref<2048x128xf32, #tpu.memory_space<vmem>>, vector<2048x128xf32>
    %cst_23 = arith.constant dense<0.000000e+00> : vector<8x128xf32>
    %29 = tpu.matmul %27, %28, %cst_23 {dimension_numbers = #tpu.dot_dimension_numbers<[1], [0], [0], [1], [0, 0, 1, 1], [], []>} : vector<8x2048xf32>, vector<2048x128xf32>, vector<8x128xf32> -> vector<8x128xf32>
    %30 = arith.addf %0, %29 : vector<8x128xf32>
    %c0_24 = arith.constant 0 : index
    %c0_25 = arith.constant 0 : index
    %31 = vector.load %arg10[%c0_24, %c0_25] : memref<1x128xf32, #tpu.memory_space<vmem>>, vector<1x128xf32>
    %32 = vector.broadcast %31 : vector<1x128xf32> to vector<8x128xf32>
    %33 = arith.addf %30, %32 : vector<8x128xf32>
    %c0_26 = arith.constant 0 : index
    %c0_27 = arith.constant 0 : index
    %34 = vector.load %arg11[%c0_26, %c0_27] : memref<8x128xf32, #tpu.memory_space<vmem>>, vector<8x128xf32>
    tpu.vector_store %arg11[%c0_26, %c0_27], %33 {strides = array<i32>} : memref<8x128xf32, #tpu.memory_space<vmem>>, vector<8x128xf32>,
    return
  }
  func.func @transform_0(%arg0: i32) -> (i32, i32) {
    %c0_i32 = arith.constant 0 : i32
    %c0_i32_0 = arith.constant 0 : i32
    return %arg0, %c0_i32 : i32, i32
  }
  func.func @transform_1(%arg0: i32) -> (i32, i32) {
    %c0_i32 = arith.constant 0 : i32
    %c0_i32_0 = arith.constant 0 : i32
    return %arg0, %c0_i32 : i32, i32
  }
  func.func @transform_2(%arg0: i32) -> (i32, i32) {
    %c0_i32 = arith.constant 0 : i32
    %c0_i32_0 = arith.constant 0 : i32
    return %arg0, %c0_i32 : i32, i32
  }
  func.func @transform_3(%arg0: i32) -> (i32, i32) {
    %c0_i32 = arith.constant 0 : i32
    %c0_i32_0 = arith.constant 0 : i32
    %c0_i32_1 = arith.constant 0 : i32
    return %c0_i32, %c0_i32_0 : i32, i32
  }
  func.func @transform_4(%arg0: i32) -> (i32, i32) {
    %c0_i32 = arith.constant 0 : i32
    %c0_i32_0 = arith.constant 0 : i32
    %c0_i32_1 = arith.constant 0 : i32
    return %c0_i32, %c0_i32_0 : i32, i32
  }
  func.func @transform_5(%arg0: i32) -> (i32, i32) {
    %c0_i32 = arith.constant 0 : i32
    %c0_i32_0 = arith.constant 0 : i32
    %c0_i32_1 = arith.constant 0 : i32
    return %c0_i32, %c0_i32_0 : i32, i32
  }
  func.func @transform_6(%arg0: i32) -> (i32, i32) {
    %c0_i32 = arith.constant 0 : i32
    %c0_i32_0 = arith.constant 0 : i32
    %c0_i32_1 = arith.constant 0 : i32
    return %c0_i32, %c0_i32_0 : i32, i32
  }
  func.func @transform_7(%arg0: i32) -> (i32, i32) {
    %c0_i32 = arith.constant 0 : i32
    %c0_i32_0 = arith.constant 0 : i32
    %c0_i32_1 = arith.constant 0 : i32
    return %c0_i32, %c0_i32_0 : i32, i32
  }
  func.func @transform_8(%arg0: i32) -> (i32, i32) {
    %c0_i32 = arith.constant 0 : i32
    %c0_i32_0 = arith.constant 0 : i32
    %c0_i32_1 = arith.constant 0 : i32
    return %c0_i32, %c0_i32_0 : i32, i32
  }
  func.func @transform_9(%arg0: i32) -> (i32, i32) {
    %c0_i32 = arith.constant 0 : i32
    %c0_i32_0 = arith.constant 0 : i32
    %c0_i32_1 = arith.constant 0 : i32
    return %c0_i32, %c0_i32_0 : i32, i32
  }
  func.func @transform_10(%arg0: i32) -> (i32, i32) {
    %c0_i32 = arith.constant 0 : i32
    %c0_i32_0 = arith.constant 0 : i32
    return %arg0, %c0_i32 : i32, i32
  }
}

</mosaic_0001>

<llo_original>
// kernel: tpu_custom_call.1
$region0: #{tpu_custom_call.1}
  #allocation0 [shape = 'u32[]', space=smem, size = 0x4, offset = 0x4, fixed_abs, tag = 'smem constant byte address 0x4 - core index']
  #allocation1 [shape = 'u32[144,128]{1,0:T(1,128)}', space=vmem, size = 0x12000, scoped, tag = 'internal scratch']
  %s0 = inlined_call_operand.hbm [shape: f32[16,128], index: 0, kind: input, shape index: {}]
  %s1 = inlined_call_operand.vmem [shape: f32[16,2048], index: 1, kind: input, shape index: {}]
  %s2 = inlined_call_operand.hbm [shape: f32[16,2048], index: 2, kind: input, shape index: {}]
  %s3 = inlined_call_operand.hbm [shape: f32[128,128], index: 3, kind: input, shape index: {}]
  %s4 = inlined_call_operand.vmem [shape: f32[1,128], index: 4, kind: input, shape index: {}]
  %s5 = inlined_call_operand.vmem [shape: f32[128,2048], index: 5, kind: input, shape index: {}]
  %s6 = inlined_call_operand.vmem [shape: f32[2048,16], index: 6, kind: input, shape index: {}]
  %s7 = inlined_call_operand.hbm [shape: f32[16,2048], index: 7, kind: input, shape index: {}]
  %s8 = inlined_call_operand.hbm [shape: f32[2048,128], index: 8, kind: input, shape index: {}]
  %s9 = inlined_call_operand.vmem [shape: f32[1,128], index: 9, kind: input, shape index: {}]
  %s10 = inlined_call_operand.hbm [shape: f32[16,128], index: 10, kind: output, shape index: {}]
  %s11 = sld [smem:[#allocation0]]
  $region93: #{tpu_custom_call.1} parent=0
    _
  %s13 = ssub.s32 1, %s11
  %s14 = scalar_select 0, %s13, %s11
  $region1: #{tpu_custom_call.1} parent=0
    #allocation2 [shape = 'u8[8192]{0}', space=vmem, size = 0x2000, scoped, tag = 'input window, operand 0']
    #allocation3 [shape = 's32[2]{0}', space=sflag, size = 0x8, scoped, tag = 'scoped memory for tpu_custom_call.1']
    #allocation4 [shape = 's32[2]{0}', space=sflag, size = 0x8, scoped, tag = 'scoped memory for tpu_custom_call.1']
    #allocation5 [shape = 'u8[131072]{0}', space=vmem, size = 0x20000, scoped, tag = 'input window, operand 2']
    #allocation6 [shape = 's32[2]{0}', space=sflag, size = 0x8, scoped, tag = 'scoped memory for tpu_custom_call.1']
    #allocation7 [shape = 'u8[65536]{0}', space=vmem, size = 0x10000, scoped, tag = 'input window, operand 3, single buffered']
    #allocation8 [shape = 'u8[131072]{0}', space=vmem, size = 0x20000, scoped, tag = 'input window, operand 7, single buffered']
    #allocation9 [shape = 's32[1]{0}', space=sflag, size = 0x4, scoped, tag = 'scoped memory for tpu_custom_call.1']
    #allocation10 [shape = 'u8[1048576]{0}', space=vmem, size = 0x100000, scoped, tag = 'input window, operand 8, single buffered']
    #allocation11 [shape = 'u8[8192]{0}', space=vmem, size = 0x2000, scoped, tag = 'output window, operand 0']
    %15 = vsyncpa [#allocation3], 0
    %s16 = scalar_lea.sflag [#allocation3], 1
    %17 = vsyncpa %s16, 0
    %18 = vsyncpa [#allocation6], 0
    %s19 = scalar_lea.sflag [#allocation6], 1
    %20 = vsyncpa %s19, 0
    %21 = vsyncpa [#allocation9], 0
    %22 = vsyncpa [#allocation4], 0
    %s23 = scalar_lea.sflag [#allocation4], 1
    %24 = vsyncpa %s23, 0
    loop: start=0, step=1, limit=4
    $region2: #{tpu_custom_call.1} parent=1 // loop_pre_header
      _
    $region3: #{tpu_custom_call.1} parent=1 // loop_header
      %s26 = sphi 0, %s30
      %p27 = scmp.ge.s32.totalorder %s26, 4
      %s36 = sphi 0, %s38
      %s39 = sphi 0, %s36
      %s40 = sphi 0, %s39
      %s56 = sphi 0, %s40
      %s62 = sphi 0, %s64
      %s65 = sphi 0, %s62
      %s66 = sphi 0, %s65
      %s82 = sphi 0, %s66
      %s88 = sphi 0, %s90
      %s91 = sphi 0, %s88
      %s92 = sphi 0, %s91
      %s108 = sphi 0, %s92
      %s112 = sphi 0, %s112
      %s114 = sphi 0, %s112
      %s115 = sphi 0, %s114
      %s129 = sphi 0, %s115
      %s133 = sphi 0, %s133
      %s135 = sphi 0, %s133
      %s136 = sphi 0, %s135
      %s150 = sphi 0, %s136
      %s154 = sphi 0, %s154
      %s156 = sphi 0, %s154
      %s157 = sphi 0, %s156
      %s171 = sphi 0, %s157
      %s175 = sphi 0, %s175
      %s177 = sphi 0, %s175
      %s178 = sphi 0, %s177
      %s192 = sphi 0, %s178
      %s196 = sphi 0, %s196
      %s198 = sphi 0, %s196
      %s199 = sphi 0, %s198
      %s213 = sphi 0, %s199
      %s217 = sphi 0, %s217
      %s219 = sphi 0, %s217
      %s220 = sphi 0, %s219
      %s234 = sphi 0, %s220
      %s238 = sphi 0, %s238
      %s240 = sphi 0, %s238
      %s241 = sphi 0, %s240
      %s255 = sphi 0, %s241
      %s261 = sphi 0, %s263
      %s264 = sphi 0, %s261
      %s265 = sphi 0, %s264
      %s281 = sphi 0, %s265
    $region4: #{tpu_custom_call.1} parent=1 // loop_header_branch
      %29 = sbr.rel (%p27) target = $region8
    $region5: #{tpu_custom_call.1} parent=1 // loop_body
      %s31 = ssub.s32 %s26, 1
      %s32 = ssub.s32 %s26, 2
      %s33 = sadd.s32 %s26, 1
      %s34 = ssub.s32 %s26, %s33
      %p35 = scmp.eq.s32.totalorder %s34, 0
      %s37 = sadd.s32 %s36, 1
      %s38 = scalar_select %p35, %s36, %s37
      %p41 = pneg %p35
      %p42 = scmp.eq.s32.totalorder %s26, 1
      %p43 = por %p41, %p42
      %p44 = scmp.ne.s32.totalorder %s36, %s39
      %p45 = scmp.eq.s32.totalorder %s26, 0
      %p46 = por %p44, %p45
      %p47 = scmp.ne.s32.totalorder %s36, %s39
      %p48 = scmp.eq.s32.totalorder %s31, 1
      %p49 = por %p47, %p48
      %p50 = scmp.ne.s32.totalorder %s39, %s40
      %p51 = scmp.eq.s32.totalorder %s31, 0
      %p52 = por %p50, %p51
      %p53 = scmp.ne.s32.totalorder %s39, %s40
      %p54 = scmp.eq.s32.totalorder %s32, 1
      %p55 = por %p53, %p54
      %p57 = scmp.ne.s32.totalorder %s40, %s56
      %p58 = scmp.eq.s32.totalorder %s32, 0
      %p59 = por %p57, %p58
      %s60 = ssub.s32 %s26, %s33
      %p61 = scmp.eq.s32.totalorder %s60, 0
      %s63 = sadd.s32 %s62, 1
      %s64 = scalar_select %p61, %s62, %s63
      %p67 = pneg %p61
      %p68 = scmp.eq.s32.totalorder %s26, 1
      %p69 = por %p67, %p68
      %p70 = scmp.ne.s32.totalorder %s62, %s65
      %p71 = scmp.eq.s32.totalorder %s26, 0
      %p72 = por %p70, %p71
      %p73 = scmp.ne.s32.totalorder %s62, %s65
      %p74 = scmp.eq.s32.totalorder %s31, 1
      %p75 = por %p73, %p74
      %p76 = scmp.ne.s32.totalorder %s65, %s66
      %p77 = scmp.eq.s32.totalorder %s31, 0
      %p78 = por %p76, %p77
      %p79 = scmp.ne.s32.totalorder %s65, %s66
      %p80 = scmp.eq.s32.totalorder %s32, 1
      %p81 = por %p79, %p80
      %p83 = scmp.ne.s32.totalorder %s66, %s82
      %p84 = scmp.eq.s32.totalorder %s32, 0
      %p85 = por %p83, %p84
      %s86 = ssub.s32 %s26, %s33
      %p87 = scmp.eq.s32.totalorder %s86, 0
      %s89 = sadd.s32 %s88, 1
      %s90 = scalar_select %p87, %s88, %s89
      %p93 = pneg %p87
      %p94 = scmp.eq.s32.totalorder %s26, 1
      %p95 = por %p93, %p94
      %p96 = scmp.ne.s32.totalorder %s88, %s91
      %p97 = scmp.eq.s32.totalorder %s26, 0
      %p98 = por %p96, %p97
      %p99 = scmp.ne.s32.totalorder %s88, %s91
      %p100 = scmp.eq.s32.totalorder %s31, 1
      %p101 = por %p99, %p100
      %p102 = scmp.ne.s32.totalorder %s91, %s92
      %p103 = scmp.eq.s32.totalorder %s31, 0
      %p104 = por %p102, %p103
      %p105 = scmp.ne.s32.totalorder %s91, %s92
      %p106 = scmp.eq.s32.totalorder %s32, 1
      %p107 = por %p105, %p106
      %p109 = scmp.ne.s32.totalorder %s92, %s108
      %p110 = scmp.eq.s32.totalorder %s32, 0
      %p111 = por %p109, %p110
      %s113 = sadd.s32 %s112, 1
      %p116 = scmp.eq.s32.totalorder %s26, 1
      %p117 = scmp.ne.s32.totalorder %s112, %s114
      %p118 = scmp.eq.s32.totalorder %s26, 0
      %p119 = por %p117, %p118
      %p120 = scmp.ne.s32.totalorder %s112, %s114
      %p121 = scmp.eq.s32.totalorder %s31, 1
      %p122 = por %p120, %p121
      %p123 = scmp.ne.s32.totalorder %s114, %s115
      %p124 = scmp.eq.s32.totalorder %s31, 0
      %p125 = por %p123, %p124
      %p126 = scmp.ne.s32.totalorder %s114, %s115
      %p127 = scmp.eq.s32.totalorder %s32, 1
      %p128 = por %p126, %p127
      %p130 = scmp.ne.s32.totalorder %s115, %s129
      %p131 = scmp.eq.s32.totalorder %s32, 0
      %p132 = por %p130, %p131
      %s134 = sadd.s32 %s133, 1
      %p137 = scmp.eq.s32.totalorder %s26, 1
      %p138 = scmp.ne.s32.totalorder %s133, %s135
      %p139 = scmp.eq.s32.totalorder %s26, 0
      %p140 = por %p138, %p139
      %p141 = scmp.ne.s32.totalorder %s133, %s135
      %p142 = scmp.eq.s32.totalorder %s31, 1
      %p143 = por %p141, %p142
      %p144 = scmp.ne.s32.totalorder %s135, %s136
      %p145 = scmp.eq.s32.totalorder %s31, 0
      %p146 = por %p144, %p145
      %p147 = scmp.ne.s32.totalorder %s135, %s136
      %p148 = scmp.eq.s32.totalorder %s32, 1
      %p149 = por %p147, %p148
      %p151 = scmp.ne.s32.totalorder %s136, %s150
      %p152 = scmp.eq.s32.totalorder %s32, 0
      %p153 = por %p151, %p152
      %s155 = sadd.s32 %s154, 1
      %p158 = scmp.eq.s32.totalorder %s26, 1
      %p159 = scmp.ne.s32.totalorder %s154, %s156
      %p160 = scmp.eq.s32.totalorder %s26, 0
      %p161 = por %p159, %p160
      %p162 = scmp.ne.s32.totalorder %s154, %s156
      %p163 = scmp.eq.s32.totalorder %s31, 1
      %p164 = por %p162, %p163
      %p165 = scmp.ne.s32.totalorder %s156, %s157
      %p166 = scmp.eq.s32.totalorder %s31, 0
      %p167 = por %p165, %p166
      %p168 = scmp.ne.s32.totalorder %s156, %s157
      %p169 = scmp.eq.s32.totalorder %s32, 1
      %p170 = por %p168, %p169
      %p172 = scmp.ne.s32.totalorder %s157, %s171
      %p173 = scmp.eq.s32.totalorder %s32, 0
      %p174 = por %p172, %p173
      %s176 = sadd.s32 %s175, 1
      %p179 = scmp.eq.s32.totalorder %s26, 1
      %p180 = scmp.ne.s32.totalorder %s175, %s177
      %p181 = scmp.eq.s32.totalorder %s26, 0
      %p182 = por %p180, %p181
      %p183 = scmp.ne.s32.totalorder %s175, %s177
      %p184 = scmp.eq.s32.totalorder %s31, 1
      %p185 = por %p183, %p184
      %p186 = scmp.ne.s32.totalorder %s177, %s178
      %p187 = scmp.eq.s32.totalorder %s31, 0
      %p188 = por %p186, %p187
      %p189 = scmp.ne.s32.totalorder %s177, %s178
      %p190 = scmp.eq.s32.totalorder %s32, 1
      %p191 = por %p189, %p190
      %p193 = scmp.ne.s32.totalorder %s178, %s192
      %p194 = scmp.eq.s32.totalorder %s32, 0
      %p195 = por %p193, %p194
      %s197 = sadd.s32 %s196, 1
      %p200 = scmp.eq.s32.totalorder %s26, 1
      %p201 = scmp.ne.s32.totalorder %s196, %s198
      %p202 = scmp.eq.s32.totalorder %s26, 0
      %p203 = por %p201, %p202
      %p204 = scmp.ne.s32.totalorder %s196, %s198
      %p205 = scmp.eq.s32.totalorder %s31, 1
      %p206 = por %p204, %p205
      %p207 = scmp.ne.s32.totalorder %s198, %s199
      %p208 = scmp.eq.s32.totalorder %s31, 0
      %p209 = por %p207, %p208
      %p210 = scmp.ne.s32.totalorder %s198, %s199
      %p211 = scmp.eq.s32.totalorder %s32, 1
      %p212 = por %p210, %p211
      %p214 = scmp.ne.s32.totalorder %s199, %s213
      %p215 = scmp.eq.s32.totalorder %s32, 0
      %p216 = por %p214, %p215
      %s218 = sadd.s32 %s217, 1
      %p221 = scmp.eq.s32.totalorder %s26, 1
      %p222 = scmp.ne.s32.totalorder %s217, %s219
      %p223 = scmp.eq.s32.totalorder %s26, 0
      %p224 = por %p222, %p223
      %p225 = scmp.ne.s32.totalorder %s217, %s219
      %p226 = scmp.eq.s32.totalorder %s31, 1
      %p227 = por %p225, %p226
      %p228 = scmp.ne.s32.totalorder %s219, %s220
      %p229 = scmp.eq.s32.totalorder %s31, 0
      %p230 = por %p228, %p229
      %p231 = scmp.ne.s32.totalorder %s219, %s220
      %p232 = scmp.eq.s32.totalorder %s32, 1
      %p233 = por %p231, %p232
      %p235 = scmp.ne.s32.totalorder %s220, %s234
      %p236 = scmp.eq.s32.totalorder %s32, 0
      %p237 = por %p235, %p236
      %s239 = sadd.s32 %s238, 1
      %p242 = scmp.eq.s32.totalorder %s26, 1
      %p243 = scmp.ne.s32.totalorder %s238, %s240
      %p244 = scmp.eq.s32.totalorder %s26, 0
      %p245 = por %p243, %p244
      %p246 = scmp.ne.s32.totalorder %s238, %s240
      %p247 = scmp.eq.s32.totalorder %s31, 1
      %p248 = por %p246, %p247
      %p249 = scmp.ne.s32.totalorder %s240, %s241
      %p250 = scmp.eq.s32.totalorder %s31, 0
      %p251 = por %p249, %p250
      %p252 = scmp.ne.s32.totalorder %s240, %s241
      %p253 = scmp.eq.s32.totalorder %s32, 1
      %p254 = por %p252, %p253
      %p256 = scmp.ne.s32.totalorder %s241, %s255
      %p257 = scmp.eq.s32.totalorder %s32, 0
      %p258 = por %p256, %p257
      %s259 = ssub.s32 %s26, %s33
      %p260 = scmp.eq.s32.totalorder %s259, 0
      %s262 = sadd.s32 %s261, 1
      %s263 = scalar_select %p260, %s261, %s262
      %p266 = pneg %p260
      %p267 = scmp.eq.s32.totalorder %s26, 1
      %p268 = por %p266, %p267
      %p269 = scmp.ne.s32.totalorder %s261, %s264
      %p270 = scmp.eq.s32.totalorder %s26, 0
      %p271 = por %p269, %p270
      %p272 = scmp.ne.s32.totalorder %s261, %s264
      %p273 = scmp.eq.s32.totalorder %s31, 1
      %p274 = por %p272, %p273
      %p275 = scmp.ne.s32.totalorder %s264, %s265
      %p276 = scmp.eq.s32.totalorder %s31, 0
      %p277 = por %p275, %p276
      %p278 = scmp.ne.s32.totalorder %s264, %s265
      %p279 = scmp.eq.s32.totalorder %s32, 1
      %p280 = por %p278, %p279
      %p282 = scmp.ne.s32.totalorder %s265, %s281
      %p283 = scmp.eq.s32.totalorder %s32, 0
      %p284 = por %p282, %p283
      %p285 = scmp.le.s32.totalorder 1, %s26
      %p286 = scmp.lt.s32.totalorder %s26, 3
      %p287 = pnand %p285, %p286
      %p288 = pneg %p287
      // Predicated region
      $region9: #{tpu_custom_call.1} parent=5 // pred_check
        _
      $region10: #{tpu_custom_call.1} parent=5 // pred_check_branch
        %290 = sbr.rel (%p287) target = $region12
      $region11: #{tpu_custom_call.1} parent=5 // pred_region
        %s291 = ssub.s32 %s26, 1
        // Predicated region
        $region13: #{tpu_custom_call.1} parent=11 // pred_check
          %p292 = pneg %p125
        $region14: #{tpu_custom_call.1} parent=11 // pred_check_branch
          %294 = sbr.rel (%p292) target = $region16
        $region15: #{tpu_custom_call.1} parent=11 // pred_region
          %s296 = ssub.s32 2048, 2048
          %297 = vsyncadd [#allocation6], %s296
          %s298 = sshll.u32 [#allocation7], 4
          %s299 = int_to_ptr.vmem [resolvable:$true] %s298
          %304 = dma.hbm_to_vmem [thread:$0]  %s3, 2048, %s299, [#allocation6], 128, 128, 8
        $region16: #{tpu_custom_call.1} parent=11 // pred_fallthru
          _
        // Predicated region
        $region17: #{tpu_custom_call.1} parent=11 // pred_check
          %p305 = pneg %p146
        $region18: #{tpu_custom_call.1} parent=11 // pred_check_branch
          %307 = sbr.rel (%p305) target = $region20
        $region19: #{tpu_custom_call.1} parent=11 // pred_region
          _
        $region20: #{tpu_custom_call.1} parent=11 // pred_fallthru
          _
        // Predicated region
        $region21: #{tpu_custom_call.1} parent=11 // pred_check
          %p308 = pneg %p167
        $region22: #{tpu_custom_call.1} parent=11 // pred_check_branch
          %310 = sbr.rel (%p308) target = $region24
        $region23: #{tpu_custom_call.1} parent=11 // pred_region
          _
        $region24: #{tpu_custom_call.1} parent=11 // pred_fallthru
          _
        // Predicated region
        $region25: #{tpu_custom_call.1} parent=11 // pred_check
          %p311 = pneg %p188
        $region26: #{tpu_custom_call.1} parent=11 // pred_check_branch
          %313 = sbr.rel (%p311) target = $region28
        $region27: #{tpu_custom_call.1} parent=11 // pred_region
          _
        $region28: #{tpu_custom_call.1} parent=11 // pred_fallthru
          _
        // Predicated region
        $region29: #{tpu_custom_call.1} parent=11 // pred_check
          %p314 = pneg %p209
        $region30: #{tpu_custom_call.1} parent=11 // pred_check_branch
          %316 = sbr.rel (%p314) target = $region32
        $region31: #{tpu_custom_call.1} parent=11 // pred_region
          %s318 = ssub.s32 4096, 4096
          %319 = vsyncadd [#allocation9], %s318
          %s320 = sshll.u32 [#allocation8], 4
          %s321 = int_to_ptr.vmem [resolvable:$true] %s320
          %326 = dma.hbm_to_vmem [thread:$0]  %s7, 4096, %s321, [#allocation9], 2048, 2048, 128
        $region32: #{tpu_custom_call.1} parent=11 // pred_fallthru
          _
        // Predicated region
        $region33: #{tpu_custom_call.1} parent=11 // pred_check
          %p327 = pneg %p230
        $region34: #{tpu_custom_call.1} parent=11 // pred_check_branch
          %329 = sbr.rel (%p327) target = $region36
        $region35: #{tpu_custom_call.1} parent=11 // pred_region
          %s331 = ssub.s32 32768, 32768
          %332 = vsyncadd [#allocation9], %s331
          %s333 = sshll.u32 [#allocation10], 4
          %s334 = int_to_ptr.vmem [resolvable:$true] %s333
          %339 = dma.hbm_to_vmem [thread:$0]  %s8, 32768, %s334, [#allocation9], 128, 128, 8
        $region36: #{tpu_custom_call.1} parent=11 // pred_fallthru
          _
        // Predicated region
        $region37: #{tpu_custom_call.1} parent=11 // pred_check
          %p340 = pneg %p251
        $region38: #{tpu_custom_call.1} parent=11 // pred_check_branch
          %342 = sbr.rel (%p340) target = $region40
        $region39: #{tpu_custom_call.1} parent=11 // pred_region
          _
        $region40: #{tpu_custom_call.1} parent=11 // pred_fallthru
          _
      $region12: #{tpu_custom_call.1} parent=5 // pred_fallthru
        _
      %p343 = scmp.lt.s32.totalorder %s26, 2
      // Predicated region
      $region41: #{tpu_custom_call.1} parent=5 // pred_check
        %p344 = pneg %p343
      $region42: #{tpu_custom_call.1} parent=5 // pred_check_branch
        %346 = sbr.rel (%p344) target = $region44
      $region43: #{tpu_custom_call.1} parent=5 // pred_region
        // Predicated region
        $region45: #{tpu_custom_call.1} parent=43 // pred_check
          %p347 = pneg %p46
        $region46: #{tpu_custom_call.1} parent=43 // pred_check_branch
          %349 = sbr.rel (%p347) target = $region48
        $region47: #{tpu_custom_call.1} parent=43 // pred_region
          %s350 = sand.u32 %s36, 1
          %s351 = scalar_lea.sflag [#allocation3], %s350
          %s352 = sand.u32 %s36, 1
          %s353 = smul.addr %s352, 8
          %s354 = scalar_lea.vmem [#allocation2], %s353
          %s356 = ssub.s32 128, 128
          %357 = vsyncadd %s351, %s356
          %s358 = smul.addr %s26, 128
          %s359 = scalar_lea.hbm %s0, %s358
          %s361 = sshll.u32 %s354, 4
          %s362 = int_to_ptr.vmem [resolvable:$true] %s361
          %364 = dma.hbm_to_vmem [thread:$0]  %s359, 128, %s362, %s351
        $region48: #{tpu_custom_call.1} parent=43 // pred_fallthru
          _
        // Predicated region
        $region49: #{tpu_custom_call.1} parent=43 // pred_check
          %p365 = pneg %p72
        $region50: #{tpu_custom_call.1} parent=43 // pred_check_branch
          %367 = sbr.rel (%p365) target = $region52
        $region51: #{tpu_custom_call.1} parent=43 // pred_region
          %p368 = scmp.lt.s32.totalorder %s26, 1
          %s369 = scalar_select %p368, %s26, 1
          %s370 = smul.addr %s369, 16
          %s371 = smul.addr %s370, 8
          %s372 = scalar_lea.vmem %s1, %s371
        $region52: #{tpu_custom_call.1} parent=43 // pred_fallthru
          _
        // Predicated region
        $region53: #{tpu_custom_call.1} parent=43 // pred_check
          %p373 = pneg %p98
        $region54: #{tpu_custom_call.1} parent=43 // pred_check_branch
          %375 = sbr.rel (%p373) target = $region56
        $region55: #{tpu_custom_call.1} parent=43 // pred_region
          %s376 = sand.u32 %s26, 1
          %s377 = scalar_lea.sflag [#allocation6], %s376
          %s378 = sand.u32 %s88, 1
          %s379 = smul.addr %s378, 128
          %s380 = scalar_lea.vmem [#allocation5], %s379
          %s382 = ssub.s32 2048, 2048
          %383 = vsyncadd %s377, %s382
          %s384 = smul.addr %s26, 16
          %s385 = smul.addr %s384, 128
          %s386 = scalar_lea.hbm %s2, %s385
          %s388 = sshll.u32 %s380, 4
          %s389 = int_to_ptr.vmem [resolvable:$true] %s388
          %391 = dma.hbm_to_vmem [thread:$0]  %s386, 2048, %s389, %s377
        $region56: #{tpu_custom_call.1} parent=43 // pred_fallthru
          _
      $region44: #{tpu_custom_call.1} parent=5 // pred_fallthru
        _
      %p392 = scmp.le.s32.totalorder 1, %s26
      %p393 = scmp.lt.s32.totalorder %s26, 3
      %p394 = pnand %p392, %p393
      %p395 = pneg %p394
      // Predicated region
      $region57: #{tpu_custom_call.1} parent=5 // pred_check
        _
      $region58: #{tpu_custom_call.1} parent=5 // pred_check_branch
        %397 = sbr.rel (%p394) target = $region60
      $region59: #{tpu_custom_call.1} parent=5 // pred_region
        %s398 = ssub.s32 %s26, 1
        %s399 = sand.u32 %s39, 1
        %s400 = scalar_lea.sflag [#allocation3], %s399
        %s401 = sand.u32 %s39, 1
        %s402 = smul.addr %s401, 8
        %s403 = scalar_lea.vmem [#allocation2], %s402
        // Predicated region
        $region61: #{tpu_custom_call.1} parent=59 // pred_check
          %p404 = pneg %p52
        $region62: #{tpu_custom_call.1} parent=59 // pred_check_branch
          %406 = sbr.rel (%p404) target = $region64
        $region63: #{tpu_custom_call.1} parent=59 // pred_region
          %407 = dma.done %s400, 128
        $region64: #{tpu_custom_call.1} parent=59 // pred_fallthru
          _
        %s408 = sand.u32 %s31, 1
        %s409 = scalar_lea.sflag [#allocation6], %s408
        %s410 = sand.u32 %s91, 1
        %s411 = smul.addr %s410, 128
        %s412 = scalar_lea.vmem [#allocation5], %s411
        // Predicated region
        $region65: #{tpu_custom_call.1} parent=59 // pred_check
          %p413 = pneg %p104
        $region66: #{tpu_custom_call.1} parent=59 // pred_check_branch
          %415 = sbr.rel (%p413) target = $region68
        $region67: #{tpu_custom_call.1} parent=59 // pred_region
          %416 = dma.done %s409, 2048
        $region68: #{tpu_custom_call.1} parent=59 // pred_fallthru
          _
        // Predicated region
        $region69: #{tpu_custom_call.1} parent=59 // pred_check
          %p417 = pneg %p125
        $region70: #{tpu_custom_call.1} parent=59 // pred_check_branch
          %419 = sbr.rel (%p417) target = $region72
        $region71: #{tpu_custom_call.1} parent=59 // pred_region
          %420 = dma.done [#allocation6], 2048
        $region72: #{tpu_custom_call.1} parent=59 // pred_fallthru
          _
        // Predicated region
        $region73: #{tpu_custom_call.1} parent=59 // pred_check
          %p421 = pneg %p209
        $region74: #{tpu_custom_call.1} parent=59 // pred_check_branch
          %423 = sbr.rel (%p421) target = $region76
        $region75: #{tpu_custom_call.1} parent=59 // pred_region
          %424 = dma.done [#allocation9], 4096
        $region76: #{tpu_custom_call.1} parent=59 // pred_fallthru
          _
        // Predicated region
        $region77: #{tpu_custom_call.1} parent=59 // pred_check
          %p425 = pneg %p230
        $region78: #{tpu_custom_call.1} parent=59 // pred_check_branch
          %427 = sbr.rel (%p425) target = $region80
        $region79: #{tpu_custom_call.1} parent=59 // pred_region
          %428 = dma.done [#allocation9], 32768
        $region80: #{tpu_custom_call.1} parent=59 // pred_fallthru
          _
        %s429 = sand.u32 %s39, 1
        %s430 = scalar_lea.sflag [#allocation3], %s429
        %s431 = sand.u32 %s39, 1
        %s432 = smul.addr %s431, 8
        %s433 = scalar_lea.vmem [#allocation2], %s432
        %p434 = pneg %p52
        %p435 = pneg %p49
        %p436 = scmp.lt.s32.totalorder %s31, 1
        %s437 = scalar_select %p436, %s31, 1
        %s438 = smul.addr %s437, 16
        %s439 = smul.addr %s438, 8
        %s440 = scalar_lea.vmem %s1, %s439
        %p441 = pneg %p78
        %p442 = pneg %p75
        %s443 = sand.u32 %s31, 1
        %s444 = scalar_lea.sflag [#allocation6], %s443
        %s445 = sand.u32 %s91, 1
        %s446 = smul.addr %s445, 128
        %s447 = scalar_lea.vmem [#allocation5], %s446
        %p448 = pneg %p104
        %p449 = pneg %p101
        %p450 = pneg %p125
        %p451 = pneg %p122
        %p452 = pneg %p146
        %p453 = pneg %p143
        %p454 = pneg %p167
        %p455 = pneg %p164
        %p456 = pneg %p188
        %p457 = pneg %p185
        %p458 = pneg %p209
        %p459 = pneg %p206
        %p460 = pneg %p230
        %p461 = pneg %p227
        %p462 = pneg %p251
        %p463 = pneg %p248
        %p464 = pneg %p277
        %p465 = pneg %p274
        %s466 = sand.u32 %s264, 1
        %s467 = scalar_lea.sflag [#allocation4], %s466
        %s468 = sand.u32 %s264, 1
        %s469 = smul.addr %s468, 8
        %s470 = scalar_lea.vmem [#allocation11], %s469
        %p471 = scmp.lt.s32.totalorder %s31, 1
        %s472 = scalar_select %p471, %s31, 1
        %s473 = smul.addr %s472, 16
        %s474 = smul.addr %s473, 8
        %s475 = scalar_lea.vmem %s1, %s474
        %v476 = vld [vmem:[%s403] sm:$0xff]
        %v477 = vld [vmem:[%s475] sm:$0xff]
        %v478 = vld [vmem:[%s475 + $0x8] sm:$0xff]
        %v479 = vld [vmem:[%s475 + $0x10] sm:$0xff]
        %v480 = vld [vmem:[%s475 + $0x18] sm:$0xff]
        %v481 = vld [vmem:[%s475 + $0x20] sm:$0xff]
        %v482 = vld [vmem:[%s475 + $0x28] sm:$0xff]
        %v483 = vld [vmem:[%s475 + $0x30] sm:$0xff]
        %v484 = vld [vmem:[%s475 + $0x38] sm:$0xff]
        %v485 = vld [vmem:[%s475 + $0x40] sm:$0xff]
        %v486 = vld [vmem:[%s475 + $0x48] sm:$0xff]
        %v487 = vld [vmem:[%s475 + $0x50] sm:$0xff]
        %v488 = vld [vmem:[%s475 + $0x58] sm:$0xff]
        %v489 = vld [vmem:[%s475 + $0x60] sm:$0xff]
        %v490 = vld [vmem:[%s475 + $0x68] sm:$0xff]
        %v491 = vld [vmem:[%s475 + $0x70] sm:$0xff]
        %v492 = vld [vmem:[%s475 + $0x78] sm:$0xff]
        %v493 = vld [vmem:[%s412] sm:$0xff]
        %v494 = vld [vmem:[%s412 + $0x8] sm:$0xff]
        %v495 = vld [vmem:[%s412 + $0x10] sm:$0xff]
        %v496 = vld [vmem:[%s412 + $0x18] sm:$0xff]
        %v497 = vld [vmem:[%s412 + $0x20] sm:$0xff]
        %v498 = vld [vmem:[%s412 + $0x28] sm:$0xff]
        %v499 = vld [vmem:[%s412 + $0x30] sm:$0xff]
        %v500 = vld [vmem:[%s412 + $0x38] sm:$0xff]
        %v501 = vld [vmem:[%s412 + $0x40] sm:$0xff]
        %v502 = vld [vmem:[%s412 + $0x48] sm:$0xff]
        %v503 = vld [vmem:[%s412 + $0x50] sm:$0xff]
        %v504 = vld [vmem:[%s412 + $0x58] sm:$0xff]
        %v505 = vld [vmem:[%s412 + $0x60] sm:$0xff]
        %v506 = vld [vmem:[%s412 + $0x68] sm:$0xff]
        %v507 = vld [vmem:[%s412 + $0x70] sm:$0xff]
        %v508 = vld [vmem:[%s412 + $0x78] sm:$0xff]
        %v509 = vld [vmem:[#allocation7] sm:$0xff]
        %v510 = vld [vmem:[#allocation7 + $0x8] sm:$0xff]
        %v511 = vld [vmem:[#allocation7 + $0x10] sm:$0xff]
        %v512 = vld [vmem:[#allocation7 + $0x18] sm:$0xff]
        %v513 = vld [vmem:[#allocation7 + $0x20] sm:$0xff]
        %v514 = vld [vmem:[#allocation7 + $0x28] sm:$0xff]
        %v515 = vld [vmem:[#allocation7 + $0x30] sm:$0xff]
        %v516 = vld [vmem:[#allocation7 + $0x38] sm:$0xff]
        %v517 = vld [vmem:[#allocation7 + $0x40] sm:$0xff]
        %v518 = vld [vmem:[#allocation7 + $0x48] sm:$0xff]
        %v519 = vld [vmem:[#allocation7 + $0x50] sm:$0xff]
        %v520 = vld [vmem:[#allocation7 + $0x58] sm:$0xff]
        %v521 = vld [vmem:[#allocation7 + $0x60] sm:$0xff]
        %v522 = vld [vmem:[#allocation7 + $0x68] sm:$0xff]
        %v523 = vld [vmem:[#allocation7 + $0x70] sm:$0xff]
        %v524 = vld [vmem:[#allocation7 + $0x78] sm:$0xff]
        %v525 = vld [vmem:[%s4] sm:$0x1]
        %v527 = vlaneseq
        %v528 = vshrl.u32 %v527, 7
        %v529 = vsub.s32 0, %v528
        %v530 = vrot.slane %v525, %v529
        %532 = vmatprep.subr.mxu0 0.0
        %533 = vmatpush1.msra.mxu0 %v524
        %534 = vmatprep.subr.mxu0 0.0
        %535 = vmatpush1.msra.mxu0 %v523
        %536 = vmatprep.subr.mxu0 0.0
        %537 = vmatpush1.msra.mxu0 %v522
        %538 = vmatprep.subr.mxu0 0.0
        %539 = vmatpush1.msra.mxu0 %v521
        %540 = vmatprep.subr.mxu0 0.0
        %541 = vmatpush1.msra.mxu0 %v520
        %542 = vmatprep.subr.mxu0 0.0
        %543 = vmatpush1.msra.mxu0 %v519
        %544 = vmatprep.subr.mxu0 0.0
        %545 = vmatpush1.msra.mxu0 %v518
        %546 = vmatprep.subr.mxu0 0.0
        %547 = vmatpush1.msra.mxu0 %v517
        %548 = vmatprep.subr.mxu0 0.0
        %549 = vmatpush1.msra.mxu0 %v516
        %550 = vmatprep.subr.mxu0 0.0
        %551 = vmatpush1.msra.mxu0 %v515
        %552 = vmatprep.subr.mxu0 0.0
        %553 = vmatpush1.msra.mxu0 %v514
        %554 = vmatprep.subr.mxu0 0.0
        %555 = vmatpush1.msra.mxu0 %v513
        %556 = vmatprep.subr.mxu0 0.0
        %557 = vmatpush1.msra.mxu0 %v512
        %558 = vmatprep.subr.mxu0 0.0
        %559 = vmatpush1.msra.mxu0 %v511
        %560 = vmatprep.subr.mxu0 0.0
        %561 = vmatpush1.msra.mxu0 %v510
        %562 = vmatprep.subr.mxu0 0.0
        %563 = vmatpush1.msra.mxu0 %v509
        %564 = vmatprep.subr.mxu0 0.0
        %565 = vmatpush2.msra.mxu0 0.0
        %566 = vmatprep.subr.mxu0 0.0
        %567 = vmatpush2.msra.mxu0 0.0
        %568 = vmatprep.subr.mxu0 0.0
        %569 = vmatpush2.msra.mxu0 0.0
        %570 = vmatprep.subr.mxu0 0.0
        %571 = vmatpush2.msra.mxu0 0.0
        %572 = vmatprep.subr.mxu0 0.0
        %573 = vmatpush2.msra.mxu0 0.0
        %574 = vmatprep.subr.mxu0 0.0
        %575 = vmatpush2.msra.mxu0 0.0
        %576 = vmatprep.subr.mxu0 0.0
        %577 = vmatpush2.msra.mxu0 0.0
        %578 = vmatprep.subr.mxu0 0.0
        %579 = vmatpush2.msra.mxu0 0.0
        %580 = vmatprep.subr.mxu0 0.0
        %581 = vmatpush2.msra.mxu0 0.0
        %582 = vmatprep.subr.mxu0 0.0
        %583 = vmatpush2.msra.mxu0 0.0
        %584 = vmatprep.subr.mxu0 0.0
        %585 = vmatpush2.msra.mxu0 0.0
        %586 = vmatprep.subr.mxu0 0.0
        %587 = vmatpush2.msra.mxu0 0.0
        %588 = vmatprep.subr.mxu0 0.0
        %589 = vmatpush2.msra.mxu0 0.0
        %590 = vmatprep.subr.mxu0 0.0
        %591 = vmatpush2.msra.mxu0 0.0
        %592 = vmatprep.subr.mxu0 0.0
        %593 = vmatpush2.msra.mxu0 0.0
        %594 = vmatprep.subr.mxu0 0.0
        %595 = vmatpush2.msra.mxu0 0.0
        %596 = vmatprep.mubr.f32.mxu0 0.0
        %597 = vmatmul.mubr.f32.gmra.mxu0 %v476
        %v598 = vpop.f32.mrf.mxu0
        %v599 = vadd.f32 %v530, %v598
        %v600 = vpop.f32.mrf.mxu0
        %601 = vdwg.mxu0
        %v602 = vld [vmem:[%s5] sm:$0xff]
        %v603 = vld [vmem:[%s5 + $0x8] sm:$0xff]
        %v604 = vld [vmem:[%s5 + $0x10] sm:$0xff]
        %v605 = vld [vmem:[%s5 + $0x18] sm:$0xff]
        %v606 = vld [vmem:[%s5 + $0x20] sm:$0xff]
        %v607 = vld [vmem:[%s5 + $0x28] sm:$0xff]
        %v608 = vld [vmem:[%s5 + $0x30] sm:$0xff]
        %v609 = vld [vmem:[%s5 + $0x38] sm:$0xff]
        %v610 = vld [vmem:[%s5 + $0x40] sm:$0xff]
        %v611 = vld [vmem:[%s5 + $0x48] sm:$0xff]
        %v612 = vld [vmem:[%s5 + $0x50] sm:$0xff]
        %v613 = vld [vmem:[%s5 + $0x58] sm:$0xff]
        %v614 = vld [vmem:[%s5 + $0x60] sm:$0xff]
        %v615 = vld [vmem:[%s5 + $0x68] sm:$0xff]
        %v616 = vld [vmem:[%s5 + $0x70] sm:$0xff]
        %v617 = vld [vmem:[%s5 + $0x78] sm:$0xff]
        %v618 = vld [vmem:[%s5 + $0x80] sm:$0xff]
        %v619 = vld [vmem:[%s5 + $0x88] sm:$0xff]
        %v620 = vld [vmem:[%s5 + $0x90] sm:$0xff]
        %v621 = vld [vmem:[%s5 + $0x98] sm:$0xff]
        %v622 = vld [vmem:[%s5 + $0xa0] sm:$0xff]
        %v623 = vld [vmem:[%s5 + $0xa8] sm:$0xff]
        %v624 = vld [vmem:[%s5 + $0xb0] sm:$0xff]
        %v625 = vld [vmem:[%s5 + $0xb8] sm:$0xff]
        %v626 = vld [vmem:[%s5 + $0xc0] sm:$0xff]
        %v627 = vld [vmem:[%s5 + $0xc8] sm:$0xff]
        %v628 = vld [vmem:[%s5 + $0xd0] sm:$0xff]
        %v629 = vld [vmem:[%s5 + $0xd8] sm:$0xff]
        %v630 = vld [vmem:[%s5 + $0xe0] sm:$0xff]
        %v631 = vld [vmem:[%s5 + $0xe8] sm:$0xff]
        %v632 = vld [vmem:[%s5 + $0xf0] sm:$0xff]
        %v633 = vld [vmem:[%s5 + $0xf8] sm:$0xff]
        %v634 = vld [vmem:[%s5 + $0x100] sm:$0xff]
        %v635 = vld [vmem:[%s5 + $0x108] sm:$0xff]
        %v636 = vld [vmem:[%s5 + $0x110] sm:$0xff]
        %v637 = vld [vmem:[%s5 + $0x118] sm:$0xff]
        %v638 = vld [vmem:[%s5 + $0x120] sm:$0xff]
        %v639 = vld [vmem:[%s5 + $0x128] sm:$0xff]
        %v640 = vld [vmem:[%s5 + $0x130] sm:$0xff]
        %v641 = vld [vmem:[%s5 + $0x138] sm:$0xff]
        %v642 = vld [vmem:[%s5 + $0x140] sm:$0xff]
        %v643 = vld [vmem:[%s5 + $0x148] sm:$0xff]
        %v644 = vld [vmem:[%s5 + $0x150] sm:$0xff]
        %v645 = vld [vmem:[%s5 + $0x158] sm:$0xff]
        %v646 = vld [vmem:[%s5 + $0x160] sm:$0xff]
        %v647 = vld [vmem:[%s5 + $0x168] sm:$0xff]
        %v648 = vld [vmem:[%s5 + $0x170] sm:$0xff]
        %v649 = vld [vmem:[%s5 + $0x178] sm:$0xff]
        %v650 = vld [vmem:[%s5 + $0x180] sm:$0xff]
        %v651 = vld [vmem:[%s5 + $0x188] sm:$0xff]
        %v652 = vld [vmem:[%s5 + $0x190] sm:$0xff]
        %v653 = vld [vmem:[%s5 + $0x198] sm:$0xff]
        %v654 = vld [vmem:[%s5 + $0x1a0] sm:$0xff]
        %v655 = vld [vmem:[%s5 + $0x1a8] sm:$0xff]
        %v656 = vld [vmem:[%s5 + $0x1b0] sm:$0xff]
        %v657 = vld [vmem:[%s5 + $0x1b8] sm:$0xff]
        %v658 = vld [vmem:[%s5 + $0x1c0] sm:$0xff]
        %v659 = vld [vmem:[%s5 + $0x1c8] sm:$0xff]
        %v660 = vld [vmem:[%s5 + $0x1d0] sm:$0xff]
        %v661 = vld [vmem:[%s5 + $0x1d8] sm:$0xff]
        %v662 = vld [vmem:[%s5 + $0x1e0] sm:$0xff]
        %v663 = vld [vmem:[%s5 + $0x1e8] sm:$0xff]
        %v664 = vld [vmem:[%s5 + $0x1f0] sm:$0xff]
        %v665 = vld [vmem:[%s5 + $0x1f8] sm:$0xff]
        %v666 = vld [vmem:[%s5 + $0x200] sm:$0xff]
        %v667 = vld [vmem:[%s5 + $0x208] sm:$0xff]
        %v668 = vld [vmem:[%s5 + $0x210] sm:$0xff]
        %v669 = vld [vmem:[%s5 + $0x218] sm:$0xff]
        %v670 = vld [vmem:[%s5 + $0x220] sm:$0xff]
        %v671 = vld [vmem:[%s5 + $0x228] sm:$0xff]
        %v672 = vld [vmem:[%s5 + $0x230] sm:$0xff]
        %v673 = vld [vmem:[%s5 + $0x238] sm:$0xff]
        %v674 = vld [vmem:[%s5 + $0x240] sm:$0xff]
        %v675 = vld [vmem:[%s5 + $0x248] sm:$0xff]
        %v676 = vld [vmem:[%s5 + $0x250] sm:$0xff]
        %v677 = vld [vmem:[%s5 + $0x258] sm:$0xff]
        %v678 = vld [vmem:[%s5 + $0x260] sm:$0xff]
        %v679 = vld [vmem:[%s5 + $0x268] sm:$0xff]
        %v680 = vld [vmem:[%s5 + $0x270] sm:$0xff]
        %v681 = vld [vmem:[%s5 + $0x278] sm:$0xff]
        %v682 = vld [vmem:[%s5 + $0x280] sm:$0xff]
        %v683 = vld [vmem:[%s5 + $0x288] sm:$0xff]
        %v684 = vld [vmem:[%s5 + $0x290] sm:$0xff]
        %v685 = vld [vmem:[%s5 + $0x298] sm:$0xff]
        %v686 = vld [vmem:[%s5 + $0x2a0] sm:$0xff]
        %v687 = vld [vmem:[%s5 + $0x2a8] sm:$0xff]
        %v688 = vld [vmem:[%s5 + $0x2b0] sm:$0xff]
        %v689 = vld [vmem:[%s5 + $0x2b8] sm:$0xff]
        %v690 = vld [vmem:[%s5 + $0x2c0] sm:$0xff]
        %v691 = vld [vmem:[%s5 + $0x2c8] sm:$0xff]
        %v692 = vld [vmem:[%s5 + $0x2d0] sm:$0xff]
        %v693 = vld [vmem:[%s5 + $0x2d8] sm:$0xff]
        %v694 = vld [vmem:[%s5 + $0x2e0] sm:$0xff]
        %v695 = vld [vmem:[%s5 + $0x2e8] sm:$0xff]
        %v696 = vld [vmem:[%s5 + $0x2f0] sm:$0xff]
        %v697 = vld [vmem:[%s5 + $0x2f8] sm:$0xff]
        %v698 = vld [vmem:[%s5 + $0x300] sm:$0xff]
        %v699 = vld [vmem:[%s5 + $0x308] sm:$0xff]
        %v700 = vld [vmem:[%s5 + $0x310] sm:$0xff]
        %v701 = vld [vmem:[%s5 + $0x318] sm:$0xff]
        %v702 = vld [vmem:[%s5 + $0x320] sm:$0xff]
        %v703 = vld [vmem:[%s5 + $0x328] sm:$0xff]
        %v704 = vld [vmem:[%s5 + $0x330] sm:$0xff]
        %v705 = vld [vmem:[%s5 + $0x338] sm:$0xff]
        %v706 = vld [vmem:[%s5 + $0x340] sm:$0xff]
        %v707 = vld [vmem:[%s5 + $0x348] sm:$0xff]
        %v708 = vld [vmem:[%s5 + $0x350] sm:$0xff]
        %v709 = vld [vmem:[%s5 + $0x358] sm:$0xff]
        %v710 = vld [vmem:[%s5 + $0x360] sm:$0xff]
        %v711 = vld [vmem:[%s5 + $0x368] sm:$0xff]
        %v712 = vld [vmem:[%s5 + $0x370] sm:$0xff]
        %v713 = vld [vmem:[%s5 + $0x378] sm:$0xff]
        %v714 = vld [vmem:[%s5 + $0x380] sm:$0xff]
        %v715 = vld [vmem:[%s5 + $0x388] sm:$0xff]
        %v716 = vld [vmem:[%s5 + $0x390] sm:$0xff]
        %v717 = vld [vmem:[%s5 + $0x398] sm:$0xff]
        %v718 = vld [vmem:[%s5 + $0x3a0] sm:$0xff]
        %v719 = vld [vmem:[%s5 + $0x3a8] sm:$0xff]
        %v720 = vld [vmem:[%s5 + $0x3b0] sm:$0xff]
        %v721 = vld [vmem:[%s5 + $0x3b8] sm:$0xff]
        %v722 = vld [vmem:[%s5 + $0x3c0] sm:$0xff]
        %v723 = vld [vmem:[%s5 + $0x3c8] sm:$0xff]
        %v724 = vld [vmem:[%s5 + $0x3d0] sm:$0xff]
        %v725 = vld [vmem:[%s5 + $0x3d8] sm:$0xff]
        %v726 = vld [vmem:[%s5 + $0x3e0] sm:$0xff]
        %v727 = vld [vmem:[%s5 + $0x3e8] sm:$0xff]
        %v728 = vld [vmem:[%s5 + $0x3f0] sm:$0xff]
        %v729 = vld [vmem:[%s5 + $0x3f8] sm:$0xff]
        %v730 = vld [vmem:[%s5 + $0x400] sm:$0xff]
        %v731 = vld [vmem:[%s5 + $0x408] sm:$0xff]
        %v732 = vld [vmem:[%s5 + $0x410] sm:$0xff]
        %v733 = vld [vmem:[%s5 + $0x418] sm:$0xff]
        %v734 = vld [vmem:[%s5 + $0x420] sm:$0xff]
        %v735 = vld [vmem:[%s5 + $0x428] sm:$0xff]
        %v736 = vld [vmem:[%s5 + $0x430] sm:$0xff]
        %v737 = vld [vmem:[%s5 + $0x438] sm:$0xff]
        %v738 = vld [vmem:[%s5 + $0x440] sm:$0xff]
        %v739 = vld [vmem:[%s5 + $0x448] sm:$0xff]
        %v740 = vld [vmem:[%s5 + $0x450] sm:$0xff]
        %v741 = vld [vmem:[%s5 + $0x458] sm:$0xff]
        %v742 = vld [vmem:[%s5 + $0x460] sm:$0xff]
        %v743 = vld [vmem:[%s5 + $0x468] sm:$0xff]
        %v744 = vld [vmem:[%s5 + $0x470] sm:$0xff]
        %v745 = vld [vmem:[%s5 + $0x478] sm:$0xff]
        %v746 = vld [vmem:[%s5 + $0x480] sm:$0xff]
        %v747 = vld [vmem:[%s5 + $0x488] sm:$0xff]
        %v748 = vld [vmem:[%s5 + $0x490] sm:$0xff]
        %v749 = vld [vmem:[%s5 + $0x498] sm:$0xff]
        %v750 = vld [vmem:[%s5 + $0x4a0] sm:$0xff]
        %v751 = vld [vmem:[%s5 + $0x4a8] sm:$0xff]
        %v752 = vld [vmem:[%s5 + $0x4b0] sm:$0xff]
        %v753 = vld [vmem:[%s5 + $0x4b8] sm:$0xff]
        %v754 = vld [vmem:[%s5 + $0x4c0] sm:$0xff]
        %v755 = vld [vmem:[%s5 + $0x4c8] sm:$0xff]
        %v756 = vld [vmem:[%s5 + $0x4d0] sm:$0xff]
        %v757 = vld [vmem:[%s5 + $0x4d8] sm:$0xff]
        %v758 = vld [vmem:[%s5 + $0x4e0] sm:$0xff]
        %v759 = vld [vmem:[%s5 + $0x4e8] sm:$0xff]
        %v760 = vld [vmem:[%s5 + $0x4f0] sm:$0xff]
        %v761 = vld [vmem:[%s5 + $0x4f8] sm:$0xff]
        %v762 = vld [vmem:[%s5 + $0x500] sm:$0xff]
        %v763 = vld [vmem:[%s5 + $0x508] sm:$0xff]
        %v764 = vld [vmem:[%s5 + $0x510] sm:$0xff]
        %v765 = vld [vmem:[%s5 + $0x518] sm:$0xff]
        %v766 = vld [vmem:[%s5 + $0x520] sm:$0xff]
        %v767 = vld [vmem:[%s5 + $0x528] sm:$0xff]
        %v768 = vld [vmem:[%s5 + $0x530] sm:$0xff]
        %v769 = vld [vmem:[%s5 + $0x538] sm:$0xff]
        %v770 = vld [vmem:[%s5 + $0x540] sm:$0xff]
        %v771 = vld [vmem:[%s5 + $0x548] sm:$0xff]
        %v772 = vld [vmem:[%s5 + $0x550] sm:$0xff]
        %v773 = vld [vmem:[%s5 + $0x558] sm:$0xff]
        %v774 = vld [vmem:[%s5 + $0x560] sm:$0xff]
        %v775 = vld [vmem:[%s5 + $0x568] sm:$0xff]
        %v776 = vld [vmem:[%s5 + $0x570] sm:$0xff]
        %v777 = vld [vmem:[%s5 + $0x578] sm:$0xff]
        %v778 = vld [vmem:[%s5 + $0x580] sm:$0xff]
        %v779 = vld [vmem:[%s5 + $0x588] sm:$0xff]
        %v780 = vld [vmem:[%s5 + $0x590] sm:$0xff]
        %v781 = vld [vmem:[%s5 + $0x598] sm:$0xff]
        %v782 = vld [vmem:[%s5 + $0x5a0] sm:$0xff]
        %v783 = vld [vmem:[%s5 + $0x5a8] sm:$0xff]
        %v784 = vld [vmem:[%s5 + $0x5b0] sm:$0xff]
        %v785 = vld [vmem:[%s5 + $0x5b8] sm:$0xff]
        %v786 = vld [vmem:[%s5 + $0x5c0] sm:$0xff]
        %v787 = vld [vmem:[%s5 + $0x5c8] sm:$0xff]
        %v788 = vld [vmem:[%s5 + $0x5d0] sm:$0xff]
        %v789 = vld [vmem:[%s5 + $0x5d8] sm:$0xff]
        %v790 = vld [vmem:[%s5 + $0x5e0] sm:$0xff]
        %v791 = vld [vmem:[%s5 + $0x5e8] sm:$0xff]
        %v792 = vld [vmem:[%s5 + $0x5f0] sm:$0xff]
        %v793 = vld [vmem:[%s5 + $0x5f8] sm:$0xff]
        %v794 = vld [vmem:[%s5 + $0x600] sm:$0xff]
        %v795 = vld [vmem:[%s5 + $0x608] sm:$0xff]
        %v796 = vld [vmem:[%s5 + $0x610] sm:$0xff]
        %v797 = vld [vmem:[%s5 + $0x618] sm:$0xff]
        %v798 = vld [vmem:[%s5 + $0x620] sm:$0xff]
        %v799 = vld [vmem:[%s5 + $0x628] sm:$0xff]
        %v800 = vld [vmem:[%s5 + $0x630] sm:$0xff]
        %v801 = vld [vmem:[%s5 + $0x638] sm:$0xff]
        %v802 = vld [vmem:[%s5 + $0x640] sm:$0xff]
        %v803 = vld [vmem:[%s5 + $0x648] sm:$0xff]
        %v804 = vld [vmem:[%s5 + $0x650] sm:$0xff]
        %v805 = vld [vmem:[%s5 + $0x658] sm:$0xff]
        %v806 = vld [vmem:[%s5 + $0x660] sm:$0xff]
        %v807 = vld [vmem:[%s5 + $0x668] sm:$0xff]
        %v808 = vld [vmem:[%s5 + $0x670] sm:$0xff]
        %v809 = vld [vmem:[%s5 + $0x678] sm:$0xff]
        %v810 = vld [vmem:[%s5 + $0x680] sm:$0xff]
        %v811 = vld [vmem:[%s5 + $0x688] sm:$0xff]
        %v812 = vld [vmem:[%s5 + $0x690] sm:$0xff]
        %v813 = vld [vmem:[%s5 + $0x698] sm:$0xff]
        %v814 = vld [vmem:[%s5 + $0x6a0] sm:$0xff]
        %v815 = vld [vmem:[%s5 + $0x6a8] sm:$0xff]
        %v816 = vld [vmem:[%s5 + $0x6b0] sm:$0xff]
        %v817 = vld [vmem:[%s5 + $0x6b8] sm:$0xff]
        %v818 = vld [vmem:[%s5 + $0x6c0] sm:$0xff]
        %v819 = vld [vmem:[%s5 + $0x6c8] sm:$0xff]
        %v820 = vld [vmem:[%s5 + $0x6d0] sm:$0xff]
        %v821 = vld [vmem:[%s5 + $0x6d8] sm:$0xff]
        %v822 = vld [vmem:[%s5 + $0x6e0] sm:$0xff]
        %v823 = vld [vmem:[%s5 + $0x6e8] sm:$0xff]
        %v824 = vld [vmem:[%s5 + $0x6f0] sm:$0xff]
        %v825 = vld [vmem:[%s5 + $0x6f8] sm:$0xff]
        %v826 = vld [vmem:[%s5 + $0x700] sm:$0xff]
        %v827 = vld [vmem:[%s5 + $0x708] sm:$0xff]
        %v828 = vld [vmem:[%s5 + $0x710] sm:$0xff]
        %v829 = vld [vmem:[%s5 + $0x718] sm:$0xff]
        %v830 = vld [vmem:[%s5 + $0x720] sm:$0xff]
        %v831 = vld [vmem:[%s5 + $0x728] sm:$0xff]
        %v832 = vld [vmem:[%s5 + $0x730] sm:$0xff]
        %v833 = vld [vmem:[%s5 + $0x738] sm:$0xff]
        %v834 = vld [vmem:[%s5 + $0x740] sm:$0xff]
        %v835 = vld [vmem:[%s5 + $0x748] sm:$0xff]
        %v836 = vld [vmem:[%s5 + $0x750] sm:$0xff]
        %v837 = vld [vmem:[%s5 + $0x758] sm:$0xff]
        %v838 = vld [vmem:[%s5 + $0x760] sm:$0xff]
        %v839 = vld [vmem:[%s5 + $0x768] sm:$0xff]
        %v840 = vld [vmem:[%s5 + $0x770] sm:$0xff]
        %v841 = vld [vmem:[%s5 + $0x778] sm:$0xff]
        %v842 = vld [vmem:[%s5 + $0x780] sm:$0xff]
        %v843 = vld [vmem:[%s5 + $0x788] sm:$0xff]
        %v844 = vld [vmem:[%s5 + $0x790] sm:$0xff]
        %v845 = vld [vmem:[%s5 + $0x798] sm:$0xff]
        %v846 = vld [vmem:[%s5 + $0x7a0] sm:$0xff]
        %v847 = vld [vmem:[%s5 + $0x7a8] sm:$0xff]
        %v848 = vld [vmem:[%s5 + $0x7b0] sm:$0xff]
        %v849 = vld [vmem:[%s5 + $0x7b8] sm:$0xff]
        %v850 = vld [vmem:[%s5 + $0x7c0] sm:$0xff]
        %v851 = vld [vmem:[%s5 + $0x7c8] sm:$0xff]
        %v852 = vld [vmem:[%s5 + $0x7d0] sm:$0xff]
        %v853 = vld [vmem:[%s5 + $0x7d8] sm:$0xff]
        %v854 = vld [vmem:[%s5 + $0x7e0] sm:$0xff]
        %v855 = vld [vmem:[%s5 + $0x7e8] sm:$0xff]
        %v856 = vld [vmem:[%s5 + $0x7f0] sm:$0xff]
        %v857 = vld [vmem:[%s5 + $0x7f8] sm:$0xff]
        %858 = vmatprep.subr.mxu0 %v843
        %859 = vmatpush1.msra.mxu0 %v842
        %860 = vmatprep.subr.mxu0 %v827
        %861 = vmatpush1.msra.mxu0 %v826
        %862 = vmatprep.subr.mxu0 %v811
        %863 = vmatpush1.msra.mxu0 %v810
        %864 = vmatprep.subr.mxu0 %v795
        %865 = vmatpush1.msra.mxu0 %v794
        %866 = vmatprep.subr.mxu0 %v779
        %867 = vmatpush1.msra.mxu0 %v778
        %868 = vmatprep.subr.mxu0 %v763
        %869 = vmatpush1.msra.mxu0 %v762
        %870 = vmatprep.subr.mxu0 %v747
        %871 = vmatpush1.msra.mxu0 %v746
        %872 = vmatprep.subr.mxu0 %v731
        %873 = vmatpush1.msra.mxu0 %v730
        %874 = vmatprep.subr.mxu0 %v715
        %875 = vmatpush1.msra.mxu0 %v714
        %876 = vmatprep.subr.mxu0 %v699
        %877 = vmatpush1.msra.mxu0 %v698
        %878 = vmatprep.subr.mxu0 %v683
        %879 = vmatpush1.msra.mxu0 %v682
        %880 = vmatprep.subr.mxu0 %v667
        %881 = vmatpush1.msra.mxu0 %v666
        %882 = vmatprep.subr.mxu0 %v651
        %883 = vmatpush1.msra.mxu0 %v650
        %884 = vmatprep.subr.mxu0 %v635
        %885 = vmatpush1.msra.mxu0 %v634
        %886 = vmatprep.subr.mxu0 %v619
        %887 = vmatpush1.msra.mxu0 %v618
        %888 = vmatprep.subr.mxu0 %v603
        %889 = vmatpush1.msra.mxu0 %v602
        %890 = vmatprep.subr.mxu0 0.0
        %891 = vmatpush2.msra.mxu0 0.0
        %892 = vmatprep.subr.mxu0 0.0
        %893 = vmatpush2.msra.mxu0 0.0
        %894 = vmatprep.subr.mxu0 0.0
        %895 = vmatpush2.msra.mxu0 0.0
        %896 = vmatprep.subr.mxu0 0.0
        %897 = vmatpush2.msra.mxu0 0.0
        %898 = vmatprep.subr.mxu0 0.0
        %899 = vmatpush2.msra.mxu0 0.0
        %900 = vmatprep.subr.mxu0 0.0
        %901 = vmatpush2.msra.mxu0 0.0
        %902 = vmatprep.subr.mxu0 0.0
        %903 = vmatpush2.msra.mxu0 0.0
        %904 = vmatprep.subr.mxu0 0.0
        %905 = vmatpush2.msra.mxu0 0.0
        %906 = vmatprep.subr.mxu0 0.0
        %907 = vmatpush2.msra.mxu0 0.0
        %908 = vmatprep.subr.mxu0 0.0
        %909 = vmatpush2.msra.mxu0 0.0
        %910 = vmatprep.subr.mxu0 0.0
        %911 = vmatpush2.msra.mxu0 0.0
        %912 = vmatprep.subr.mxu0 0.0
        %913 = vmatpush2.msra.mxu0 0.0
        %914 = vmatprep.subr.mxu0 0.0
        %915 = vmatpush2.msra.mxu0 0.0
        %916 = vmatprep.subr.mxu0 0.0
        %917 = vmatpush2.msra.mxu0 0.0
        %918 = vmatprep.subr.mxu0 0.0
        %919 = vmatpush2.msra.mxu0 0.0
        %920 = vmatprep.subr.mxu0 0.0
        %921 = vmatpush2.msra.mxu0 0.0
        %922 = vmatprep.mubr.f32.mxu0 0.0
        %923 = vmatmul.mubr.f32.gmra.mxu0 %v599
        %v924 = vpop.f32.mrf.mxu0
        %v925 = vadd.f32 0.0, %v924
        %v926 = vpop.f32.mrf.mxu0
        %v927 = vadd.f32 0.0, %v926
        %928 = vdwg.mxu0
        %929 = vmatprep.subr.mxu0 %v845
        %930 = vmatpush1.msra.mxu0 %v844
        %931 = vmatprep.subr.mxu0 %v829
        %932 = vmatpush1.msra.mxu0 %v828
        %933 = vmatprep.subr.mxu0 %v813
        %934 = vmatpush1.msra.mxu0 %v812
        %935 = vmatprep.subr.mxu0 %v797
        %936 = vmatpush1.msra.mxu0 %v796
        %937 = vmatprep.subr.mxu0 %v781
        %938 = vmatpush1.msra.mxu0 %v780
        %939 = vmatprep.subr.mxu0 %v765
        %940 = vmatpush1.msra.mxu0 %v764
        %941 = vmatprep.subr.mxu0 %v749
        %942 = vmatpush1.msra.mxu0 %v748
        %943 = vmatprep.subr.mxu0 %v733
        %944 = vmatpush1.msra.mxu0 %v732
        %945 = vmatprep.subr.mxu0 %v717
        %946 = vmatpush1.msra.mxu0 %v716
        %947 = vmatprep.subr.mxu0 %v701
        %948 = vmatpush1.msra.mxu0 %v700
        %949 = vmatprep.subr.mxu0 %v685
        %950 = vmatpush1.msra.mxu0 %v684
        %951 = vmatprep.subr.mxu0 %v669
        %952 = vmatpush1.msra.mxu0 %v668
        %953 = vmatprep.subr.mxu0 %v653
        %954 = vmatpush1.msra.mxu0 %v652
        %955 = vmatprep.subr.mxu0 %v637
        %956 = vmatpush1.msra.mxu0 %v636
        %957 = vmatprep.subr.mxu0 %v621
        %958 = vmatpush1.msra.mxu0 %v620
        %959 = vmatprep.subr.mxu0 %v605
        %960 = vmatpush1.msra.mxu0 %v604
        %961 = vmatprep.subr.mxu0 0.0
        %962 = vmatpush2.msra.mxu0 0.0
        %963 = vmatprep.subr.mxu0 0.0
        %964 = vmatpush2.msra.mxu0 0.0
        %965 = vmatprep.subr.mxu0 0.0
        %966 = vmatpush2.msra.mxu0 0.0
        %967 = vmatprep.subr.mxu0 0.0
        %968 = vmatpush2.msra.mxu0 0.0
        %969 = vmatprep.subr.mxu0 0.0
        %970 = vmatpush2.msra.mxu0 0.0
        %971 = vmatprep.subr.mxu0 0.0
        %972 = vmatpush2.msra.mxu0 0.0
        %973 = vmatprep.subr.mxu0 0.0
        %974 = vmatpush2.msra.mxu0 0.0
        %975 = vmatprep.subr.mxu0 0.0
        %976 = vmatpush2.msra.mxu0 0.0
        %977 = vmatprep.subr.mxu0 0.0
        %978 = vmatpush2.msra.mxu0 0.0
        %979 = vmatprep.subr.mxu0 0.0
        %980 = vmatpush2.msra.mxu0 0.0
        %981 = vmatprep.subr.mxu0 0.0
        %982 = vmatpush2.msra.mxu0 0.0
        %983 = vmatprep.subr.mxu0 0.0
        %984 = vmatpush2.msra.mxu0 0.0
        %985 = vmatprep.subr.mxu0 0.0
        %986 = vmatpush2.msra.mxu0 0.0
        %987 = vmatprep.subr.mxu0 0.0
        %988 = vmatpush2.msra.mxu0 0.0
        %989 = vmatprep.subr.mxu0 0.0
        %990 = vmatpush2.msra.mxu0 0.0
        %991 = vmatprep.subr.mxu0 0.0
        %992 = vmatpush2.msra.mxu0 0.0
        %993 = vmatprep.mubr.f32.mxu0 0.0
        %994 = vmatmul.mubr.f32.gmra.mxu0 %v599
        %v995 = vpop.f32.mrf.mxu0
        %v996 = vadd.f32 0.0, %v995
        %v997 = vpop.f32.mrf.mxu0
        %v998 = vadd.f32 0.0, %v997
        %999 = vdwg.mxu0
        %1000 = vmatprep.subr.mxu0 %v847
        %1001 = vmatpush1.msra.mxu0 %v846
        %1002 = vmatprep.subr.mxu0 %v831
        %1003 = vmatpush1.msra.mxu0 %v830
        %1004 = vmatprep.subr.mxu0 %v815
        %1005 = vmatpush1.msra.mxu0 %v814
        %1006 = vmatprep.subr.mxu0 %v799
        %1007 = vmatpush1.msra.mxu0 %v798
        %1008 = vmatprep.subr.mxu0 %v783
        %1009 = vmatpush1.msra.mxu0 %v782
        %1010 = vmatprep.subr.mxu0 %v767
        %1011 = vmatpush1.msra.mxu0 %v766
        %1012 = vmatprep.subr.mxu0 %v751
        %1013 = vmatpush1.msra.mxu0 %v750
        %1014 = vmatprep.subr.mxu0 %v735
        %1015 = vmatpush1.msra.mxu0 %v734
        %1016 = vmatprep.subr.mxu0 %v719
        %1017 = vmatpush1.msra.mxu0 %v718
        %1018 = vmatprep.subr.mxu0 %v703
        %1019 = vmatpush1.msra.mxu0 %v702
        %1020 = vmatprep.subr.mxu0 %v687
        %1021 = vmatpush1.msra.mxu0 %v686
        %1022 = vmatprep.subr.mxu0 %v671
        %1023 = vmatpush1.msra.mxu0 %v670
        %1024 = vmatprep.subr.mxu0 %v655
        %1025 = vmatpush1.msra.mxu0 %v654
        %1026 = vmatprep.subr.mxu0 %v639
        %1027 = vmatpush1.msra.mxu0 %v638
        %1028 = vmatprep.subr.mxu0 %v623
        %1029 = vmatpush1.msra.mxu0 %v622
        %1030 = vmatprep.subr.mxu0 %v607
        %1031 = vmatpush1.msra.mxu0 %v606
        %1032 = vmatprep.subr.mxu0 0.0
        %1033 = vmatpush2.msra.mxu0 0.0
        %1034 = vmatprep.subr.mxu0 0.0
        %1035 = vmatpush2.msra.mxu0 0.0
        %1036 = vmatprep.subr.mxu0 0.0
        %1037 = vmatpush2.msra.mxu0 0.0
        %1038 = vmatprep.subr.mxu0 0.0
        %1039 = vmatpush2.msra.mxu0 0.0
        %1040 = vmatprep.subr.mxu0 0.0
        %1041 = vmatpush2.msra.mxu0 0.0
        %1042 = vmatprep.subr.mxu0 0.0
        %1043 = vmatpush2.msra.mxu0 0.0
        %1044 = vmatprep.subr.mxu0 0.0
        %1045 = vmatpush2.msra.mxu0 0.0
        %1046 = vmatprep.subr.mxu0 0.0
        %1047 = vmatpush2.msra.mxu0 0.0
        %1048 = vmatprep.subr.mxu0 0.0
        %1049 = vmatpush2.msra.mxu0 0.0
        %1050 = vmatprep.subr.mxu0 0.0
        %1051 = vmatpush2.msra.mxu0 0.0
        %1052 = vmatprep.subr.mxu0 0.0
        %1053 = vmatpush2.msra.mxu0 0.0
        %1054 = vmatprep.subr.mxu0 0.0
        %1055 = vmatpush2.msra.mxu0 0.0
        %1056 = vmatprep.subr.mxu0 0.0
        %1057 = vmatpush2.msra.mxu0 0.0
        %1058 = vmatprep.subr.mxu0 0.0
        %1059 = vmatpush2.msra.mxu0 0.0
        %1060 = vmatprep.subr.mxu0 0.0
        %1061 = vmatpush2.msra.mxu0 0.0
        %1062 = vmatprep.subr.mxu0 0.0
        %1063 = vmatpush2.msra.mxu0 0.0
        %1064 = vmatprep.mubr.f32.mxu0 0.0
        %1065 = vmatmul.mubr.f32.gmra.mxu0 %v599
        %v1066 = vpop.f32.mrf.mxu0
        %v1067 = vadd.f32 0.0, %v1066
        %v1068 = vpop.f32.mrf.mxu0
        %v1069 = vadd.f32 0.0, %v1068
        %1070 = vdwg.mxu0
        %1071 = vmatprep.subr.mxu0 %v849
        %1072 = vmatpush1.msra.mxu0 %v848
        %1073 = vmatprep.subr.mxu0 %v833
        %1074 = vmatpush1.msra.mxu0 %v832
        %1075 = vmatprep.subr.mxu0 %v817
        %1076 = vmatpush1.msra.mxu0 %v816
        %1077 = vmatprep.subr.mxu0 %v801
        %1078 = vmatpush1.msra.mxu0 %v800
        %1079 = vmatprep.subr.mxu0 %v785
        %1080 = vmatpush1.msra.mxu0 %v784
        %1081 = vmatprep.subr.mxu0 %v769
        %1082 = vmatpush1.msra.mxu0 %v768
        %1083 = vmatprep.subr.mxu0 %v753
        %1084 = vmatpush1.msra.mxu0 %v752
        %1085 = vmatprep.subr.mxu0 %v737
        %1086 = vmatpush1.msra.mxu0 %v736
        %1087 = vmatprep.subr.mxu0 %v721
        %1088 = vmatpush1.msra.mxu0 %v720
        %1089 = vmatprep.subr.mxu0 %v705
        %1090 = vmatpush1.msra.mxu0 %v704
        %1091 = vmatprep.subr.mxu0 %v689
        %1092 = vmatpush1.msra.mxu0 %v688
        %1093 = vmatprep.subr.mxu0 %v673
        %1094 = vmatpush1.msra.mxu0 %v672
        %1095 = vmatprep.subr.mxu0 %v657
        %1096 = vmatpush1.msra.mxu0 %v656
        %1097 = vmatprep.subr.mxu0 %v641
        %1098 = vmatpush1.msra.mxu0 %v640
        %1099 = vmatprep.subr.mxu0 %v625
        %1100 = vmatpush1.msra.mxu0 %v624
        %1101 = vmatprep.subr.mxu0 %v609
        %1102 = vmatpush1.msra.mxu0 %v608
        %1103 = vmatprep.subr.mxu0 0.0
        %1104 = vmatpush2.msra.mxu0 0.0
        %1105 = vmatprep.subr.mxu0 0.0
        %1106 = vmatpush2.msra.mxu0 0.0
        %1107 = vmatprep.subr.mxu0 0.0
        %1108 = vmatpush2.msra.mxu0 0.0
        %1109 = vmatprep.subr.mxu0 0.0
        %1110 = vmatpush2.msra.mxu0 0.0
        %1111 = vmatprep.subr.mxu0 0.0
        %1112 = vmatpush2.msra.mxu0 0.0
        %1113 = vmatprep.subr.mxu0 0.0
        %1114 = vmatpush2.msra.mxu0 0.0
        %1115 = vmatprep.subr.mxu0 0.0
        %1116 = vmatpush2.msra.mxu0 0.0
        %1117 = vmatprep.subr.mxu0 0.0
        %1118 = vmatpush2.msra.mxu0 0.0
        %1119 = vmatprep.subr.mxu0 0.0
        %1120 = vmatpush2.msra.mxu0 0.0
        %1121 = vmatprep.subr.mxu0 0.0
        %1122 = vmatpush2.msra.mxu0 0.0
        %1123 = vmatprep.subr.mxu0 0.0
        %1124 = vmatpush2.msra.mxu0 0.0
        %1125 = vmatprep.subr.mxu0 0.0
        %1126 = vmatpush2.msra.mxu0 0.0
        %1127 = vmatprep.subr.mxu0 0.0
        %1128 = vmatpush2.msra.mxu0 0.0
        %1129 = vmatprep.subr.mxu0 0.0
        %1130 = vmatpush2.msra.mxu0 0.0
        %1131 = vmatprep.subr.mxu0 0.0
        %1132 = vmatpush2.msra.mxu0 0.0
        %1133 = vmatprep.subr.mxu0 0.0
        %1134 = vmatpush2.msra.mxu0 0.0
        %1135 = vmatprep.mubr.f32.mxu0 0.0
        %1136 = vmatmul.mubr.f32.gmra.mxu0 %v599
        %v1137 = vpop.f32.mrf.mxu0
        %v1138 = vadd.f32 0.0, %v1137
        %v1139 = vpop.f32.mrf.mxu0
        %v1140 = vadd.f32 0.0, %v1139
        %1141 = vdwg.mxu0
        %1142 = vmatprep.subr.mxu0 %v851
        %1143 = vmatpush1.msra.mxu0 %v850
        %1144 = vmatprep.subr.mxu0 %v835
        %1145 = vmatpush1.msra.mxu0 %v834
        %1146 = vmatprep.subr.mxu0 %v819
        %1147 = vmatpush1.msra.mxu0 %v818
        %1148 = vmatprep.subr.mxu0 %v803
        %1149 = vmatpush1.msra.mxu0 %v802
        %1150 = vmatprep.subr.mxu0 %v787
        %1151 = vmatpush1.msra.mxu0 %v786
        %1152 = vmatprep.subr.mxu0 %v771
        %1153 = vmatpush1.msra.mxu0 %v770
        %1154 = vmatprep.subr.mxu0 %v755
        %1155 = vmatpush1.msra.mxu0 %v754
        %1156 = vmatprep.subr.mxu0 %v739
        %1157 = vmatpush1.msra.mxu0 %v738
        %1158 = vmatprep.subr.mxu0 %v723
        %1159 = vmatpush1.msra.mxu0 %v722
        %1160 = vmatprep.subr.mxu0 %v707
        %1161 = vmatpush1.msra.mxu0 %v706
        %1162 = vmatprep.subr.mxu0 %v691
        %1163 = vmatpush1.msra.mxu0 %v690
        %1164 = vmatprep.subr.mxu0 %v675
        %1165 = vmatpush1.msra.mxu0 %v674
        %1166 = vmatprep.subr.mxu0 %v659
        %1167 = vmatpush1.msra.mxu0 %v658
        %1168 = vmatprep.subr.mxu0 %v643
        %1169 = vmatpush1.msra.mxu0 %v642
        %1170 = vmatprep.subr.mxu0 %v627
        %1171 = vmatpush1.msra.mxu0 %v626
        %1172 = vmatprep.subr.mxu0 %v611
        %1173 = vmatpush1.msra.mxu0 %v610
        %1174 = vmatprep.subr.mxu0 0.0
        %1175 = vmatpush2.msra.mxu0 0.0
        %1176 = vmatprep.subr.mxu0 0.0
        %1177 = vmatpush2.msra.mxu0 0.0
        %1178 = vmatprep.subr.mxu0 0.0
        %1179 = vmatpush2.msra.mxu0 0.0
        %1180 = vmatprep.subr.mxu0 0.0
        %1181 = vmatpush2.msra.mxu0 0.0
        %1182 = vmatprep.subr.mxu0 0.0
        %1183 = vmatpush2.msra.mxu0 0.0
        %1184 = vmatprep.subr.mxu0 0.0
        %1185 = vmatpush2.msra.mxu0 0.0
        %1186 = vmatprep.subr.mxu0 0.0
        %1187 = vmatpush2.msra.mxu0 0.0
        %1188 = vmatprep.subr.mxu0 0.0
        %1189 = vmatpush2.msra.mxu0 0.0
        %1190 = vmatprep.subr.mxu0 0.0
        %1191 = vmatpush2.msra.mxu0 0.0
        %1192 = vmatprep.subr.mxu0 0.0
        %1193 = vmatpush2.msra.mxu0 0.0
        %1194 = vmatprep.subr.mxu0 0.0
        %1195 = vmatpush2.msra.mxu0 0.0
        %1196 = vmatprep.subr.mxu0 0.0
        %1197 = vmatpush2.msra.mxu0 0.0
        %1198 = vmatprep.subr.mxu0 0.0
        %1199 = vmatpush2.msra.mxu0 0.0
        %1200 = vmatprep.subr.mxu0 0.0
        %1201 = vmatpush2.msra.mxu0 0.0
        %1202 = vmatprep.subr.mxu0 0.0
        %1203 = vmatpush2.msra.mxu0 0.0
        %1204 = vmatprep.subr.mxu0 0.0
        %1205 = vmatpush2.msra.mxu0 0.0
        %1206 = vmatprep.mubr.f32.mxu0 0.0
        %1207 = vmatmul.mubr.f32.gmra.mxu0 %v599
        %v1208 = vpop.f32.mrf.mxu0
        %v1209 = vadd.f32 0.0, %v1208
        %v1210 = vpop.f32.mrf.mxu0
        %v1211 = vadd.f32 0.0, %v1210
        %1212 = vdwg.mxu0
        %1213 = vmatprep.subr.mxu0 %v853
        %1214 = vmatpush1.msra.mxu0 %v852
        %1215 = vmatprep.subr.mxu0 %v837
        %1216 = vmatpush1.msra.mxu0 %v836
        %1217 = vmatprep.subr.mxu0 %v821
        %1218 = vmatpush1.msra.mxu0 %v820
        %1219 = vmatprep.subr.mxu0 %v805
        %1220 = vmatpush1.msra.mxu0 %v804
        %1221 = vmatprep.subr.mxu0 %v789
        %1222 = vmatpush1.msra.mxu0 %v788
        %1223 = vmatprep.subr.mxu0 %v773
        %1224 = vmatpush1.msra.mxu0 %v772
        %1225 = vmatprep.subr.mxu0 %v757
        %1226 = vmatpush1.msra.mxu0 %v756
        %1227 = vmatprep.subr.mxu0 %v741
        %1228 = vmatpush1.msra.mxu0 %v740
        %1229 = vmatprep.subr.mxu0 %v725
        %1230 = vmatpush1.msra.mxu0 %v724
        %1231 = vmatprep.subr.mxu0 %v709
        %1232 = vmatpush1.msra.mxu0 %v708
        %1233 = vmatprep.subr.mxu0 %v693
        %1234 = vmatpush1.msra.mxu0 %v692
        %1235 = vmatprep.subr.mxu0 %v677
        %1236 = vmatpush1.msra.mxu0 %v676
        %1237 = vmatprep.subr.mxu0 %v661
        %1238 = vmatpush1.msra.mxu0 %v660
        %1239 = vmatprep.subr.mxu0 %v645
        %1240 = vmatpush1.msra.mxu0 %v644
        %1241 = vmatprep.subr.mxu0 %v629
        %1242 = vmatpush1.msra.mxu0 %v628
        %1243 = vmatprep.subr.mxu0 %v613
        %1244 = vmatpush1.msra.mxu0 %v612
        %1245 = vmatprep.subr.mxu0 0.0
        %1246 = vmatpush2.msra.mxu0 0.0
        %1247 = vmatprep.subr.mxu0 0.0
        %1248 = vmatpush2.msra.mxu0 0.0
        %1249 = vmatprep.subr.mxu0 0.0
        %1250 = vmatpush2.msra.mxu0 0.0
        %1251 = vmatprep.subr.mxu0 0.0
        %1252 = vmatpush2.msra.mxu0 0.0
        %1253 = vmatprep.subr.mxu0 0.0
        %1254 = vmatpush2.msra.mxu0 0.0
        %1255 = vmatprep.subr.mxu0 0.0
        %1256 = vmatpush2.msra.mxu0 0.0
        %1257 = vmatprep.subr.mxu0 0.0
        %1258 = vmatpush2.msra.mxu0 0.0
        %1259 = vmatprep.subr.mxu0 0.0
        %1260 = vmatpush2.msra.mxu0 0.0
        %1261 = vmatprep.subr.mxu0 0.0
        %1262 = vmatpush2.msra.mxu0 0.0
        %1263 = vmatprep.subr.mxu0 0.0
        %1264 = vmatpush2.msra.mxu0 0.0
        %1265 = vmatprep.subr.mxu0 0.0
        %1266 = vmatpush2.msra.mxu0 0.0
        %1267 = vmatprep.subr.mxu0 0.0
        %1268 = vmatpush2.msra.mxu0 0.0
        %1269 = vmatprep.subr.mxu0 0.0
        %1270 = vmatpush2.msra.mxu0 0.0
        %1271 = vmatprep.subr.mxu0 0.0
        %1272 = vmatpush2.msra.mxu0 0.0
        %1273 = vmatprep.subr.mxu0 0.0
        %1274 = vmatpush2.msra.mxu0 0.0
        %1275 = vmatprep.subr.mxu0 0.0
        %1276 = vmatpush2.msra.mxu0 0.0
        %1277 = vmatprep.mubr.f32.mxu0 0.0
        %1278 = vmatmul.mubr.f32.gmra.mxu0 %v599
        %v1279 = vpop.f32.mrf.mxu0
        %v1280 = vadd.f32 0.0, %v1279
        %v1281 = vpop.f32.mrf.mxu0
        %v1282 = vadd.f32 0.0, %v1281
        %1283 = vdwg.mxu0
        %1284 = vmatprep.subr.mxu0 %v855
        %1285 = vmatpush1.msra.mxu0 %v854
        %1286 = vmatprep.subr.mxu0 %v839
        %1287 = vmatpush1.msra.mxu0 %v838
        %1288 = vmatprep.subr.mxu0 %v823
        %1289 = vmatpush1.msra.mxu0 %v822
        %1290 = vmatprep.subr.mxu0 %v807
        %1291 = vmatpush1.msra.mxu0 %v806
        %1292 = vmatprep.subr.mxu0 %v791
        %1293 = vmatpush1.msra.mxu0 %v790
        %1294 = vmatprep.subr.mxu0 %v775
        %1295 = vmatpush1.msra.mxu0 %v774
        %1296 = vmatprep.subr.mxu0 %v759
        %1297 = vmatpush1.msra.mxu0 %v758
        %1298 = vmatprep.subr.mxu0 %v743
        %1299 = vmatpush1.msra.mxu0 %v742
        %1300 = vmatprep.subr.mxu0 %v727
        %1301 = vmatpush1.msra.mxu0 %v726
        %1302 = vmatprep.subr.mxu0 %v711
        %1303 = vmatpush1.msra.mxu0 %v710
        %1304 = vmatprep.subr.mxu0 %v695
        %1305 = vmatpush1.msra.mxu0 %v694
        %1306 = vmatprep.subr.mxu0 %v679
        %1307 = vmatpush1.msra.mxu0 %v678
        %1308 = vmatprep.subr.mxu0 %v663
        %1309 = vmatpush1.msra.mxu0 %v662
        %1310 = vmatprep.subr.mxu0 %v647
        %1311 = vmatpush1.msra.mxu0 %v646
        %1312 = vmatprep.subr.mxu0 %v631
        %1313 = vmatpush1.msra.mxu0 %v630
        %1314 = vmatprep.subr.mxu0 %v615
        %1315 = vmatpush1.msra.mxu0 %v614
        %1316 = vmatprep.subr.mxu0 0.0
        %1317 = vmatpush2.msra.mxu0 0.0
        %1318 = vmatprep.subr.mxu0 0.0
        %1319 = vmatpush2.msra.mxu0 0.0
        %1320 = vmatprep.subr.mxu0 0.0
        %1321 = vmatpush2.msra.mxu0 0.0
        %1322 = vmatprep.subr.mxu0 0.0
        %1323 = vmatpush2.msra.mxu0 0.0
        %1324 = vmatprep.subr.mxu0 0.0
        %1325 = vmatpush2.msra.mxu0 0.0
        %1326 = vmatprep.subr.mxu0 0.0
        %1327 = vmatpush2.msra.mxu0 0.0
        %1328 = vmatprep.subr.mxu0 0.0
        %1329 = vmatpush2.msra.mxu0 0.0
        %1330 = vmatprep.subr.mxu0 0.0
        %1331 = vmatpush2.msra.mxu0 0.0
        %1332 = vmatprep.subr.mxu0 0.0
        %1333 = vmatpush2.msra.mxu0 0.0
        %1334 = vmatprep.subr.mxu0 0.0
        %1335 = vmatpush2.msra.mxu0 0.0
        %1336 = vmatprep.subr.mxu0 0.0
        %1337 = vmatpush2.msra.mxu0 0.0
        %1338 = vmatprep.subr.mxu0 0.0
        %1339 = vmatpush2.msra.mxu0 0.0
        %1340 = vmatprep.subr.mxu0 0.0
        %1341 = vmatpush2.msra.mxu0 0.0
        %1342 = vmatprep.subr.mxu0 0.0
        %1343 = vmatpush2.msra.mxu0 0.0
        %1344 = vmatprep.subr.mxu0 0.0
        %1345 = vmatpush2.msra.mxu0 0.0
        %1346 = vmatprep.subr.mxu0 0.0
        %1347 = vmatpush2.msra.mxu0 0.0
        %1348 = vmatprep.mubr.f32.mxu0 0.0
        %1349 = vmatmul.mubr.f32.gmra.mxu0 %v599
        %v1350 = vpop.f32.mrf.mxu0
        %v1351 = vadd.f32 0.0, %v1350
        %v1352 = vpop.f32.mrf.mxu0
        %v1353 = vadd.f32 0.0, %v1352
        %1354 = vdwg.mxu0
        %1355 = vmatprep.subr.mxu0 %v857
        %1356 = vmatpush1.msra.mxu0 %v856
        %1357 = vmatprep.subr.mxu0 %v841
        %1358 = vmatpush1.msra.mxu0 %v840
        %1359 = vmatprep.subr.mxu0 %v825
        %1360 = vmatpush1.msra.mxu0 %v824
        %1361 = vmatprep.subr.mxu0 %v809
        %1362 = vmatpush1.msra.mxu0 %v808
        %1363 = vmatprep.subr.mxu0 %v793
        %1364 = vmatpush1.msra.mxu0 %v792
        %1365 = vmatprep.subr.mxu0 %v777
        %1366 = vmatpush1.msra.mxu0 %v776
        %1367 = vmatprep.subr.mxu0 %v761
        %1368 = vmatpush1.msra.mxu0 %v760
        %1369 = vmatprep.subr.mxu0 %v745
        %1370 = vmatpush1.msra.mxu0 %v744
        %1371 = vmatprep.subr.mxu0 %v729
        %1372 = vmatpush1.msra.mxu0 %v728
        %1373 = vmatprep.subr.mxu0 %v713
        %1374 = vmatpush1.msra.mxu0 %v712
        %1375 = vmatprep.subr.mxu0 %v697
        %1376 = vmatpush1.msra.mxu0 %v696
        %1377 = vmatprep.subr.mxu0 %v681
        %1378 = vmatpush1.msra.mxu0 %v680
        %1379 = vmatprep.subr.mxu0 %v665
        %1380 = vmatpush1.msra.mxu0 %v664
        %1381 = vmatprep.subr.mxu0 %v649
        %1382 = vmatpush1.msra.mxu0 %v648
        %1383 = vmatprep.subr.mxu0 %v633
        %1384 = vmatpush1.msra.mxu0 %v632
        %1385 = vmatprep.subr.mxu0 %v617
        %1386 = vmatpush1.msra.mxu0 %v616
        %1387 = vmatprep.subr.mxu0 0.0
        %1388 = vmatpush2.msra.mxu0 0.0
        %1389 = vmatprep.subr.mxu0 0.0
        %1390 = vmatpush2.msra.mxu0 0.0
        %1391 = vmatprep.subr.mxu0 0.0
        %1392 = vmatpush2.msra.mxu0 0.0
        %1393 = vmatprep.subr.mxu0 0.0
        %1394 = vmatpush2.msra.mxu0 0.0
        %1395 = vmatprep.subr.mxu0 0.0
        %1396 = vmatpush2.msra.mxu0 0.0
        %1397 = vmatprep.subr.mxu0 0.0
        %1398 = vmatpush2.msra.mxu0 0.0
        %1399 = vmatprep.subr.mxu0 0.0
        %1400 = vmatpush2.msra.mxu0 0.0
        %1401 = vmatprep.subr.mxu0 0.0
        %1402 = vmatpush2.msra.mxu0 0.0
        %1403 = vmatprep.subr.mxu0 0.0
        %1404 = vmatpush2.msra.mxu0 0.0
        %1405 = vmatprep.subr.mxu0 0.0
        %1406 = vmatpush2.msra.mxu0 0.0
        %1407 = vmatprep.subr.mxu0 0.0
        %1408 = vmatpush2.msra.mxu0 0.0
        %1409 = vmatprep.subr.mxu0 0.0
        %1410 = vmatpush2.msra.mxu0 0.0
        %1411 = vmatprep.subr.mxu0 0.0
        %1412 = vmatpush2.msra.mxu0 0.0
        %1413 = vmatprep.subr.mxu0 0.0
        %1414 = vmatpush2.msra.mxu0 0.0
        %1415 = vmatprep.subr.mxu0 0.0
        %1416 = vmatpush2.msra.mxu0 0.0
        %1417 = vmatprep.subr.mxu0 0.0
        %1418 = vmatpush2.msra.mxu0 0.0
        %1419 = vmatprep.mubr.f32.mxu0 0.0
        %1420 = vmatmul.mubr.f32.gmra.mxu0 %v599
        %v1421 = vpop.f32.mrf.mxu0
        %v1422 = vadd.f32 0.0, %v1421
        %v1423 = vpop.f32.mrf.mxu0
        %v1424 = vadd.f32 0.0, %v1423
        %1425 = vdwg.mxu0
        %v1426 = vmul.f32 %v925, %v477
        %v1427 = vmul.f32 %v927, %v478
        %v1428 = vmul.f32 %v996, %v479
        %v1429 = vmul.f32 %v998, %v480
        %v1430 = vmul.f32 %v1067, %v481
        %v1431 = vmul.f32 %v1069, %v482
        %v1432 = vmul.f32 %v1138, %v483
        %v1433 = vmul.f32 %v1140, %v484
        %v1434 = vmul.f32 %v1209, %v485
        %v1435 = vmul.f32 %v1211, %v486
        %v1436 = vmul.f32 %v1280, %v487
        %v1437 = vmul.f32 %v1282, %v488
        %v1438 = vmul.f32 %v1351, %v489
        %v1439 = vmul.f32 %v1353, %v490
        %v1440 = vmul.f32 %v1422, %v491
        %v1441 = vmul.f32 %v1424, %v492
        %v1442 = vld [vmem:[%s6] sm:$0xff]
        %v1443 = vld [vmem:[%s6 + $0x8] sm:$0xff]
        %v1444 = vld [vmem:[%s6 + $0x10] sm:$0xff]
        %v1445 = vld [vmem:[%s6 + $0x18] sm:$0xff]
        %v1446 = vld [vmem:[%s6 + $0x20] sm:$0xff]
        %v1447 = vld [vmem:[%s6 + $0x28] sm:$0xff]
        %v1448 = vld [vmem:[%s6 + $0x30] sm:$0xff]
        %v1449 = vld [vmem:[%s6 + $0x38] sm:$0xff]
        %v1450 = vld [vmem:[%s6 + $0x40] sm:$0xff]
        %v1451 = vld [vmem:[%s6 + $0x48] sm:$0xff]
        %v1452 = vld [vmem:[%s6 + $0x50] sm:$0xff]
        %v1453 = vld [vmem:[%s6 + $0x58] sm:$0xff]
        %v1454 = vld [vmem:[%s6 + $0x60] sm:$0xff]
        %v1455 = vld [vmem:[%s6 + $0x68] sm:$0xff]
        %v1456 = vld [vmem:[%s6 + $0x70] sm:$0xff]
        %v1457 = vld [vmem:[%s6 + $0x78] sm:$0xff]
        %v1458 = vld [vmem:[%s6 + $0x80] sm:$0xff]
        %v1459 = vld [vmem:[%s6 + $0x88] sm:$0xff]
        %v1460 = vld [vmem:[%s6 + $0x90] sm:$0xff]
        %v1461 = vld [vmem:[%s6 + $0x98] sm:$0xff]
        %v1462 = vld [vmem:[%s6 + $0xa0] sm:$0xff]
        %v1463 = vld [vmem:[%s6 + $0xa8] sm:$0xff]
        %v1464 = vld [vmem:[%s6 + $0xb0] sm:$0xff]
        %v1465 = vld [vmem:[%s6 + $0xb8] sm:$0xff]
        %v1466 = vld [vmem:[%s6 + $0xc0] sm:$0xff]
        %v1467 = vld [vmem:[%s6 + $0xc8] sm:$0xff]
        %v1468 = vld [vmem:[%s6 + $0xd0] sm:$0xff]
        %v1469 = vld [vmem:[%s6 + $0xd8] sm:$0xff]
        %v1470 = vld [vmem:[%s6 + $0xe0] sm:$0xff]
        %v1471 = vld [vmem:[%s6 + $0xe8] sm:$0xff]
        %v1472 = vld [vmem:[%s6 + $0xf0] sm:$0xff]
        %v1473 = vld [vmem:[%s6 + $0xf8] sm:$0xff]
        %v1474 = vld [vmem:[%s6 + $0x100] sm:$0xff]
        %v1475 = vld [vmem:[%s6 + $0x108] sm:$0xff]
        %v1476 = vld [vmem:[%s6 + $0x110] sm:$0xff]
        %v1477 = vld [vmem:[%s6 + $0x118] sm:$0xff]
        %v1478 = vld [vmem:[%s6 + $0x120] sm:$0xff]
        %v1479 = vld [vmem:[%s6 + $0x128] sm:$0xff]
        %v1480 = vld [vmem:[%s6 + $0x130] sm:$0xff]
        %v1481 = vld [vmem:[%s6 + $0x138] sm:$0xff]
        %v1482 = vld [vmem:[%s6 + $0x140] sm:$0xff]
        %v1483 = vld [vmem:[%s6 + $0x148] sm:$0xff]
        %v1484 = vld [vmem:[%s6 + $0x150] sm:$0xff]
        %v1485 = vld [vmem:[%s6 + $0x158] sm:$0xff]
        %v1486 = vld [vmem:[%s6 + $0x160] sm:$0xff]
        %v1487 = vld [vmem:[%s6 + $0x168] sm:$0xff]
        %v1488 = vld [vmem:[%s6 + $0x170] sm:$0xff]
        %v1489 = vld [vmem:[%s6 + $0x178] sm:$0xff]
        %v1490 = vld [vmem:[%s6 + $0x180] sm:$0xff]
        %v1491 = vld [vmem:[%s6 + $0x188] sm:$0xff]
        %v1492 = vld [vmem:[%s6 + $0x190] sm:$0xff]
        %v1493 = vld [vmem:[%s6 + $0x198] sm:$0xff]
        %v1494 = vld [vmem:[%s6 + $0x1a0] sm:$0xff]
        %v1495 = vld [vmem:[%s6 + $0x1a8] sm:$0xff]
        %v1496 = vld [vmem:[%s6 + $0x1b0] sm:$0xff]
        %v1497 = vld [vmem:[%s6 + $0x1b8] sm:$0xff]
        %v1498 = vld [vmem:[%s6 + $0x1c0] sm:$0xff]
        %v1499 = vld [vmem:[%s6 + $0x1c8] sm:$0xff]
        %v1500 = vld [vmem:[%s6 + $0x1d0] sm:$0xff]
        %v1501 = vld [vmem:[%s6 + $0x1d8] sm:$0xff]
        %v1502 = vld [vmem:[%s6 + $0x1e0] sm:$0xff]
        %v1503 = vld [vmem:[%s6 + $0x1e8] sm:$0xff]
        %v1504 = vld [vmem:[%s6 + $0x1f0] sm:$0xff]
        %v1505 = vld [vmem:[%s6 + $0x1f8] sm:$0xff]
        %v1506 = vld [vmem:[%s6 + $0x200] sm:$0xff]
        %v1507 = vld [vmem:[%s6 + $0x208] sm:$0xff]
        %v1508 = vld [vmem:[%s6 + $0x210] sm:$0xff]
        %v1509 = vld [vmem:[%s6 + $0x218] sm:$0xff]
        %v1510 = vld [vmem:[%s6 + $0x220] sm:$0xff]
        %v1511 = vld [vmem:[%s6 + $0x228] sm:$0xff]
        %v1512 = vld [vmem:[%s6 + $0x230] sm:$0xff]
        %v1513 = vld [vmem:[%s6 + $0x238] sm:$0xff]
        %v1514 = vld [vmem:[%s6 + $0x240] sm:$0xff]
        %v1515 = vld [vmem:[%s6 + $0x248] sm:$0xff]
        %v1516 = vld [vmem:[%s6 + $0x250] sm:$0xff]
        %v1517 = vld [vmem:[%s6 + $0x258] sm:$0xff]
        %v1518 = vld [vmem:[%s6 + $0x260] sm:$0xff]
        %v1519 = vld [vmem:[%s6 + $0x268] sm:$0xff]
        %v1520 = vld [vmem:[%s6 + $0x270] sm:$0xff]
        %v1521 = vld [vmem:[%s6 + $0x278] sm:$0xff]
        %v1522 = vld [vmem:[%s6 + $0x280] sm:$0xff]
        %v1523 = vld [vmem:[%s6 + $0x288] sm:$0xff]
        %v1524 = vld [vmem:[%s6 + $0x290] sm:$0xff]
        %v1525 = vld [vmem:[%s6 + $0x298] sm:$0xff]
        %v1526 = vld [vmem:[%s6 + $0x2a0] sm:$0xff]
        %v1527 = vld [vmem:[%s6 + $0x2a8] sm:$0xff]
        %v1528 = vld [vmem:[%s6 + $0x2b0] sm:$0xff]
        %v1529 = vld [vmem:[%s6 + $0x2b8] sm:$0xff]
        %v1530 = vld [vmem:[%s6 + $0x2c0] sm:$0xff]
        %v1531 = vld [vmem:[%s6 + $0x2c8] sm:$0xff]
        %v1532 = vld [vmem:[%s6 + $0x2d0] sm:$0xff]
        %v1533 = vld [vmem:[%s6 + $0x2d8] sm:$0xff]
        %v1534 = vld [vmem:[%s6 + $0x2e0] sm:$0xff]
        %v1535 = vld [vmem:[%s6 + $0x2e8] sm:$0xff]
        %v1536 = vld [vmem:[%s6 + $0x2f0] sm:$0xff]
        %v1537 = vld [vmem:[%s6 + $0x2f8] sm:$0xff]
        %v1538 = vld [vmem:[%s6 + $0x300] sm:$0xff]
        %v1539 = vld [vmem:[%s6 + $0x308] sm:$0xff]
        %v1540 = vld [vmem:[%s6 + $0x310] sm:$0xff]
        %v1541 = vld [vmem:[%s6 + $0x318] sm:$0xff]
        %v1542 = vld [vmem:[%s6 + $0x320] sm:$0xff]
        %v1543 = vld [vmem:[%s6 + $0x328] sm:$0xff]
        %v1544 = vld [vmem:[%s6 + $0x330] sm:$0xff]
        %v1545 = vld [vmem:[%s6 + $0x338] sm:$0xff]
        %v1546 = vld [vmem:[%s6 + $0x340] sm:$0xff]
        %v1547 = vld [vmem:[%s6 + $0x348] sm:$0xff]
        %v1548 = vld [vmem:[%s6 + $0x350] sm:$0xff]
        %v1549 = vld [vmem:[%s6 + $0x358] sm:$0xff]
        %v1550 = vld [vmem:[%s6 + $0x360] sm:$0xff]
        %v1551 = vld [vmem:[%s6 + $0x368] sm:$0xff]
        %v1552 = vld [vmem:[%s6 + $0x370] sm:$0xff]
        %v1553 = vld [vmem:[%s6 + $0x378] sm:$0xff]
        %v1554 = vld [vmem:[%s6 + $0x380] sm:$0xff]
        %v1555 = vld [vmem:[%s6 + $0x388] sm:$0xff]
        %v1556 = vld [vmem:[%s6 + $0x390] sm:$0xff]
        %v1557 = vld [vmem:[%s6 + $0x398] sm:$0xff]
        %v1558 = vld [vmem:[%s6 + $0x3a0] sm:$0xff]
        %v1559 = vld [vmem:[%s6 + $0x3a8] sm:$0xff]
        %v1560 = vld [vmem:[%s6 + $0x3b0] sm:$0xff]
        %v1561 = vld [vmem:[%s6 + $0x3b8] sm:$0xff]
        %v1562 = vld [vmem:[%s6 + $0x3c0] sm:$0xff]
        %v1563 = vld [vmem:[%s6 + $0x3c8] sm:$0xff]
        %v1564 = vld [vmem:[%s6 + $0x3d0] sm:$0xff]
        %v1565 = vld [vmem:[%s6 + $0x3d8] sm:$0xff]
        %v1566 = vld [vmem:[%s6 + $0x3e0] sm:$0xff]
        %v1567 = vld [vmem:[%s6 + $0x3e8] sm:$0xff]
        %v1568 = vld [vmem:[%s6 + $0x3f0] sm:$0xff]
        %v1569 = vld [vmem:[%s6 + $0x3f8] sm:$0xff]
        %v1570 = vld [vmem:[%s6 + $0x400] sm:$0xff]
        %v1571 = vld [vmem:[%s6 + $0x408] sm:$0xff]
        %v1572 = vld [vmem:[%s6 + $0x410] sm:$0xff]
        %v1573 = vld [vmem:[%s6 + $0x418] sm:$0xff]
        %v1574 = vld [vmem:[%s6 + $0x420] sm:$0xff]
        %v1575 = vld [vmem:[%s6 + $0x428] sm:$0xff]
        %v1576 = vld [vmem:[%s6 + $0x430] sm:$0xff]
        %v1577 = vld [vmem:[%s6 + $0x438] sm:$0xff]
        %v1578 = vld [vmem:[%s6 + $0x440] sm:$0xff]
        %v1579 = vld [vmem:[%s6 + $0x448] sm:$0xff]
        %v1580 = vld [vmem:[%s6 + $0x450] sm:$0xff]
        %v1581 = vld [vmem:[%s6 + $0x458] sm:$0xff]
        %v1582 = vld [vmem:[%s6 + $0x460] sm:$0xff]
        %v1583 = vld [vmem:[%s6 + $0x468] sm:$0xff]
        %v1584 = vld [vmem:[%s6 + $0x470] sm:$0xff]
        %v1585 = vld [vmem:[%s6 + $0x478] sm:$0xff]
        %v1586 = vld [vmem:[%s6 + $0x480] sm:$0xff]
        %v1587 = vld [vmem:[%s6 + $0x488] sm:$0xff]
        %v1588 = vld [vmem:[%s6 + $0x490] sm:$0xff]
        %v1589 = vld [vmem:[%s6 + $0x498] sm:$0xff]
        %v1590 = vld [vmem:[%s6 + $0x4a0] sm:$0xff]
        %v1591 = vld [vmem:[%s6 + $0x4a8] sm:$0xff]
        %v1592 = vld [vmem:[%s6 + $0x4b0] sm:$0xff]
        %v1593 = vld [vmem:[%s6 + $0x4b8] sm:$0xff]
        %v1594 = vld [vmem:[%s6 + $0x4c0] sm:$0xff]
        %v1595 = vld [vmem:[%s6 + $0x4c8] sm:$0xff]
        %v1596 = vld [vmem:[%s6 + $0x4d0] sm:$0xff]
        %v1597 = vld [vmem:[%s6 + $0x4d8] sm:$0xff]
        %v1598 = vld [vmem:[%s6 + $0x4e0] sm:$0xff]
        %v1599 = vld [vmem:[%s6 + $0x4e8] sm:$0xff]
        %v1600 = vld [vmem:[%s6 + $0x4f0] sm:$0xff]
        %v1601 = vld [vmem:[%s6 + $0x4f8] sm:$0xff]
        %v1602 = vld [vmem:[%s6 + $0x500] sm:$0xff]
        %v1603 = vld [vmem:[%s6 + $0x508] sm:$0xff]
        %v1604 = vld [vmem:[%s6 + $0x510] sm:$0xff]
        %v1605 = vld [vmem:[%s6 + $0x518] sm:$0xff]
        %v1606 = vld [vmem:[%s6 + $0x520] sm:$0xff]
        %v1607 = vld [vmem:[%s6 + $0x528] sm:$0xff]
        %v1608 = vld [vmem:[%s6 + $0x530] sm:$0xff]
        %v1609 = vld [vmem:[%s6 + $0x538] sm:$0xff]
        %v1610 = vld [vmem:[%s6 + $0x540] sm:$0xff]
        %v1611 = vld [vmem:[%s6 + $0x548] sm:$0xff]
        %v1612 = vld [vmem:[%s6 + $0x550] sm:$0xff]
        %v1613 = vld [vmem:[%s6 + $0x558] sm:$0xff]
        %v1614 = vld [vmem:[%s6 + $0x560] sm:$0xff]
        %v1615 = vld [vmem:[%s6 + $0x568] sm:$0xff]
        %v1616 = vld [vmem:[%s6 + $0x570] sm:$0xff]
        %v1617 = vld [vmem:[%s6 + $0x578] sm:$0xff]
        %v1618 = vld [vmem:[%s6 + $0x580] sm:$0xff]
        %v1619 = vld [vmem:[%s6 + $0x588] sm:$0xff]
        %v1620 = vld [vmem:[%s6 + $0x590] sm:$0xff]
        %v1621 = vld [vmem:[%s6 + $0x598] sm:$0xff]
        %v1622 = vld [vmem:[%s6 + $0x5a0] sm:$0xff]
        %v1623 = vld [vmem:[%s6 + $0x5a8] sm:$0xff]
        %v1624 = vld [vmem:[%s6 + $0x5b0] sm:$0xff]
        %v1625 = vld [vmem:[%s6 + $0x5b8] sm:$0xff]
        %v1626 = vld [vmem:[%s6 + $0x5c0] sm:$0xff]
        %v1627 = vld [vmem:[%s6 + $0x5c8] sm:$0xff]
        %v1628 = vld [vmem:[%s6 + $0x5d0] sm:$0xff]
        %v1629 = vld [vmem:[%s6 + $0x5d8] sm:$0xff]
        %v1630 = vld [vmem:[%s6 + $0x5e0] sm:$0xff]
        %v1631 = vld [vmem:[%s6 + $0x5e8] sm:$0xff]
        %v1632 = vld [vmem:[%s6 + $0x5f0] sm:$0xff]
        %v1633 = vld [vmem:[%s6 + $0x5f8] sm:$0xff]
        %v1634 = vld [vmem:[%s6 + $0x600] sm:$0xff]
        %v1635 = vld [vmem:[%s6 + $0x608] sm:$0xff]
        %v1636 = vld [vmem:[%s6 + $0x610] sm:$0xff]
        %v1637 = vld [vmem:[%s6 + $0x618] sm:$0xff]
        %v1638 = vld [vmem:[%s6 + $0x620] sm:$0xff]
        %v1639 = vld [vmem:[%s6 + $0x628] sm:$0xff]
        %v1640 = vld [vmem:[%s6 + $0x630] sm:$0xff]
        %v1641 = vld [vmem:[%s6 + $0x638] sm:$0xff]
        %v1642 = vld [vmem:[%s6 + $0x640] sm:$0xff]
        %v1643 = vld [vmem:[%s6 + $0x648] sm:$0xff]
        %v1644 = vld [vmem:[%s6 + $0x650] sm:$0xff]
        %v1645 = vld [vmem:[%s6 + $0x658] sm:$0xff]
        %v1646 = vld [vmem:[%s6 + $0x660] sm:$0xff]
        %v1647 = vld [vmem:[%s6 + $0x668] sm:$0xff]
        %v1648 = vld [vmem:[%s6 + $0x670] sm:$0xff]
        %v1649 = vld [vmem:[%s6 + $0x678] sm:$0xff]
        %v1650 = vld [vmem:[%s6 + $0x680] sm:$0xff]
        %v1651 = vld [vmem:[%s6 + $0x688] sm:$0xff]
        %v1652 = vld [vmem:[%s6 + $0x690] sm:$0xff]
        %v1653 = vld [vmem:[%s6 + $0x698] sm:$0xff]
        %v1654 = vld [vmem:[%s6 + $0x6a0] sm:$0xff]
        %v1655 = vld [vmem:[%s6 + $0x6a8] sm:$0xff]
        %v1656 = vld [vmem:[%s6 + $0x6b0] sm:$0xff]
        %v1657 = vld [vmem:[%s6 + $0x6b8] sm:$0xff]
        %v1658 = vld [vmem:[%s6 + $0x6c0] sm:$0xff]
        %v1659 = vld [vmem:[%s6 + $0x6c8] sm:$0xff]
        %v1660 = vld [vmem:[%s6 + $0x6d0] sm:$0xff]
        %v1661 = vld [vmem:[%s6 + $0x6d8] sm:$0xff]
        %v1662 = vld [vmem:[%s6 + $0x6e0] sm:$0xff]
        %v1663 = vld [vmem:[%s6 + $0x6e8] sm:$0xff]
        %v1664 = vld [vmem:[%s6 + $0x6f0] sm:$0xff]
        %v1665 = vld [vmem:[%s6 + $0x6f8] sm:$0xff]
        %v1666 = vld [vmem:[%s6 + $0x700] sm:$0xff]
        %v1667 = vld [vmem:[%s6 + $0x708] sm:$0xff]
        %v1668 = vld [vmem:[%s6 + $0x710] sm:$0xff]
        %v1669 = vld [vmem:[%s6 + $0x718] sm:$0xff]
        %v1670 = vld [vmem:[%s6 + $0x720] sm:$0xff]
        %v1671 = vld [vmem:[%s6 + $0x728] sm:$0xff]
        %v1672 = vld [vmem:[%s6 + $0x730] sm:$0xff]
        %v1673 = vld [vmem:[%s6 + $0x738] sm:$0xff]
        %v1674 = vld [vmem:[%s6 + $0x740] sm:$0xff]
        %v1675 = vld [vmem:[%s6 + $0x748] sm:$0xff]
        %v1676 = vld [vmem:[%s6 + $0x750] sm:$0xff]
        %v1677 = vld [vmem:[%s6 + $0x758] sm:$0xff]
        %v1678 = vld [vmem:[%s6 + $0x760] sm:$0xff]
        %v1679 = vld [vmem:[%s6 + $0x768] sm:$0xff]
        %v1680 = vld [vmem:[%s6 + $0x770] sm:$0xff]
        %v1681 = vld [vmem:[%s6 + $0x778] sm:$0xff]
        %v1682 = vld [vmem:[%s6 + $0x780] sm:$0xff]
        %v1683 = vld [vmem:[%s6 + $0x788] sm:$0xff]
        %v1684 = vld [vmem:[%s6 + $0x790] sm:$0xff]
        %v1685 = vld [vmem:[%s6 + $0x798] sm:$0xff]
        %v1686 = vld [vmem:[%s6 + $0x7a0] sm:$0xff]
        %v1687 = vld [vmem:[%s6 + $0x7a8] sm:$0xff]
        %v1688 = vld [vmem:[%s6 + $0x7b0] sm:$0xff]
        %v1689 = vld [vmem:[%s6 + $0x7b8] sm:$0xff]
        %v1690 = vld [vmem:[%s6 + $0x7c0] sm:$0xff]
        %v1691 = vld [vmem:[%s6 + $0x7c8] sm:$0xff]
        %v1692 = vld [vmem:[%s6 + $0x7d0] sm:$0xff]
        %v1693 = vld [vmem:[%s6 + $0x7d8] sm:$0xff]
        %v1694 = vld [vmem:[%s6 + $0x7e0] sm:$0xff]
        %v1695 = vld [vmem:[%s6 + $0x7e8] sm:$0xff]
        %v1696 = vld [vmem:[%s6 + $0x7f0] sm:$0xff]
        %v1697 = vld [vmem:[%s6 + $0x7f8] sm:$0xff]
        %1698 = vmatprep.subr.mxu0 0.0
        %1699 = vmatpush1.msra.mxu0 %v1457
        %1700 = vmatprep.subr.mxu0 0.0
        %1701 = vmatpush1.msra.mxu0 %v1456
        %1702 = vmatprep.subr.mxu0 0.0
        %1703 = vmatpush1.msra.mxu0 %v1455
        %1704 = vmatprep.subr.mxu0 0.0
        %1705 = vmatpush1.msra.mxu0 %v1454
        %1706 = vmatprep.subr.mxu0 0.0
        %1707 = vmatpush1.msra.mxu0 %v1453
        %1708 = vmatprep.subr.mxu0 0.0
        %1709 = vmatpush1.msra.mxu0 %v1452
        %1710 = vmatprep.subr.mxu0 0.0
        %1711 = vmatpush1.msra.mxu0 %v1451
        %1712 = vmatprep.subr.mxu0 0.0
        %1713 = vmatpush1.msra.mxu0 %v1450
        %1714 = vmatprep.subr.mxu0 0.0
        %1715 = vmatpush1.msra.mxu0 %v1449
        %1716 = vmatprep.subr.mxu0 0.0
        %1717 = vmatpush1.msra.mxu0 %v1448
        %1718 = vmatprep.subr.mxu0 0.0
        %1719 = vmatpush1.msra.mxu0 %v1447
        %1720 = vmatprep.subr.mxu0 0.0
        %1721 = vmatpush1.msra.mxu0 %v1446
        %1722 = vmatprep.subr.mxu0 0.0
        %1723 = vmatpush1.msra.mxu0 %v1445
        %1724 = vmatprep.subr.mxu0 0.0
        %1725 = vmatpush1.msra.mxu0 %v1444
        %1726 = vmatprep.subr.mxu0 0.0
        %1727 = vmatpush1.msra.mxu0 %v1443
        %1728 = vmatprep.subr.mxu0 0.0
        %1729 = vmatpush1.msra.mxu0 %v1442
        %1730 = vmatprep.subr.mxu0 0.0
        %1731 = vmatpush2.msra.mxu0 %v1473
        %1732 = vmatprep.subr.mxu0 0.0
        %1733 = vmatpush2.msra.mxu0 %v1472
        %1734 = vmatprep.subr.mxu0 0.0
        %1735 = vmatpush2.msra.mxu0 %v1471
        %1736 = vmatprep.subr.mxu0 0.0
        %1737 = vmatpush2.msra.mxu0 %v1470
        %1738 = vmatprep.subr.mxu0 0.0
        %1739 = vmatpush2.msra.mxu0 %v1469
        %1740 = vmatprep.subr.mxu0 0.0
        %1741 = vmatpush2.msra.mxu0 %v1468
        %1742 = vmatprep.subr.mxu0 0.0
        %1743 = vmatpush2.msra.mxu0 %v1467
        %1744 = vmatprep.subr.mxu0 0.0
        %1745 = vmatpush2.msra.mxu0 %v1466
        %1746 = vmatprep.subr.mxu0 0.0
        %1747 = vmatpush2.msra.mxu0 %v1465
        %1748 = vmatprep.subr.mxu0 0.0
        %1749 = vmatpush2.msra.mxu0 %v1464
        %1750 = vmatprep.subr.mxu0 0.0
        %1751 = vmatpush2.msra.mxu0 %v1463
        %1752 = vmatprep.subr.mxu0 0.0
        %1753 = vmatpush2.msra.mxu0 %v1462
        %1754 = vmatprep.subr.mxu0 0.0
        %1755 = vmatpush2.msra.mxu0 %v1461
        %1756 = vmatprep.subr.mxu0 0.0
        %1757 = vmatpush2.msra.mxu0 %v1460
        %1758 = vmatprep.subr.mxu0 0.0
        %1759 = vmatpush2.msra.mxu0 %v1459
        %1760 = vmatprep.subr.mxu0 0.0
        %1761 = vmatpush2.msra.mxu0 %v1458
        %1762 = vmatprep.mubr.f32.mxu0 %v1427
        %1763 = vmatmul.mubr.f32.gmra.mxu0 %v1426
        %v1764 = vpop.f32.mrf.mxu0
        %v1765 = vadd.f32 0.0, %v1764
        %v1766 = vpop.f32.mrf.mxu0
        %1767 = vdwg.mxu0
        %1768 = vmatprep.subr.mxu0 0.0
        %1769 = vmatpush1.msra.mxu0 %v1489
        %1770 = vmatprep.subr.mxu0 0.0
        %1771 = vmatpush1.msra.mxu0 %v1488
        %1772 = vmatprep.subr.mxu0 0.0
        %1773 = vmatpush1.msra.mxu0 %v1487
        %1774 = vmatprep.subr.mxu0 0.0
        %1775 = vmatpush1.msra.mxu0 %v1486
        %1776 = vmatprep.subr.mxu0 0.0
        %1777 = vmatpush1.msra.mxu0 %v1485
        %1778 = vmatprep.subr.mxu0 0.0
        %1779 = vmatpush1.msra.mxu0 %v1484
        %1780 = vmatprep.subr.mxu0 0.0
        %1781 = vmatpush1.msra.mxu0 %v1483
        %1782 = vmatprep.subr.mxu0 0.0
        %1783 = vmatpush1.msra.mxu0 %v1482
        %1784 = vmatprep.subr.mxu0 0.0
        %1785 = vmatpush1.msra.mxu0 %v1481
        %1786 = vmatprep.subr.mxu0 0.0
        %1787 = vmatpush1.msra.mxu0 %v1480
        %1788 = vmatprep.subr.mxu0 0.0
        %1789 = vmatpush1.msra.mxu0 %v1479
        %1790 = vmatprep.subr.mxu0 0.0
        %1791 = vmatpush1.msra.mxu0 %v1478
        %1792 = vmatprep.subr.mxu0 0.0
        %1793 = vmatpush1.msra.mxu0 %v1477
        %1794 = vmatprep.subr.mxu0 0.0
        %1795 = vmatpush1.msra.mxu0 %v1476
        %1796 = vmatprep.subr.mxu0 0.0
        %1797 = vmatpush1.msra.mxu0 %v1475
        %1798 = vmatprep.subr.mxu0 0.0
        %1799 = vmatpush1.msra.mxu0 %v1474
        %1800 = vmatprep.subr.mxu0 0.0
        %1801 = vmatpush2.msra.mxu0 %v1505
        %1802 = vmatprep.subr.mxu0 0.0
        %1803 = vmatpush2.msra.mxu0 %v1504
        %1804 = vmatprep.subr.mxu0 0.0
        %1805 = vmatpush2.msra.mxu0 %v1503
        %1806 = vmatprep.subr.mxu0 0.0
        %1807 = vmatpush2.msra.mxu0 %v1502
        %1808 = vmatprep.subr.mxu0 0.0
        %1809 = vmatpush2.msra.mxu0 %v1501
        %1810 = vmatprep.subr.mxu0 0.0
        %1811 = vmatpush2.msra.mxu0 %v1500
        %1812 = vmatprep.subr.mxu0 0.0
        %1813 = vmatpush2.msra.mxu0 %v1499
        %1814 = vmatprep.subr.mxu0 0.0
        %1815 = vmatpush2.msra.mxu0 %v1498
        %1816 = vmatprep.subr.mxu0 0.0
        %1817 = vmatpush2.msra.mxu0 %v1497
        %1818 = vmatprep.subr.mxu0 0.0
        %1819 = vmatpush2.msra.mxu0 %v1496
        %1820 = vmatprep.subr.mxu0 0.0
        %1821 = vmatpush2.msra.mxu0 %v1495
        %1822 = vmatprep.subr.mxu0 0.0
        %1823 = vmatpush2.msra.mxu0 %v1494
        %1824 = vmatprep.subr.mxu0 0.0
        %1825 = vmatpush2.msra.mxu0 %v1493
        %1826 = vmatprep.subr.mxu0 0.0
        %1827 = vmatpush2.msra.mxu0 %v1492
        %1828 = vmatprep.subr.mxu0 0.0
        %1829 = vmatpush2.msra.mxu0 %v1491
        %1830 = vmatprep.subr.mxu0 0.0
        %1831 = vmatpush2.msra.mxu0 %v1490
        %1832 = vmatprep.mubr.f32.mxu0 %v1429
        %1833 = vmatmul.mubr.f32.gmra.mxu0 %v1428
        %v1834 = vpop.f32.mrf.mxu0
        %v1835 = vadd.f32 %v1765, %v1834
        %v1836 = vpop.f32.mrf.mxu0
        %1837 = vdwg.mxu0
        %1838 = vmatprep.subr.mxu0 0.0
        %1839 = vmatpush1.msra.mxu0 %v1521
        %1840 = vmatprep.subr.mxu0 0.0
        %1841 = vmatpush1.msra.mxu0 %v1520
        %1842 = vmatprep.subr.mxu0 0.0
        %1843 = vmatpush1.msra.mxu0 %v1519
        %1844 = vmatprep.subr.mxu0 0.0
        %1845 = vmatpush1.msra.mxu0 %v1518
        %1846 = vmatprep.subr.mxu0 0.0
        %1847 = vmatpush1.msra.mxu0 %v1517
        %1848 = vmatprep.subr.mxu0 0.0
        %1849 = vmatpush1.msra.mxu0 %v1516
        %1850 = vmatprep.subr.mxu0 0.0
        %1851 = vmatpush1.msra.mxu0 %v1515
        %1852 = vmatprep.subr.mxu0 0.0
        %1853 = vmatpush1.msra.mxu0 %v1514
        %1854 = vmatprep.subr.mxu0 0.0
        %1855 = vmatpush1.msra.mxu0 %v1513
        %1856 = vmatprep.subr.mxu0 0.0
        %1857 = vmatpush1.msra.mxu0 %v1512
        %1858 = vmatprep.subr.mxu0 0.0
        %1859 = vmatpush1.msra.mxu0 %v1511
        %1860 = vmatprep.subr.mxu0 0.0
        %1861 = vmatpush1.msra.mxu0 %v1510
        %1862 = vmatprep.subr.mxu0 0.0
        %1863 = vmatpush1.msra.mxu0 %v1509
        %1864 = vmatprep.subr.mxu0 0.0
        %1865 = vmatpush1.msra.mxu0 %v1508
        %1866 = vmatprep.subr.mxu0 0.0
        %1867 = vmatpush1.msra.mxu0 %v1507
        %1868 = vmatprep.subr.mxu0 0.0
        %1869 = vmatpush1.msra.mxu0 %v1506
        %1870 = vmatprep.subr.mxu0 0.0
        %1871 = vmatpush2.msra.mxu0 %v1537
        %1872 = vmatprep.subr.mxu0 0.0
        %1873 = vmatpush2.msra.mxu0 %v1536
        %1874 = vmatprep.subr.mxu0 0.0
        %1875 = vmatpush2.msra.mxu0 %v1535
        %1876 = vmatprep.subr.mxu0 0.0
        %1877 = vmatpush2.msra.mxu0 %v1534
        %1878 = vmatprep.subr.mxu0 0.0
        %1879 = vmatpush2.msra.mxu0 %v1533
        %1880 = vmatprep.subr.mxu0 0.0
        %1881 = vmatpush2.msra.mxu0 %v1532
        %1882 = vmatprep.subr.mxu0 0.0
        %1883 = vmatpush2.msra.mxu0 %v1531
        %1884 = vmatprep.subr.mxu0 0.0
        %1885 = vmatpush2.msra.mxu0 %v1530
        %1886 = vmatprep.subr.mxu0 0.0
        %1887 = vmatpush2.msra.mxu0 %v1529
        %1888 = vmatprep.subr.mxu0 0.0
        %1889 = vmatpush2.msra.mxu0 %v1528
        %1890 = vmatprep.subr.mxu0 0.0
        %1891 = vmatpush2.msra.mxu0 %v1527
        %1892 = vmatprep.subr.mxu0 0.0
        %1893 = vmatpush2.msra.mxu0 %v1526
        %1894 = vmatprep.subr.mxu0 0.0
        %1895 = vmatpush2.msra.mxu0 %v1525
        %1896 = vmatprep.subr.mxu0 0.0
        %1897 = vmatpush2.msra.mxu0 %v1524
        %1898 = vmatprep.subr.mxu0 0.0
        %1899 = vmatpush2.msra.mxu0 %v1523
        %1900 = vmatprep.subr.mxu0 0.0
        %1901 = vmatpush2.msra.mxu0 %v1522
        %1902 = vmatprep.mubr.f32.mxu0 %v1431
        %1903 = vmatmul.mubr.f32.gmra.mxu0 %v1430
        %v1904 = vpop.f32.mrf.mxu0
        %v1905 = vadd.f32 %v1835, %v1904
        %v1906 = vpop.f32.mrf.mxu0
        %1907 = vdwg.mxu0
        %1908 = vmatprep.subr.mxu0 0.0
        %1909 = vmatpush1.msra.mxu0 %v1553
        %1910 = vmatprep.subr.mxu0 0.0
        %1911 = vmatpush1.msra.mxu0 %v1552
        %1912 = vmatprep.subr.mxu0 0.0
        %1913 = vmatpush1.msra.mxu0 %v1551
        %1914 = vmatprep.subr.mxu0 0.0
        %1915 = vmatpush1.msra.mxu0 %v1550
        %1916 = vmatprep.subr.mxu0 0.0
        %1917 = vmatpush1.msra.mxu0 %v1549
        %1918 = vmatprep.subr.mxu0 0.0
        %1919 = vmatpush1.msra.mxu0 %v1548
        %1920 = vmatprep.subr.mxu0 0.0
        %1921 = vmatpush1.msra.mxu0 %v1547
        %1922 = vmatprep.subr.mxu0 0.0
        %1923 = vmatpush1.msra.mxu0 %v1546
        %1924 = vmatprep.subr.mxu0 0.0
        %1925 = vmatpush1.msra.mxu0 %v1545
        %1926 = vmatprep.subr.mxu0 0.0
        %1927 = vmatpush1.msra.mxu0 %v1544
        %1928 = vmatprep.subr.mxu0 0.0
        %1929 = vmatpush1.msra.mxu0 %v1543
        %1930 = vmatprep.subr.mxu0 0.0
        %1931 = vmatpush1.msra.mxu0 %v1542
        %1932 = vmatprep.subr.mxu0 0.0
        %1933 = vmatpush1.msra.mxu0 %v1541
        %1934 = vmatprep.subr.mxu0 0.0
        %1935 = vmatpush1.msra.mxu0 %v1540
        %1936 = vmatprep.subr.mxu0 0.0
        %1937 = vmatpush1.msra.mxu0 %v1539
        %1938 = vmatprep.subr.mxu0 0.0
        %1939 = vmatpush1.msra.mxu0 %v1538
        %1940 = vmatprep.subr.mxu0 0.0
        %1941 = vmatpush2.msra.mxu0 %v1569
        %1942 = vmatprep.subr.mxu0 0.0
        %1943 = vmatpush2.msra.mxu0 %v1568
        %1944 = vmatprep.subr.mxu0 0.0
        %1945 = vmatpush2.msra.mxu0 %v1567
        %1946 = vmatprep.subr.mxu0 0.0
        %1947 = vmatpush2.msra.mxu0 %v1566
        %1948 = vmatprep.subr.mxu0 0.0
        %1949 = vmatpush2.msra.mxu0 %v1565
        %1950 = vmatprep.subr.mxu0 0.0
        %1951 = vmatpush2.msra.mxu0 %v1564
        %1952 = vmatprep.subr.mxu0 0.0
        %1953 = vmatpush2.msra.mxu0 %v1563
        %1954 = vmatprep.subr.mxu0 0.0
        %1955 = vmatpush2.msra.mxu0 %v1562
        %1956 = vmatprep.subr.mxu0 0.0
        %1957 = vmatpush2.msra.mxu0 %v1561
        %1958 = vmatprep.subr.mxu0 0.0
        %1959 = vmatpush2.msra.mxu0 %v1560
        %1960 = vmatprep.subr.mxu0 0.0
        %1961 = vmatpush2.msra.mxu0 %v1559
        %1962 = vmatprep.subr.mxu0 0.0
        %1963 = vmatpush2.msra.mxu0 %v1558
        %1964 = vmatprep.subr.mxu0 0.0
        %1965 = vmatpush2.msra.mxu0 %v1557
        %1966 = vmatprep.subr.mxu0 0.0
        %1967 = vmatpush2.msra.mxu0 %v1556
        %1968 = vmatprep.subr.mxu0 0.0
        %1969 = vmatpush2.msra.mxu0 %v1555
        %1970 = vmatprep.subr.mxu0 0.0
        %1971 = vmatpush2.msra.mxu0 %v1554
        %1972 = vmatprep.mubr.f32.mxu0 %v1433
        %1973 = vmatmul.mubr.f32.gmra.mxu0 %v1432
        %v1974 = vpop.f32.mrf.mxu0
        %v1975 = vadd.f32 %v1905, %v1974
        %v1976 = vpop.f32.mrf.mxu0
        %1977 = vdwg.mxu0
        %1978 = vmatprep.subr.mxu0 0.0
        %1979 = vmatpush1.msra.mxu0 %v1585
        %1980 = vmatprep.subr.mxu0 0.0
        %1981 = vmatpush1.msra.mxu0 %v1584
        %1982 = vmatprep.subr.mxu0 0.0
        %1983 = vmatpush1.msra.mxu0 %v1583
        %1984 = vmatprep.subr.mxu0 0.0
        %1985 = vmatpush1.msra.mxu0 %v1582
        %1986 = vmatprep.subr.mxu0 0.0
        %1987 = vmatpush1.msra.mxu0 %v1581
        %1988 = vmatprep.subr.mxu0 0.0
        %1989 = vmatpush1.msra.mxu0 %v1580
        %1990 = vmatprep.subr.mxu0 0.0
        %1991 = vmatpush1.msra.mxu0 %v1579
        %1992 = vmatprep.subr.mxu0 0.0
        %1993 = vmatpush1.msra.mxu0 %v1578
        %1994 = vmatprep.subr.mxu0 0.0
        %1995 = vmatpush1.msra.mxu0 %v1577
        %1996 = vmatprep.subr.mxu0 0.0
        %1997 = vmatpush1.msra.mxu0 %v1576
        %1998 = vmatprep.subr.mxu0 0.0
        %1999 = vmatpush1.msra.mxu0 %v1575
        %2000 = vmatprep.subr.mxu0 0.0
        %2001 = vmatpush1.msra.mxu0 %v1574
        %2002 = vmatprep.subr.mxu0 0.0
        %2003 = vmatpush1.msra.mxu0 %v1573
        %2004 = vmatprep.subr.mxu0 0.0
        %2005 = vmatpush1.msra.mxu0 %v1572
        %2006 = vmatprep.subr.mxu0 0.0
        %2007 = vmatpush1.msra.mxu0 %v1571
        %2008 = vmatprep.subr.mxu0 0.0
        %2009 = vmatpush1.msra.mxu0 %v1570
        %2010 = vmatprep.subr.mxu0 0.0
        %2011 = vmatpush2.msra.mxu0 %v1601
        %2012 = vmatprep.subr.mxu0 0.0
        %2013 = vmatpush2.msra.mxu0 %v1600
        %2014 = vmatprep.subr.mxu0 0.0
        %2015 = vmatpush2.msra.mxu0 %v1599
        %2016 = vmatprep.subr.mxu0 0.0
        %2017 = vmatpush2.msra.mxu0 %v1598
        %2018 = vmatprep.subr.mxu0 0.0
        %2019 = vmatpush2.msra.mxu0 %v1597
        %2020 = vmatprep.subr.mxu0 0.0
        %2021 = vmatpush2.msra.mxu0 %v1596
        %2022 = vmatprep.subr.mxu0 0.0
        %2023 = vmatpush2.msra.mxu0 %v1595
        %2024 = vmatprep.subr.mxu0 0.0
        %2025 = vmatpush2.msra.mxu0 %v1594
        %2026 = vmatprep.subr.mxu0 0.0
        %2027 = vmatpush2.msra.mxu0 %v1593
        %2028 = vmatprep.subr.mxu0 0.0
        %2029 = vmatpush2.msra.mxu0 %v1592
        %2030 = vmatprep.subr.mxu0 0.0
        %2031 = vmatpush2.msra.mxu0 %v1591
        %2032 = vmatprep.subr.mxu0 0.0
        %2033 = vmatpush2.msra.mxu0 %v1590
        %2034 = vmatprep.subr.mxu0 0.0
        %2035 = vmatpush2.msra.mxu0 %v1589
        %2036 = vmatprep.subr.mxu0 0.0
        %2037 = vmatpush2.msra.mxu0 %v1588
        %2038 = vmatprep.subr.mxu0 0.0
        %2039 = vmatpush2.msra.mxu0 %v1587
        %2040 = vmatprep.subr.mxu0 0.0
        %2041 = vmatpush2.msra.mxu0 %v1586
        %2042 = vmatprep.mubr.f32.mxu0 %v1435
        %2043 = vmatmul.mubr.f32.gmra.mxu0 %v1434
        %v2044 = vpop.f32.mrf.mxu0
        %v2045 = vadd.f32 %v1975, %v2044
        %v2046 = vpop.f32.mrf.mxu0
        %2047 = vdwg.mxu0
        %2048 = vmatprep.subr.mxu0 0.0
        %2049 = vmatpush1.msra.mxu0 %v1617
        %2050 = vmatprep.subr.mxu0 0.0
        %2051 = vmatpush1.msra.mxu0 %v1616
        %2052 = vmatprep.subr.mxu0 0.0
        %2053 = vmatpush1.msra.mxu0 %v1615
        %2054 = vmatprep.subr.mxu0 0.0
        %2055 = vmatpush1.msra.mxu0 %v1614
        %2056 = vmatprep.subr.mxu0 0.0
        %2057 = vmatpush1.msra.mxu0 %v1613
        %2058 = vmatprep.subr.mxu0 0.0
        %2059 = vmatpush1.msra.mxu0 %v1612
        %2060 = vmatprep.subr.mxu0 0.0
        %2061 = vmatpush1.msra.mxu0 %v1611
        %2062 = vmatprep.subr.mxu0 0.0
        %2063 = vmatpush1.msra.mxu0 %v1610
        %2064 = vmatprep.subr.mxu0 0.0
        %2065 = vmatpush1.msra.mxu0 %v1609
        %2066 = vmatprep.subr.mxu0 0.0
        %2067 = vmatpush1.msra.mxu0 %v1608
        %2068 = vmatprep.subr.mxu0 0.0
        %2069 = vmatpush1.msra.mxu0 %v1607
        %2070 = vmatprep.subr.mxu0 0.0
        %2071 = vmatpush1.msra.mxu0 %v1606
        %2072 = vmatprep.subr.mxu0 0.0
        %2073 = vmatpush1.msra.mxu0 %v1605
        %2074 = vmatprep.subr.mxu0 0.0
        %2075 = vmatpush1.msra.mxu0 %v1604
        %2076 = vmatprep.subr.mxu0 0.0
        %2077 = vmatpush1.msra.mxu0 %v1603
        %2078 = vmatprep.subr.mxu0 0.0
        %2079 = vmatpush1.msra.mxu0 %v1602
        %2080 = vmatprep.subr.mxu0 0.0
        %2081 = vmatpush2.msra.mxu0 %v1633
        %2082 = vmatprep.subr.mxu0 0.0
        %2083 = vmatpush2.msra.mxu0 %v1632
        %2084 = vmatprep.subr.mxu0 0.0
        %2085 = vmatpush2.msra.mxu0 %v1631
        %2086 = vmatprep.subr.mxu0 0.0
        %2087 = vmatpush2.msra.mxu0 %v1630
        %2088 = vmatprep.subr.mxu0 0.0
        %2089 = vmatpush2.msra.mxu0 %v1629
        %2090 = vmatprep.subr.mxu0 0.0
        %2091 = vmatpush2.msra.mxu0 %v1628
        %2092 = vmatprep.subr.mxu0 0.0
        %2093 = vmatpush2.msra.mxu0 %v1627
        %2094 = vmatprep.subr.mxu0 0.0
        %2095 = vmatpush2.msra.mxu0 %v1626
        %2096 = vmatprep.subr.mxu0 0.0
        %2097 = vmatpush2.msra.mxu0 %v1625
        %2098 = vmatprep.subr.mxu0 0.0
        %2099 = vmatpush2.msra.mxu0 %v1624
        %2100 = vmatprep.subr.mxu0 0.0
        %2101 = vmatpush2.msra.mxu0 %v1623
        %2102 = vmatprep.subr.mxu0 0.0
        %2103 = vmatpush2.msra.mxu0 %v1622
        %2104 = vmatprep.subr.mxu0 0.0
        %2105 = vmatpush2.msra.mxu0 %v1621
        %2106 = vmatprep.subr.mxu0 0.0
        %2107 = vmatpush2.msra.mxu0 %v1620
        %2108 = vmatprep.subr.mxu0 0.0
        %2109 = vmatpush2.msra.mxu0 %v1619
        %2110 = vmatprep.subr.mxu0 0.0
        %2111 = vmatpush2.msra.mxu0 %v1618
        %2112 = vmatprep.mubr.f32.mxu0 %v1437
        %2113 = vmatmul.mubr.f32.gmra.mxu0 %v1436
        %v2114 = vpop.f32.mrf.mxu0
        %v2115 = vadd.f32 %v2045, %v2114
        %v2116 = vpop.f32.mrf.mxu0
        %2117 = vdwg.mxu0
        %2118 = vmatprep.subr.mxu0 0.0
        %2119 = vmatpush1.msra.mxu0 %v1649
        %2120 = vmatprep.subr.mxu0 0.0
        %2121 = vmatpush1.msra.mxu0 %v1648
        %2122 = vmatprep.subr.mxu0 0.0
        %2123 = vmatpush1.msra.mxu0 %v1647
        %2124 = vmatprep.subr.mxu0 0.0
        %2125 = vmatpush1.msra.mxu0 %v1646
        %2126 = vmatprep.subr.mxu0 0.0
        %2127 = vmatpush1.msra.mxu0 %v1645
        %2128 = vmatprep.subr.mxu0 0.0
        %2129 = vmatpush1.msra.mxu0 %v1644
        %2130 = vmatprep.subr.mxu0 0.0
        %2131 = vmatpush1.msra.mxu0 %v1643
        %2132 = vmatprep.subr.mxu0 0.0
        %2133 = vmatpush1.msra.mxu0 %v1642
        %2134 = vmatprep.subr.mxu0 0.0
        %2135 = vmatpush1.msra.mxu0 %v1641
        %2136 = vmatprep.subr.mxu0 0.0
        %2137 = vmatpush1.msra.mxu0 %v1640
        %2138 = vmatprep.subr.mxu0 0.0
        %2139 = vmatpush1.msra.mxu0 %v1639
        %2140 = vmatprep.subr.mxu0 0.0
        %2141 = vmatpush1.msra.mxu0 %v1638
        %2142 = vmatprep.subr.mxu0 0.0
        %2143 = vmatpush1.msra.mxu0 %v1637
        %2144 = vmatprep.subr.mxu0 0.0
        %2145 = vmatpush1.msra.mxu0 %v1636
        %2146 = vmatprep.subr.mxu0 0.0
        %2147 = vmatpush1.msra.mxu0 %v1635
        %2148 = vmatprep.subr.mxu0 0.0
        %2149 = vmatpush1.msra.mxu0 %v1634
        %2150 = vmatprep.subr.mxu0 0.0
        %2151 = vmatpush2.msra.mxu0 %v1665
        %2152 = vmatprep.subr.mxu0 0.0
        %2153 = vmatpush2.msra.mxu0 %v1664
        %2154 = vmatprep.subr.mxu0 0.0
        %2155 = vmatpush2.msra.mxu0 %v1663
        %2156 = vmatprep.subr.mxu0 0.0
        %2157 = vmatpush2.msra.mxu0 %v1662
        %2158 = vmatprep.subr.mxu0 0.0
        %2159 = vmatpush2.msra.mxu0 %v1661
        %2160 = vmatprep.subr.mxu0 0.0
        %2161 = vmatpush2.msra.mxu0 %v1660
        %2162 = vmatprep.subr.mxu0 0.0
        %2163 = vmatpush2.msra.mxu0 %v1659
        %2164 = vmatprep.subr.mxu0 0.0
        %2165 = vmatpush2.msra.mxu0 %v1658
        %2166 = vmatprep.subr.mxu0 0.0
        %2167 = vmatpush2.msra.mxu0 %v1657
        %2168 = vmatprep.subr.mxu0 0.0
        %2169 = vmatpush2.msra.mxu0 %v1656
        %2170 = vmatprep.subr.mxu0 0.0
        %2171 = vmatpush2.msra.mxu0 %v1655
        %2172 = vmatprep.subr.mxu0 0.0
        %2173 = vmatpush2.msra.mxu0 %v1654
        %2174 = vmatprep.subr.mxu0 0.0
        %2175 = vmatpush2.msra.mxu0 %v1653
        %2176 = vmatprep.subr.mxu0 0.0
        %2177 = vmatpush2.msra.mxu0 %v1652
        %2178 = vmatprep.subr.mxu0 0.0
        %2179 = vmatpush2.msra.mxu0 %v1651
        %2180 = vmatprep.subr.mxu0 0.0
        %2181 = vmatpush2.msra.mxu0 %v1650
        %2182 = vmatprep.mubr.f32.mxu0 %v1439
        %2183 = vmatmul.mubr.f32.gmra.mxu0 %v1438
        %v2184 = vpop.f32.mrf.mxu0
        %v2185 = vadd.f32 %v2115, %v2184
        %v2186 = vpop.f32.mrf.mxu0
        %2187 = vdwg.mxu0
        %2188 = vmatprep.subr.mxu0 0.0
        %2189 = vmatpush1.msra.mxu0 %v1681
        %2190 = vmatprep.subr.mxu0 0.0
        %2191 = vmatpush1.msra.mxu0 %v1680
        %2192 = vmatprep.subr.mxu0 0.0
        %2193 = vmatpush1.msra.mxu0 %v1679
        %2194 = vmatprep.subr.mxu0 0.0
        %2195 = vmatpush1.msra.mxu0 %v1678
        %2196 = vmatprep.subr.mxu0 0.0
        %2197 = vmatpush1.msra.mxu0 %v1677
        %2198 = vmatprep.subr.mxu0 0.0
        %2199 = vmatpush1.msra.mxu0 %v1676
        %2200 = vmatprep.subr.mxu0 0.0
        %2201 = vmatpush1.msra.mxu0 %v1675
        %2202 = vmatprep.subr.mxu0 0.0
        %2203 = vmatpush1.msra.mxu0 %v1674
        %2204 = vmatprep.subr.mxu0 0.0
        %2205 = vmatpush1.msra.mxu0 %v1673
        %2206 = vmatprep.subr.mxu0 0.0
        %2207 = vmatpush1.msra.mxu0 %v1672
        %2208 = vmatprep.subr.mxu0 0.0
        %2209 = vmatpush1.msra.mxu0 %v1671
        %2210 = vmatprep.subr.mxu0 0.0
        %2211 = vmatpush1.msra.mxu0 %v1670
        %2212 = vmatprep.subr.mxu0 0.0
        %2213 = vmatpush1.msra.mxu0 %v1669
        %2214 = vmatprep.subr.mxu0 0.0
        %2215 = vmatpush1.msra.mxu0 %v1668
        %2216 = vmatprep.subr.mxu0 0.0
        %2217 = vmatpush1.msra.mxu0 %v1667
        %2218 = vmatprep.subr.mxu0 0.0
        %2219 = vmatpush1.msra.mxu0 %v1666
        %2220 = vmatprep.subr.mxu0 0.0
        %2221 = vmatpush2.msra.mxu0 %v1697
        %2222 = vmatprep.subr.mxu0 0.0
        %2223 = vmatpush2.msra.mxu0 %v1696
        %2224 = vmatprep.subr.mxu0 0.0
        %2225 = vmatpush2.msra.mxu0 %v1695
        %2226 = vmatprep.subr.mxu0 0.0
        %2227 = vmatpush2.msra.mxu0 %v1694
        %2228 = vmatprep.subr.mxu0 0.0
        %2229 = vmatpush2.msra.mxu0 %v1693
        %2230 = vmatprep.subr.mxu0 0.0
        %2231 = vmatpush2.msra.mxu0 %v1692
        %2232 = vmatprep.subr.mxu0 0.0
        %2233 = vmatpush2.msra.mxu0 %v1691
        %2234 = vmatprep.subr.mxu0 0.0
        %2235 = vmatpush2.msra.mxu0 %v1690
        %2236 = vmatprep.subr.mxu0 0.0
        %2237 = vmatpush2.msra.mxu0 %v1689
        %2238 = vmatprep.subr.mxu0 0.0
        %2239 = vmatpush2.msra.mxu0 %v1688
        %2240 = vmatprep.subr.mxu0 0.0
        %2241 = vmatpush2.msra.mxu0 %v1687
        %2242 = vmatprep.subr.mxu0 0.0
        %2243 = vmatpush2.msra.mxu0 %v1686
        %2244 = vmatprep.subr.mxu0 0.0
        %2245 = vmatpush2.msra.mxu0 %v1685
        %2246 = vmatprep.subr.mxu0 0.0
        %2247 = vmatpush2.msra.mxu0 %v1684
        %2248 = vmatprep.subr.mxu0 0.0
        %2249 = vmatpush2.msra.mxu0 %v1683
        %2250 = vmatprep.subr.mxu0 0.0
        %2251 = vmatpush2.msra.mxu0 %v1682
        %2252 = vmatprep.mubr.f32.mxu0 %v1441
        %2253 = vmatmul.mubr.f32.gmra.mxu0 %v1440
        %v2254 = vpop.f32.mrf.mxu0
        %v2255 = vadd.f32 %v2185, %v2254
        %v2256 = vpop.f32.mrf.mxu0
        %2257 = vdwg.mxu0
        %v2258 = vmul.f32 %v2255, 0.088388346
        %vm2259 = vcmask 130048
        %v2260 = vsel %vm2259, %v2258, -inf
        %2261 = vmax.xlane.f32.xlu0 %v2260
        %v2262 = vpop.xlane.xlu0 %2261
        %v2263 = vsub.f32 %v2258, %v2262
        %v2264 = vmul.f32 %v2263, 1.442695
        %v2265 = vpow.pop %v2264
        %v2266 = vsel %vm2259, %v2265, 0.0
        %2267 = vadd.xlane.f32.xlu0 %v2266
        %v2268 = vpop.xlane.xlu0 %2267
        %v2269 = vrcp.pop %v2268
        %v2270 = vmul.f32 %v2265, %v2269
        %v2271 = vld [vmem:[#allocation8] sm:$0xff]
        %v2272 = vld [vmem:[#allocation8 + $0x8] sm:$0xff]
        %v2273 = vld [vmem:[#allocation8 + $0x10] sm:$0xff]
        %v2274 = vld [vmem:[#allocation8 + $0x18] sm:$0xff]
        %v2275 = vld [vmem:[#allocation8 + $0x20] sm:$0xff]
        %v2276 = vld [vmem:[#allocation8 + $0x28] sm:$0xff]
        %v2277 = vld [vmem:[#allocation8 + $0x30] sm:$0xff]
        %v2278 = vld [vmem:[#allocation8 + $0x38] sm:$0xff]
        %v2279 = vld [vmem:[#allocation8 + $0x40] sm:$0xff]
        %v2280 = vld [vmem:[#allocation8 + $0x48] sm:$0xff]
        %v2281 = vld [vmem:[#allocation8 + $0x50] sm:$0xff]
        %v2282 = vld [vmem:[#allocation8 + $0x58] sm:$0xff]
        %v2283 = vld [vmem:[#allocation8 + $0x60] sm:$0xff]
        %v2284 = vld [vmem:[#allocation8 + $0x68] sm:$0xff]
        %v2285 = vld [vmem:[#allocation8 + $0x70] sm:$0xff]
        %v2286 = vld [vmem:[#allocation8 + $0x78] sm:$0xff]
        %v2287 = vld [vmem:[#allocation8 + $0x80] sm:$0xff]
        %v2288 = vld [vmem:[#allocation8 + $0x88] sm:$0xff]
        %v2289 = vld [vmem:[#allocation8 + $0x90] sm:$0xff]
        %v2290 = vld [vmem:[#allocation8 + $0x98] sm:$0xff]
        %v2291 = vld [vmem:[#allocation8 + $0xa0] sm:$0xff]
        %v2292 = vld [vmem:[#allocation8 + $0xa8] sm:$0xff]
        %v2293 = vld [vmem:[#allocation8 + $0xb0] sm:$0xff]
        %v2294 = vld [vmem:[#allocation8 + $0xb8] sm:$0xff]
        %v2295 = vld [vmem:[#allocation8 + $0xc0] sm:$0xff]
        %v2296 = vld [vmem:[#allocation8 + $0xc8] sm:$0xff]
        %v2297 = vld [vmem:[#allocation8 + $0xd0] sm:$0xff]
        %v2298 = vld [vmem:[#allocation8 + $0xd8] sm:$0xff]
        %v2299 = vld [vmem:[#allocation8 + $0xe0] sm:$0xff]
        %v2300 = vld [vmem:[#allocation8 + $0xe8] sm:$0xff]
        %v2301 = vld [vmem:[#allocation8 + $0xf0] sm:$0xff]
        %v2302 = vld [vmem:[#allocation8 + $0xf8] sm:$0xff]
        %v2304 = vsel %vm2259, %v2270, 0
        %2306 = vmatprep.subr.mxu0 0.0
        %2307 = vmatpush1.msra.mxu0 0.0
        %2308 = vmatprep.subr.mxu0 0.0
        %2309 = vmatpush1.msra.mxu0 0.0
        %2310 = vmatprep.subr.mxu0 0.0
        %2311 = vmatpush1.msra.mxu0 0.0
        %2312 = vmatprep.subr.mxu0 0.0
        %2313 = vmatpush1.msra.mxu0 0.0
        %2314 = vmatprep.subr.mxu0 0.0
        %2315 = vmatpush1.msra.mxu0 0.0
        %2316 = vmatprep.subr.mxu0 0.0
        %2317 = vmatpush1.msra.mxu0 0.0
        %2318 = vmatprep.subr.mxu0 0.0
        %2319 = vmatpush1.msra.mxu0 0.0
        %2320 = vmatprep.subr.mxu0 0.0
        %2321 = vmatpush1.msra.mxu0 0.0
        %2322 = vmatprep.subr.mxu0 0.0
        %2323 = vmatpush1.msra.mxu0 0.0
        %2324 = vmatprep.subr.mxu0 0.0
        %2325 = vmatpush1.msra.mxu0 0.0
        %2326 = vmatprep.subr.mxu0 0.0
        %2327 = vmatpush1.msra.mxu0 0.0
        %2328 = vmatprep.subr.mxu0 0.0
        %2329 = vmatpush1.msra.mxu0 0.0
        %2330 = vmatprep.subr.mxu0 0.0
        %2331 = vmatpush1.msra.mxu0 0.0
        %2332 = vmatprep.subr.mxu0 0.0
        %2333 = vmatpush1.msra.mxu0 0.0
        %2334 = vmatprep.subr.mxu0 %v2288
        %2335 = vmatpush1.msra.mxu0 %v2287
        %2336 = vmatprep.subr.mxu0 %v2272
        %2337 = vmatpush1.msra.mxu0 %v2271
        %2338 = vmatprep.subr.mxu0 0.0
        %2339 = vmatpush2.msra.mxu0 0.0
        %2340 = vmatprep.subr.mxu0 0.0
        %2341 = vmatpush2.msra.mxu0 0.0
        %2342 = vmatprep.subr.mxu0 0.0
        %2343 = vmatpush2.msra.mxu0 0.0
        %2344 = vmatprep.subr.mxu0 0.0
        %2345 = vmatpush2.msra.mxu0 0.0
        %2346 = vmatprep.subr.mxu0 0.0
        %2347 = vmatpush2.msra.mxu0 0.0
        %2348 = vmatprep.subr.mxu0 0.0
        %2349 = vmatpush2.msra.mxu0 0.0
        %2350 = vmatprep.subr.mxu0 0.0
        %2351 = vmatpush2.msra.mxu0 0.0
        %2352 = vmatprep.subr.mxu0 0.0
        %2353 = vmatpush2.msra.mxu0 0.0
        %2354 = vmatprep.subr.mxu0 0.0
        %2355 = vmatpush2.msra.mxu0 0.0
        %2356 = vmatprep.subr.mxu0 0.0
        %2357 = vmatpush2.msra.mxu0 0.0
        %2358 = vmatprep.subr.mxu0 0.0
        %2359 = vmatpush2.msra.mxu0 0.0
        %2360 = vmatprep.subr.mxu0 0.0
        %2361 = vmatpush2.msra.mxu0 0.0
        %2362 = vmatprep.subr.mxu0 0.0
        %2363 = vmatpush2.msra.mxu0 0.0
        %2364 = vmatprep.subr.mxu0 0.0
        %2365 = vmatpush2.msra.mxu0 0.0
        %2366 = vmatprep.subr.mxu0 0.0
        %2367 = vmatpush2.msra.mxu0 0.0
        %2368 = vmatprep.subr.mxu0 0.0
        %2369 = vmatpush2.msra.mxu0 0.0
        %2370 = vmatprep.mubr.f32.mxu0 0.0
        %2371 = vmatmul.mubr.f32.gmra.mxu0 %v2304
        %v2372 = vpop.f32.mrf.mxu0
        %v2373 = vadd.f32 0.0, %v2372
        %v2374 = vpop.f32.mrf.mxu0
        %v2375 = vadd.f32 0.0, %v2374
        %2376 = vdwg.mxu0
        %2377 = vmatprep.subr.mxu0 0.0
        %2378 = vmatpush1.msra.mxu0 0.0
        %2379 = vmatprep.subr.mxu0 0.0
        %2380 = vmatpush1.msra.mxu0 0.0
        %2381 = vmatprep.subr.mxu0 0.0
        %2382 = vmatpush1.msra.mxu0 0.0
        %2383 = vmatprep.subr.mxu0 0.0
        %2384 = vmatpush1.msra.mxu0 0.0
        %2385 = vmatprep.subr.mxu0 0.0
        %2386 = vmatpush1.msra.mxu0 0.0
        %2387 = vmatprep.subr.mxu0 0.0
        %2388 = vmatpush1.msra.mxu0 0.0
        %2389 = vmatprep.subr.mxu0 0.0
        %2390 = vmatpush1.msra.mxu0 0.0
        %2391 = vmatprep.subr.mxu0 0.0
        %2392 = vmatpush1.msra.mxu0 0.0
        %2393 = vmatprep.subr.mxu0 0.0
        %2394 = vmatpush1.msra.mxu0 0.0
        %2395 = vmatprep.subr.mxu0 0.0
        %2396 = vmatpush1.msra.mxu0 0.0
        %2397 = vmatprep.subr.mxu0 0.0
        %2398 = vmatpush1.msra.mxu0 0.0
        %2399 = vmatprep.subr.mxu0 0.0
        %2400 = vmatpush1.msra.mxu0 0.0
        %2401 = vmatprep.subr.mxu0 0.0
        %2402 = vmatpush1.msra.mxu0 0.0
        %2403 = vmatprep.subr.mxu0 0.0
        %2404 = vmatpush1.msra.mxu0 0.0
        %2405 = vmatprep.subr.mxu0 %v2290
        %2406 = vmatpush1.msra.mxu0 %v2289
        %2407 = vmatprep.subr.mxu0 %v2274
        %2408 = vmatpush1.msra.mxu0 %v2273
        %2409 = vmatprep.subr.mxu0 0.0
        %2410 = vmatpush2.msra.mxu0 0.0
        %2411 = vmatprep.subr.mxu0 0.0
        %2412 = vmatpush2.msra.mxu0 0.0
        %2413 = vmatprep.subr.mxu0 0.0
        %2414 = vmatpush2.msra.mxu0 0.0
        %2415 = vmatprep.subr.mxu0 0.0
        %2416 = vmatpush2.msra.mxu0 0.0
        %2417 = vmatprep.subr.mxu0 0.0
        %2418 = vmatpush2.msra.mxu0 0.0
        %2419 = vmatprep.subr.mxu0 0.0
        %2420 = vmatpush2.msra.mxu0 0.0
        %2421 = vmatprep.subr.mxu0 0.0
        %2422 = vmatpush2.msra.mxu0 0.0
        %2423 = vmatprep.subr.mxu0 0.0
        %2424 = vmatpush2.msra.mxu0 0.0
        %2425 = vmatprep.subr.mxu0 0.0
        %2426 = vmatpush2.msra.mxu0 0.0
        %2427 = vmatprep.subr.mxu0 0.0
        %2428 = vmatpush2.msra.mxu0 0.0
        %2429 = vmatprep.subr.mxu0 0.0
        %2430 = vmatpush2.msra.mxu0 0.0
        %2431 = vmatprep.subr.mxu0 0.0
        %2432 = vmatpush2.msra.mxu0 0.0
        %2433 = vmatprep.subr.mxu0 0.0
        %2434 = vmatpush2.msra.mxu0 0.0
        %2435 = vmatprep.subr.mxu0 0.0
        %2436 = vmatpush2.msra.mxu0 0.0
        %2437 = vmatprep.subr.mxu0 0.0
        %2438 = vmatpush2.msra.mxu0 0.0
        %2439 = vmatprep.subr.mxu0 0.0
        %2440 = vmatpush2.msra.mxu0 0.0
        %2441 = vmatprep.mubr.f32.mxu0 0.0
        %2442 = vmatmul.mubr.f32.gmra.mxu0 %v2304
        %v2443 = vpop.f32.mrf.mxu0
        %v2444 = vadd.f32 0.0, %v2443
        %v2445 = vpop.f32.mrf.mxu0
        %v2446 = vadd.f32 0.0, %v2445
        %2447 = vdwg.mxu0
        %2448 = vmatprep.subr.mxu0 0.0
        %2449 = vmatpush1.msra.mxu0 0.0
        %2450 = vmatprep.subr.mxu0 0.0
        %2451 = vmatpush1.msra.mxu0 0.0
        %2452 = vmatprep.subr.mxu0 0.0
        %2453 = vmatpush1.msra.mxu0 0.0
        %2454 = vmatprep.subr.mxu0 0.0
        %2455 = vmatpush1.msra.mxu0 0.0
        %2456 = vmatprep.subr.mxu0 0.0
        %2457 = vmatpush1.msra.mxu0 0.0
        %2458 = vmatprep.subr.mxu0 0.0
        %2459 = vmatpush1.msra.mxu0 0.0
        %2460 = vmatprep.subr.mxu0 0.0
        %2461 = vmatpush1.msra.mxu0 0.0
        %2462 = vmatprep.subr.mxu0 0.0
        %2463 = vmatpush1.msra.mxu0 0.0
        %2464 = vmatprep.subr.mxu0 0.0
        %2465 = vmatpush1.msra.mxu0 0.0
        %2466 = vmatprep.subr.mxu0 0.0
        %2467 = vmatpush1.msra.mxu0 0.0
        %2468 = vmatprep.subr.mxu0 0.0
        %2469 = vmatpush1.msra.mxu0 0.0
        %2470 = vmatprep.subr.mxu0 0.0
        %2471 = vmatpush1.msra.mxu0 0.0
        %2472 = vmatprep.subr.mxu0 0.0
        %2473 = vmatpush1.msra.mxu0 0.0
        %2474 = vmatprep.subr.mxu0 0.0
        %2475 = vmatpush1.msra.mxu0 0.0
        %2476 = vmatprep.subr.mxu0 %v2292
        %2477 = vmatpush1.msra.mxu0 %v2291
        %2478 = vmatprep.subr.mxu0 %v2276
        %2479 = vmatpush1.msra.mxu0 %v2275
        %2480 = vmatprep.subr.mxu0 0.0
        %2481 = vmatpush2.msra.mxu0 0.0
        %2482 = vmatprep.subr.mxu0 0.0
        %2483 = vmatpush2.msra.mxu0 0.0
        %2484 = vmatprep.subr.mxu0 0.0
        %2485 = vmatpush2.msra.mxu0 0.0
        %2486 = vmatprep.subr.mxu0 0.0
        %2487 = vmatpush2.msra.mxu0 0.0
        %2488 = vmatprep.subr.mxu0 0.0
        %2489 = vmatpush2.msra.mxu0 0.0
        %2490 = vmatprep.subr.mxu0 0.0
        %2491 = vmatpush2.msra.mxu0 0.0
        %2492 = vmatprep.subr.mxu0 0.0
        %2493 = vmatpush2.msra.mxu0 0.0
        %2494 = vmatprep.subr.mxu0 0.0
        %2495 = vmatpush2.msra.mxu0 0.0
        %2496 = vmatprep.subr.mxu0 0.0
        %2497 = vmatpush2.msra.mxu0 0.0
        %2498 = vmatprep.subr.mxu0 0.0
        %2499 = vmatpush2.msra.mxu0 0.0
        %2500 = vmatprep.subr.mxu0 0.0
        %2501 = vmatpush2.msra.mxu0 0.0
        %2502 = vmatprep.subr.mxu0 0.0
        %2503 = vmatpush2.msra.mxu0 0.0
        %2504 = vmatprep.subr.mxu0 0.0
        %2505 = vmatpush2.msra.mxu0 0.0
        %2506 = vmatprep.subr.mxu0 0.0
        %2507 = vmatpush2.msra.mxu0 0.0
        %2508 = vmatprep.subr.mxu0 0.0
        %2509 = vmatpush2.msra.mxu0 0.0
        %2510 = vmatprep.subr.mxu0 0.0
        %2511 = vmatpush2.msra.mxu0 0.0
        %2512 = vmatprep.mubr.f32.mxu0 0.0
        %2513 = vmatmul.mubr.f32.gmra.mxu0 %v2304
        %v2514 = vpop.f32.mrf.mxu0
        %v2515 = vadd.f32 0.0, %v2514
        %v2516 = vpop.f32.mrf.mxu0
        %v2517 = vadd.f32 0.0, %v2516
        %2518 = vdwg.mxu0
        %2519 = vmatprep.subr.mxu0 0.0
        %2520 = vmatpush1.msra.mxu0 0.0
        %2521 = vmatprep.subr.mxu0 0.0
        %2522 = vmatpush1.msra.mxu0 0.0
        %2523 = vmatprep.subr.mxu0 0.0
        %2524 = vmatpush1.msra.mxu0 0.0
        %2525 = vmatprep.subr.mxu0 0.0
        %2526 = vmatpush1.msra.mxu0 0.0
        %2527 = vmatprep.subr.mxu0 0.0
        %2528 = vmatpush1.msra.mxu0 0.0
        %2529 = vmatprep.subr.mxu0 0.0
        %2530 = vmatpush1.msra.mxu0 0.0
        %2531 = vmatprep.subr.mxu0 0.0
        %2532 = vmatpush1.msra.mxu0 0.0
        %2533 = vmatprep.subr.mxu0 0.0
        %2534 = vmatpush1.msra.mxu0 0.0
        %2535 = vmatprep.subr.mxu0 0.0
        %2536 = vmatpush1.msra.mxu0 0.0
        %2537 = vmatprep.subr.mxu0 0.0
        %2538 = vmatpush1.msra.mxu0 0.0
        %2539 = vmatprep.subr.mxu0 0.0
        %2540 = vmatpush1.msra.mxu0 0.0
        %2541 = vmatprep.subr.mxu0 0.0
        %2542 = vmatpush1.msra.mxu0 0.0
        %2543 = vmatprep.subr.mxu0 0.0
        %2544 = vmatpush1.msra.mxu0 0.0
        %2545 = vmatprep.subr.mxu0 0.0
        %2546 = vmatpush1.msra.mxu0 0.0
        %2547 = vmatprep.subr.mxu0 %v2294
        %2548 = vmatpush1.msra.mxu0 %v2293
        %2549 = vmatprep.subr.mxu0 %v2278
        %2550 = vmatpush1.msra.mxu0 %v2277
        %2551 = vmatprep.subr.mxu0 0.0
        %2552 = vmatpush2.msra.mxu0 0.0
        %2553 = vmatprep.subr.mxu0 0.0
        %2554 = vmatpush2.msra.mxu0 0.0
        %2555 = vmatprep.subr.mxu0 0.0
        %2556 = vmatpush2.msra.mxu0 0.0
        %2557 = vmatprep.subr.mxu0 0.0
        %2558 = vmatpush2.msra.mxu0 0.0
        %2559 = vmatprep.subr.mxu0 0.0
        %2560 = vmatpush2.msra.mxu0 0.0
        %2561 = vmatprep.subr.mxu0 0.0
        %2562 = vmatpush2.msra.mxu0 0.0
        %2563 = vmatprep.subr.mxu0 0.0
        %2564 = vmatpush2.msra.mxu0 0.0
        %2565 = vmatprep.subr.mxu0 0.0
        %2566 = vmatpush2.msra.mxu0 0.0
        %2567 = vmatprep.subr.mxu0 0.0
        %2568 = vmatpush2.msra.mxu0 0.0
        %2569 = vmatprep.subr.mxu0 0.0
        %2570 = vmatpush2.msra.mxu0 0.0
        %2571 = vmatprep.subr.mxu0 0.0
        %2572 = vmatpush2.msra.mxu0 0.0
        %2573 = vmatprep.subr.mxu0 0.0
        %2574 = vmatpush2.msra.mxu0 0.0
        %2575 = vmatprep.subr.mxu0 0.0
        %2576 = vmatpush2.msra.mxu0 0.0
        %2577 = vmatprep.subr.mxu0 0.0
        %2578 = vmatpush2.msra.mxu0 0.0
        %2579 = vmatprep.subr.mxu0 0.0
        %2580 = vmatpush2.msra.mxu0 0.0
        %2581 = vmatprep.subr.mxu0 0.0
        %2582 = vmatpush2.msra.mxu0 0.0
        %2583 = vmatprep.mubr.f32.mxu0 0.0
        %2584 = vmatmul.mubr.f32.gmra.mxu0 %v2304
        %v2585 = vpop.f32.mrf.mxu0
        %v2586 = vadd.f32 0.0, %v2585
        %v2587 = vpop.f32.mrf.mxu0
        %v2588 = vadd.f32 0.0, %v2587
        %2589 = vdwg.mxu0
        %2590 = vmatprep.subr.mxu0 0.0
        %2591 = vmatpush1.msra.mxu0 0.0
        %2592 = vmatprep.subr.mxu0 0.0
        %2593 = vmatpush1.msra.mxu0 0.0
        %2594 = vmatprep.subr.mxu0 0.0
        %2595 = vmatpush1.msra.mxu0 0.0
        %2596 = vmatprep.subr.mxu0 0.0
        %2597 = vmatpush1.msra.mxu0 0.0
        %2598 = vmatprep.subr.mxu0 0.0
        %2599 = vmatpush1.msra.mxu0 0.0
        %2600 = vmatprep.subr.mxu0 0.0
        %2601 = vmatpush1.msra.mxu0 0.0
        %2602 = vmatprep.subr.mxu0 0.0
        %2603 = vmatpush1.msra.mxu0 0.0
        %2604 = vmatprep.subr.mxu0 0.0
        %2605 = vmatpush1.msra.mxu0 0.0
        %2606 = vmatprep.subr.mxu0 0.0
        %2607 = vmatpush1.msra.mxu0 0.0
        %2608 = vmatprep.subr.mxu0 0.0
        %2609 = vmatpush1.msra.mxu0 0.0
        %2610 = vmatprep.subr.mxu0 0.0
        %2611 = vmatpush1.msra.mxu0 0.0
        %2612 = vmatprep.subr.mxu0 0.0
        %2613 = vmatpush1.msra.mxu0 0.0
        %2614 = vmatprep.subr.mxu0 0.0
        %2615 = vmatpush1.msra.mxu0 0.0
        %2616 = vmatprep.subr.mxu0 0.0
        %2617 = vmatpush1.msra.mxu0 0.0
        %2618 = vmatprep.subr.mxu0 %v2296
        %2619 = vmatpush1.msra.mxu0 %v2295
        %2620 = vmatprep.subr.mxu0 %v2280
        %2621 = vmatpush1.msra.mxu0 %v2279
        %2622 = vmatprep.subr.mxu0 0.0
        %2623 = vmatpush2.msra.mxu0 0.0
        %2624 = vmatprep.subr.mxu0 0.0
        %2625 = vmatpush2.msra.mxu0 0.0
        %2626 = vmatprep.subr.mxu0 0.0
        %2627 = vmatpush2.msra.mxu0 0.0
        %2628 = vmatprep.subr.mxu0 0.0
        %2629 = vmatpush2.msra.mxu0 0.0
        %2630 = vmatprep.subr.mxu0 0.0
        %2631 = vmatpush2.msra.mxu0 0.0
        %2632 = vmatprep.subr.mxu0 0.0
        %2633 = vmatpush2.msra.mxu0 0.0
        %2634 = vmatprep.subr.mxu0 0.0
        %2635 = vmatpush2.msra.mxu0 0.0
        %2636 = vmatprep.subr.mxu0 0.0
        %2637 = vmatpush2.msra.mxu0 0.0
        %2638 = vmatprep.subr.mxu0 0.0
        %2639 = vmatpush2.msra.mxu0 0.0
        %2640 = vmatprep.subr.mxu0 0.0
        %2641 = vmatpush2.msra.mxu0 0.0
        %2642 = vmatprep.subr.mxu0 0.0
        %2643 = vmatpush2.msra.mxu0 0.0
        %2644 = vmatprep.subr.mxu0 0.0
        %2645 = vmatpush2.msra.mxu0 0.0
        %2646 = vmatprep.subr.mxu0 0.0
        %2647 = vmatpush2.msra.mxu0 0.0
        %2648 = vmatprep.subr.mxu0 0.0
        %2649 = vmatpush2.msra.mxu0 0.0
        %2650 = vmatprep.subr.mxu0 0.0
        %2651 = vmatpush2.msra.mxu0 0.0
        %2652 = vmatprep.subr.mxu0 0.0
        %2653 = vmatpush2.msra.mxu0 0.0
        %2654 = vmatprep.mubr.f32.mxu0 0.0
        %2655 = vmatmul.mubr.f32.gmra.mxu0 %v2304
        %v2656 = vpop.f32.mrf.mxu0
        %v2657 = vadd.f32 0.0, %v2656
        %v2658 = vpop.f32.mrf.mxu0
        %v2659 = vadd.f32 0.0, %v2658
        %2660 = vdwg.mxu0
        %2661 = vmatprep.subr.mxu0 0.0
        %2662 = vmatpush1.msra.mxu0 0.0
        %2663 = vmatprep.subr.mxu0 0.0
        %2664 = vmatpush1.msra.mxu0 0.0
        %2665 = vmatprep.subr.mxu0 0.0
        %2666 = vmatpush1.msra.mxu0 0.0
        %2667 = vmatprep.subr.mxu0 0.0
        %2668 = vmatpush1.msra.mxu0 0.0
        %2669 = vmatprep.subr.mxu0 0.0
        %2670 = vmatpush1.msra.mxu0 0.0
        %2671 = vmatprep.subr.mxu0 0.0
        %2672 = vmatpush1.msra.mxu0 0.0
        %2673 = vmatprep.subr.mxu0 0.0
        %2674 = vmatpush1.msra.mxu0 0.0
        %2675 = vmatprep.subr.mxu0 0.0
        %2676 = vmatpush1.msra.mxu0 0.0
        %2677 = vmatprep.subr.mxu0 0.0
        %2678 = vmatpush1.msra.mxu0 0.0
        %2679 = vmatprep.subr.mxu0 0.0
        %2680 = vmatpush1.msra.mxu0 0.0
        %2681 = vmatprep.subr.mxu0 0.0
        %2682 = vmatpush1.msra.mxu0 0.0
        %2683 = vmatprep.subr.mxu0 0.0
        %2684 = vmatpush1.msra.mxu0 0.0
        %2685 = vmatprep.subr.mxu0 0.0
        %2686 = vmatpush1.msra.mxu0 0.0
        %2687 = vmatprep.subr.mxu0 0.0
        %2688 = vmatpush1.msra.mxu0 0.0
        %2689 = vmatprep.subr.mxu0 %v2298
        %2690 = vmatpush1.msra.mxu0 %v2297
        %2691 = vmatprep.subr.mxu0 %v2282
        %2692 = vmatpush1.msra.mxu0 %v2281
        %2693 = vmatprep.subr.mxu0 0.0
        %2694 = vmatpush2.msra.mxu0 0.0
        %2695 = vmatprep.subr.mxu0 0.0
        %2696 = vmatpush2.msra.mxu0 0.0
        %2697 = vmatprep.subr.mxu0 0.0
        %2698 = vmatpush2.msra.mxu0 0.0
        %2699 = vmatprep.subr.mxu0 0.0
        %2700 = vmatpush2.msra.mxu0 0.0
        %2701 = vmatprep.subr.mxu0 0.0
        %2702 = vmatpush2.msra.mxu0 0.0
        %2703 = vmatprep.subr.mxu0 0.0
        %2704 = vmatpush2.msra.mxu0 0.0
        %2705 = vmatprep.subr.mxu0 0.0
        %2706 = vmatpush2.msra.mxu0 0.0
        %2707 = vmatprep.subr.mxu0 0.0
        %2708 = vmatpush2.msra.mxu0 0.0
        %2709 = vmatprep.subr.mxu0 0.0
        %2710 = vmatpush2.msra.mxu0 0.0
        %2711 = vmatprep.subr.mxu0 0.0
        %2712 = vmatpush2.msra.mxu0 0.0
        %2713 = vmatprep.subr.mxu0 0.0
        %2714 = vmatpush2.msra.mxu0 0.0
        %2715 = vmatprep.subr.mxu0 0.0
        %2716 = vmatpush2.msra.mxu0 0.0
        %2717 = vmatprep.subr.mxu0 0.0
        %2718 = vmatpush2.msra.mxu0 0.0
        %2719 = vmatprep.subr.mxu0 0.0
        %2720 = vmatpush2.msra.mxu0 0.0
        %2721 = vmatprep.subr.mxu0 0.0
        %2722 = vmatpush2.msra.mxu0 0.0
        %2723 = vmatprep.subr.mxu0 0.0
        %2724 = vmatpush2.msra.mxu0 0.0
        %2725 = vmatprep.mubr.f32.mxu0 0.0
        %2726 = vmatmul.mubr.f32.gmra.mxu0 %v2304
        %v2727 = vpop.f32.mrf.mxu0
        %v2728 = vadd.f32 0.0, %v2727
        %v2729 = vpop.f32.mrf.mxu0
        %v2730 = vadd.f32 0.0, %v2729
        %2731 = vdwg.mxu0
        %2732 = vmatprep.subr.mxu0 0.0
        %2733 = vmatpush1.msra.mxu0 0.0
        %2734 = vmatprep.subr.mxu0 0.0
        %2735 = vmatpush1.msra.mxu0 0.0
        %2736 = vmatprep.subr.mxu0 0.0
        %2737 = vmatpush1.msra.mxu0 0.0
        %2738 = vmatprep.subr.mxu0 0.0
        %2739 = vmatpush1.msra.mxu0 0.0
        %2740 = vmatprep.subr.mxu0 0.0
        %2741 = vmatpush1.msra.mxu0 0.0
        %2742 = vmatprep.subr.mxu0 0.0
        %2743 = vmatpush1.msra.mxu0 0.0
        %2744 = vmatprep.subr.mxu0 0.0
        %2745 = vmatpush1.msra.mxu0 0.0
        %2746 = vmatprep.subr.mxu0 0.0
        %2747 = vmatpush1.msra.mxu0 0.0
        %2748 = vmatprep.subr.mxu0 0.0
        %2749 = vmatpush1.msra.mxu0 0.0
        %2750 = vmatprep.subr.mxu0 0.0
        %2751 = vmatpush1.msra.mxu0 0.0
        %2752 = vmatprep.subr.mxu0 0.0
        %2753 = vmatpush1.msra.mxu0 0.0
        %2754 = vmatprep.subr.mxu0 0.0
        %2755 = vmatpush1.msra.mxu0 0.0
        %2756 = vmatprep.subr.mxu0 0.0
        %2757 = vmatpush1.msra.mxu0 0.0
        %2758 = vmatprep.subr.mxu0 0.0
        %2759 = vmatpush1.msra.mxu0 0.0
        %2760 = vmatprep.subr.mxu0 %v2300
        %2761 = vmatpush1.msra.mxu0 %v2299
        %2762 = vmatprep.subr.mxu0 %v2284
        %2763 = vmatpush1.msra.mxu0 %v2283
        %2764 = vmatprep.subr.mxu0 0.0
        %2765 = vmatpush2.msra.mxu0 0.0
        %2766 = vmatprep.subr.mxu0 0.0
        %2767 = vmatpush2.msra.mxu0 0.0
        %2768 = vmatprep.subr.mxu0 0.0
        %2769 = vmatpush2.msra.mxu0 0.0
        %2770 = vmatprep.subr.mxu0 0.0
        %2771 = vmatpush2.msra.mxu0 0.0
        %2772 = vmatprep.subr.mxu0 0.0
        %2773 = vmatpush2.msra.mxu0 0.0
        %2774 = vmatprep.subr.mxu0 0.0
        %2775 = vmatpush2.msra.mxu0 0.0
        %2776 = vmatprep.subr.mxu0 0.0
        %2777 = vmatpush2.msra.mxu0 0.0
        %2778 = vmatprep.subr.mxu0 0.0
        %2779 = vmatpush2.msra.mxu0 0.0
        %2780 = vmatprep.subr.mxu0 0.0
        %2781 = vmatpush2.msra.mxu0 0.0
        %2782 = vmatprep.subr.mxu0 0.0
        %2783 = vmatpush2.msra.mxu0 0.0
        %2784 = vmatprep.subr.mxu0 0.0
        %2785 = vmatpush2.msra.mxu0 0.0
        %2786 = vmatprep.subr.mxu0 0.0
        %2787 = vmatpush2.msra.mxu0 0.0
        %2788 = vmatprep.subr.mxu0 0.0
        %2789 = vmatpush2.msra.mxu0 0.0
        %2790 = vmatprep.subr.mxu0 0.0
        %2791 = vmatpush2.msra.mxu0 0.0
        %2792 = vmatprep.subr.mxu0 0.0
        %2793 = vmatpush2.msra.mxu0 0.0
        %2794 = vmatprep.subr.mxu0 0.0
        %2795 = vmatpush2.msra.mxu0 0.0
        %2796 = vmatprep.mubr.f32.mxu0 0.0
        %2797 = vmatmul.mubr.f32.gmra.mxu0 %v2304
        %v2798 = vpop.f32.mrf.mxu0
        %v2799 = vadd.f32 0.0, %v2798
        %v2800 = vpop.f32.mrf.mxu0
        %v2801 = vadd.f32 0.0, %v2800
        %2802 = vdwg.mxu0
        %2803 = vmatprep.subr.mxu0 0.0
        %2804 = vmatpush1.msra.mxu0 0.0
        %2805 = vmatprep.subr.mxu0 0.0
        %2806 = vmatpush1.msra.mxu0 0.0
        %2807 = vmatprep.subr.mxu0 0.0
        %2808 = vmatpush1.msra.mxu0 0.0
        %2809 = vmatprep.subr.mxu0 0.0
        %2810 = vmatpush1.msra.mxu0 0.0
        %2811 = vmatprep.subr.mxu0 0.0
        %2812 = vmatpush1.msra.mxu0 0.0
        %2813 = vmatprep.subr.mxu0 0.0
        %2814 = vmatpush1.msra.mxu0 0.0
        %2815 = vmatprep.subr.mxu0 0.0
        %2816 = vmatpush1.msra.mxu0 0.0
        %2817 = vmatprep.subr.mxu0 0.0
        %2818 = vmatpush1.msra.mxu0 0.0
        %2819 = vmatprep.subr.mxu0 0.0
        %2820 = vmatpush1.msra.mxu0 0.0
        %2821 = vmatprep.subr.mxu0 0.0
        %2822 = vmatpush1.msra.mxu0 0.0
        %2823 = vmatprep.subr.mxu0 0.0
        %2824 = vmatpush1.msra.mxu0 0.0
        %2825 = vmatprep.subr.mxu0 0.0
        %2826 = vmatpush1.msra.mxu0 0.0
        %2827 = vmatprep.subr.mxu0 0.0
        %2828 = vmatpush1.msra.mxu0 0.0
        %2829 = vmatprep.subr.mxu0 0.0
        %2830 = vmatpush1.msra.mxu0 0.0
        %2831 = vmatprep.subr.mxu0 %v2302
        %2832 = vmatpush1.msra.mxu0 %v2301
        %2833 = vmatprep.subr.mxu0 %v2286
        %2834 = vmatpush1.msra.mxu0 %v2285
        %2835 = vmatprep.subr.mxu0 0.0
        %2836 = vmatpush2.msra.mxu0 0.0
        %2837 = vmatprep.subr.mxu0 0.0
        %2838 = vmatpush2.msra.mxu0 0.0
        %2839 = vmatprep.subr.mxu0 0.0
        %2840 = vmatpush2.msra.mxu0 0.0
        %2841 = vmatprep.subr.mxu0 0.0
        %2842 = vmatpush2.msra.mxu0 0.0
        %2843 = vmatprep.subr.mxu0 0.0
        %2844 = vmatpush2.msra.mxu0 0.0
        %2845 = vmatprep.subr.mxu0 0.0
        %2846 = vmatpush2.msra.mxu0 0.0
        %2847 = vmatprep.subr.mxu0 0.0
        %2848 = vmatpush2.msra.mxu0 0.0
        %2849 = vmatprep.subr.mxu0 0.0
        %2850 = vmatpush2.msra.mxu0 0.0
        %2851 = vmatprep.subr.mxu0 0.0
        %2852 = vmatpush2.msra.mxu0 0.0
        %2853 = vmatprep.subr.mxu0 0.0
        %2854 = vmatpush2.msra.mxu0 0.0
        %2855 = vmatprep.subr.mxu0 0.0
        %2856 = vmatpush2.msra.mxu0 0.0
        %2857 = vmatprep.subr.mxu0 0.0
        %2858 = vmatpush2.msra.mxu0 0.0
        %2859 = vmatprep.subr.mxu0 0.0
        %2860 = vmatpush2.msra.mxu0 0.0
        %2861 = vmatprep.subr.mxu0 0.0
        %2862 = vmatpush2.msra.mxu0 0.0
        %2863 = vmatprep.subr.mxu0 0.0
        %2864 = vmatpush2.msra.mxu0 0.0
        %2865 = vmatprep.subr.mxu0 0.0
        %2866 = vmatpush2.msra.mxu0 0.0
        %2867 = vmatprep.mubr.f32.mxu0 0.0
        %2868 = vmatmul.mubr.f32.gmra.mxu0 %v2304
        %v2869 = vpop.f32.mrf.mxu0
        %v2870 = vadd.f32 0.0, %v2869
        %v2871 = vpop.f32.mrf.mxu0
        %v2872 = vadd.f32 0.0, %v2871
        %2873 = vdwg.mxu0
        %v2874 = vmul.f32 %v2373, %v493
        %v2875 = vmul.f32 %v2375, %v494
        %v2876 = vmul.f32 %v2444, %v495
        %v2877 = vmul.f32 %v2446, %v496
        %v2878 = vmul.f32 %v2515, %v497
        %v2879 = vmul.f32 %v2517, %v498
        %v2880 = vmul.f32 %v2586, %v499
        %v2881 = vmul.f32 %v2588, %v500
        %v2882 = vmul.f32 %v2657, %v501
        %v2883 = vmul.f32 %v2659, %v502
        %v2884 = vmul.f32 %v2728, %v503
        %v2885 = vmul.f32 %v2730, %v504
        %v2886 = vmul.f32 %v2799, %v505
        %v2887 = vmul.f32 %v2801, %v506
        %v2888 = vmul.f32 %v2870, %v507
        %v2889 = vmul.f32 %v2872, %v508
        %v2890 = vld [vmem:[#allocation10] sm:$0xff]
        %v2891 = vld [vmem:[#allocation10 + $0x8] sm:$0xff]
        %v2892 = vld [vmem:[#allocation10 + $0x10] sm:$0xff]
        %v2893 = vld [vmem:[#allocation10 + $0x18] sm:$0xff]
        %v2894 = vld [vmem:[#allocation10 + $0x20] sm:$0xff]
        %v2895 = vld [vmem:[#allocation10 + $0x28] sm:$0xff]
        %v2896 = vld [vmem:[#allocation10 + $0x30] sm:$0xff]
        %v2897 = vld [vmem:[#allocation10 + $0x38] sm:$0xff]
        %v2898 = vld [vmem:[#allocation10 + $0x40] sm:$0xff]
        %v2899 = vld [vmem:[#allocation10 + $0x48] sm:$0xff]
        %v2900 = vld [vmem:[#allocation10 + $0x50] sm:$0xff]
        %v2901 = vld [vmem:[#allocation10 + $0x58] sm:$0xff]
        %v2902 = vld [vmem:[#allocation10 + $0x60] sm:$0xff]
        %v2903 = vld [vmem:[#allocation10 + $0x68] sm:$0xff]
        %v2904 = vld [vmem:[#allocation10 + $0x70] sm:$0xff]
        %v2905 = vld [vmem:[#allocation10 + $0x78] sm:$0xff]
        %v2906 = vld [vmem:[#allocation10 + $0x80] sm:$0xff]
        %v2907 = vld [vmem:[#allocation10 + $0x88] sm:$0xff]
        %v2908 = vld [vmem:[#allocation10 + $0x90] sm:$0xff]
        %v2909 = vld [vmem:[#allocation10 + $0x98] sm:$0xff]
        %v2910 = vld [vmem:[#allocation10 + $0xa0] sm:$0xff]
        %v2911 = vld [vmem:[#allocation10 + $0xa8] sm:$0xff]
        %v2912 = vld [vmem:[#allocation10 + $0xb0] sm:$0xff]
        %v2913 = vld [vmem:[#allocation10 + $0xb8] sm:$0xff]
        %v2914 = vld [vmem:[#allocation10 + $0xc0] sm:$0xff]
        %v2915 = vld [vmem:[#allocation10 + $0xc8] sm:$0xff]
        %v2916 = vld [vmem:[#allocation10 + $0xd0] sm:$0xff]
        %v2917 = vld [vmem:[#allocation10 + $0xd8] sm:$0xff]
        %v2918 = vld [vmem:[#allocation10 + $0xe0] sm:$0xff]
        %v2919 = vld [vmem:[#allocation10 + $0xe8] sm:$0xff]
        %v2920 = vld [vmem:[#allocation10 + $0xf0] sm:$0xff]
        %v2921 = vld [vmem:[#allocation10 + $0xf8] sm:$0xff]
        %v2922 = vld [vmem:[#allocation10 + $0x100] sm:$0xff]
        %v2923 = vld [vmem:[#allocation10 + $0x108] sm:$0xff]
        %v2924 = vld [vmem:[#allocation10 + $0x110] sm:$0xff]
        %v2925 = vld [vmem:[#allocation10 + $0x118] sm:$0xff]
        %v2926 = vld [vmem:[#allocation10 + $0x120] sm:$0xff]
        %v2927 = vld [vmem:[#allocation10 + $0x128] sm:$0xff]
        %v2928 = vld [vmem:[#allocation10 + $0x130] sm:$0xff]
        %v2929 = vld [vmem:[#allocation10 + $0x138] sm:$0xff]
        %v2930 = vld [vmem:[#allocation10 + $0x140] sm:$0xff]
        %v2931 = vld [vmem:[#allocation10 + $0x148] sm:$0xff]
        %v2932 = vld [vmem:[#allocation10 + $0x150] sm:$0xff]
        %v2933 = vld [vmem:[#allocation10 + $0x158] sm:$0xff]
        %v2934 = vld [vmem:[#allocation10 + $0x160] sm:$0xff]
        %v2935 = vld [vmem:[#allocation10 + $0x168] sm:$0xff]
        %v2936 = vld [vmem:[#allocation10 + $0x170] sm:$0xff]
        %v2937 = vld [vmem:[#allocation10 + $0x178] sm:$0xff]
        %v2938 = vld [vmem:[#allocation10 + $0x180] sm:$0xff]
        %v2939 = vld [vmem:[#allocation10 + $0x188] sm:$0xff]
        %v2940 = vld [vmem:[#allocation10 + $0x190] sm:$0xff]
        %v2941 = vld [vmem:[#allocation10 + $0x198] sm:$0xff]
        %v2942 = vld [vmem:[#allocation10 + $0x1a0] sm:$0xff]
        %v2943 = vld [vmem:[#allocation10 + $0x1a8] sm:$0xff]
        %v2944 = vld [vmem:[#allocation10 + $0x1b0] sm:$0xff]
        %v2945 = vld [vmem:[#allocation10 + $0x1b8] sm:$0xff]
        %v2946 = vld [vmem:[#allocation10 + $0x1c0] sm:$0xff]
        %v2947 = vld [vmem:[#allocation10 + $0x1c8] sm:$0xff]
        %v2948 = vld [vmem:[#allocation10 + $0x1d0] sm:$0xff]
        %v2949 = vld [vmem:[#allocation10 + $0x1d8] sm:$0xff]
        %v2950 = vld [vmem:[#allocation10 + $0x1e0] sm:$0xff]
        %v2951 = vld [vmem:[#allocation10 + $0x1e8] sm:$0xff]
        %v2952 = vld [vmem:[#allocation10 + $0x1f0] sm:$0xff]
        %v2953 = vld [vmem:[#allocation10 + $0x1f8] sm:$0xff]
        %v2954 = vld [vmem:[#allocation10 + $0x200] sm:$0xff]
        %v2955 = vld [vmem:[#allocation10 + $0x208] sm:$0xff]
        %v2956 = vld [vmem:[#allocation10 + $0x210] sm:$0xff]
        %v2957 = vld [vmem:[#allocation10 + $0x218] sm:$0xff]
        %v2958 = vld [vmem:[#allocation10 + $0x220] sm:$0xff]
        %v2959 = vld [vmem:[#allocation10 + $0x228] sm:$0xff]
        %v2960 = vld [vmem:[#allocation10 + $0x230] sm:$0xff]
        %v2961 = vld [vmem:[#allocation10 + $0x238] sm:$0xff]
        %v2962 = vld [vmem:[#allocation10 + $0x240] sm:$0xff]
        %v2963 = vld [vmem:[#allocation10 + $0x248] sm:$0xff]
        %v2964 = vld [vmem:[#allocation10 + $0x250] sm:$0xff]
        %v2965 = vld [vmem:[#allocation10 + $0x258] sm:$0xff]
        %v2966 = vld [vmem:[#allocation10 + $0x260] sm:$0xff]
        %v2967 = vld [vmem:[#allocation10 + $0x268] sm:$0xff]
        %v2968 = vld [vmem:[#allocation10 + $0x270] sm:$0xff]
        %v2969 = vld [vmem:[#allocation10 + $0x278] sm:$0xff]
        %v2970 = vld [vmem:[#allocation10 + $0x280] sm:$0xff]
        %v2971 = vld [vmem:[#allocation10 + $0x288] sm:$0xff]
        %v2972 = vld [vmem:[#allocation10 + $0x290] sm:$0xff]
        %v2973 = vld [vmem:[#allocation10 + $0x298] sm:$0xff]
        %v2974 = vld [vmem:[#allocation10 + $0x2a0] sm:$0xff]
        %v2975 = vld [vmem:[#allocation10 + $0x2a8] sm:$0xff]
        %v2976 = vld [vmem:[#allocation10 + $0x2b0] sm:$0xff]
        %v2977 = vld [vmem:[#allocation10 + $0x2b8] sm:$0xff]
        %v2978 = vld [vmem:[#allocation10 + $0x2c0] sm:$0xff]
        %v2979 = vld [vmem:[#allocation10 + $0x2c8] sm:$0xff]
        %v2980 = vld [vmem:[#allocation10 + $0x2d0] sm:$0xff]
        %v2981 = vld [vmem:[#allocation10 + $0x2d8] sm:$0xff]
        %v2982 = vld [vmem:[#allocation10 + $0x2e0] sm:$0xff]
        %v2983 = vld [vmem:[#allocation10 + $0x2e8] sm:$0xff]
        %v2984 = vld [vmem:[#allocation10 + $0x2f0] sm:$0xff]
        %v2985 = vld [vmem:[#allocation10 + $0x2f8] sm:$0xff]
        %v2986 = vld [vmem:[#allocation10 + $0x300] sm:$0xff]
        %v2987 = vld [vmem:[#allocation10 + $0x308] sm:$0xff]
        %v2988 = vld [vmem:[#allocation10 + $0x310] sm:$0xff]
        %v2989 = vld [vmem:[#allocation10 + $0x318] sm:$0xff]
        %v2990 = vld [vmem:[#allocation10 + $0x320] sm:$0xff]
        %v2991 = vld [vmem:[#allocation10 + $0x328] sm:$0xff]
        %v2992 = vld [vmem:[#allocation10 + $0x330] sm:$0xff]
        %v2993 = vld [vmem:[#allocation10 + $0x338] sm:$0xff]
        %v2994 = vld [vmem:[#allocation10 + $0x340] sm:$0xff]
        %v2995 = vld [vmem:[#allocation10 + $0x348] sm:$0xff]
        %v2996 = vld [vmem:[#allocation10 + $0x350] sm:$0xff]
        %v2997 = vld [vmem:[#allocation10 + $0x358] sm:$0xff]
        %v2998 = vld [vmem:[#allocation10 + $0x360] sm:$0xff]
        %v2999 = vld [vmem:[#allocation10 + $0x368] sm:$0xff]
        %v3000 = vld [vmem:[#allocation10 + $0x370] sm:$0xff]
        %v3001 = vld [vmem:[#allocation10 + $0x378] sm:$0xff]
        %v3002 = vld [vmem:[#allocation10 + $0x380] sm:$0xff]
        %v3003 = vld [vmem:[#allocation10 + $0x388] sm:$0xff]
        %v3004 = vld [vmem:[#allocation10 + $0x390] sm:$0xff]
        %v3005 = vld [vmem:[#allocation10 + $0x398] sm:$0xff]
        %v3006 = vld [vmem:[#allocation10 + $0x3a0] sm:$0xff]
        %v3007 = vld [vmem:[#allocation10 + $0x3a8] sm:$0xff]
        %v3008 = vld [vmem:[#allocation10 + $0x3b0] sm:$0xff]
        %v3009 = vld [vmem:[#allocation10 + $0x3b8] sm:$0xff]
        %v3010 = vld [vmem:[#allocation10 + $0x3c0] sm:$0xff]
        %v3011 = vld [vmem:[#allocation10 + $0x3c8] sm:$0xff]
        %v3012 = vld [vmem:[#allocation10 + $0x3d0] sm:$0xff]
        %v3013 = vld [vmem:[#allocation10 + $0x3d8] sm:$0xff]
        %v3014 = vld [vmem:[#allocation10 + $0x3e0] sm:$0xff]
        %v3015 = vld [vmem:[#allocation10 + $0x3e8] sm:$0xff]
        %v3016 = vld [vmem:[#allocation10 + $0x3f0] sm:$0xff]
        %v3017 = vld [vmem:[#allocation10 + $0x3f8] sm:$0xff]
        %v3018 = vld [vmem:[#allocation10 + $0x400] sm:$0xff]
        %v3019 = vld [vmem:[#allocation10 + $0x408] sm:$0xff]
        %v3020 = vld [vmem:[#allocation10 + $0x410] sm:$0xff]
        %v3021 = vld [vmem:[#allocation10 + $0x418] sm:$0xff]
        %v3022 = vld [vmem:[#allocation10 + $0x420] sm:$0xff]
        %v3023 = vld [vmem:[#allocation10 + $0x428] sm:$0xff]
        %v3024 = vld [vmem:[#allocation10 + $0x430] sm:$0xff]
        %v3025 = vld [vmem:[#allocation10 + $0x438] sm:$0xff]
        %v3026 = vld [vmem:[#allocation10 + $0x440] sm:$0xff]
        %v3027 = vld [vmem:[#allocation10 + $0x448] sm:$0xff]
        %v3028 = vld [vmem:[#allocation10 + $0x450] sm:$0xff]
        %v3029 = vld [vmem:[#allocation10 + $0x458] sm:$0xff]
        %v3030 = vld [vmem:[#allocation10 + $0x460] sm:$0xff]
        %v3031 = vld [vmem:[#allocation10 + $0x468] sm:$0xff]
        %v3032 = vld [vmem:[#allocation10 + $0x470] sm:$0xff]
        %v3033 = vld [vmem:[#allocation10 + $0x478] sm:$0xff]
        %v3034 = vld [vmem:[#allocation10 + $0x480] sm:$0xff]
        %v3035 = vld [vmem:[#allocation10 + $0x488] sm:$0xff]
        %v3036 = vld [vmem:[#allocation10 + $0x490] sm:$0xff]
        %v3037 = vld [vmem:[#allocation10 + $0x498] sm:$0xff]
        %v3038 = vld [vmem:[#allocation10 + $0x4a0] sm:$0xff]
        %v3039 = vld [vmem:[#allocation10 + $0x4a8] sm:$0xff]
        %v3040 = vld [vmem:[#allocation10 + $0x4b0] sm:$0xff]
        %v3041 = vld [vmem:[#allocation10 + $0x4b8] sm:$0xff]
        %v3042 = vld [vmem:[#allocation10 + $0x4c0] sm:$0xff]
        %v3043 = vld [vmem:[#allocation10 + $0x4c8] sm:$0xff]
        %v3044 = vld [vmem:[#allocation10 + $0x4d0] sm:$0xff]
        %v3045 = vld [vmem:[#allocation10 + $0x4d8] sm:$0xff]
        %v3046 = vld [vmem:[#allocation10 + $0x4e0] sm:$0xff]
        %v3047 = vld [vmem:[#allocation10 + $0x4e8] sm:$0xff]
        %v3048 = vld [vmem:[#allocation10 + $0x4f0] sm:$0xff]
        %v3049 = vld [vmem:[#allocation10 + $0x4f8] sm:$0xff]
        %v3050 = vld [vmem:[#allocation10 + $0x500] sm:$0xff]
        %v3051 = vld [vmem:[#allocation10 + $0x508] sm:$0xff]
        %v3052 = vld [vmem:[#allocation10 + $0x510] sm:$0xff]
        %v3053 = vld [vmem:[#allocation10 + $0x518] sm:$0xff]
        %v3054 = vld [vmem:[#allocation10 + $0x520] sm:$0xff]
        %v3055 = vld [vmem:[#allocation10 + $0x528] sm:$0xff]
        %v3056 = vld [vmem:[#allocation10 + $0x530] sm:$0xff]
        %v3057 = vld [vmem:[#allocation10 + $0x538] sm:$0xff]
        %v3058 = vld [vmem:[#allocation10 + $0x540] sm:$0xff]
        %v3059 = vld [vmem:[#allocation10 + $0x548] sm:$0xff]
        %v3060 = vld [vmem:[#allocation10 + $0x550] sm:$0xff]
        %v3061 = vld [vmem:[#allocation10 + $0x558] sm:$0xff]
        %v3062 = vld [vmem:[#allocation10 + $0x560] sm:$0xff]
        %v3063 = vld [vmem:[#allocation10 + $0x568] sm:$0xff]
        %v3064 = vld [vmem:[#allocation10 + $0x570] sm:$0xff]
        %v3065 = vld [vmem:[#allocation10 + $0x578] sm:$0xff]
        %v3066 = vld [vmem:[#allocation10 + $0x580] sm:$0xff]
        %v3067 = vld [vmem:[#allocation10 + $0x588] sm:$0xff]
        %v3068 = vld [vmem:[#allocation10 + $0x590] sm:$0xff]
        %v3069 = vld [vmem:[#allocation10 + $0x598] sm:$0xff]
        %v3070 = vld [vmem:[#allocation10 + $0x5a0] sm:$0xff]
        %v3071 = vld [vmem:[#allocation10 + $0x5a8] sm:$0xff]
        %v3072 = vld [vmem:[#allocation10 + $0x5b0] sm:$0xff]
        %v3073 = vld [vmem:[#allocation10 + $0x5b8] sm:$0xff]
        %v3074 = vld [vmem:[#allocation10 + $0x5c0] sm:$0xff]
        %v3075 = vld [vmem:[#allocation10 + $0x5c8] sm:$0xff]
        %v3076 = vld [vmem:[#allocation10 + $0x5d0] sm:$0xff]
        %v3077 = vld [vmem:[#allocation10 + $0x5d8] sm:$0xff]
        %v3078 = vld [vmem:[#allocation10 + $0x5e0] sm:$0xff]
        %v3079 = vld [vmem:[#allocation10 + $0x5e8] sm:$0xff]
        %v3080 = vld [vmem:[#allocation10 + $0x5f0] sm:$0xff]
        %v3081 = vld [vmem:[#allocation10 + $0x5f8] sm:$0xff]
        %v3082 = vld [vmem:[#allocation10 + $0x600] sm:$0xff]
        %v3083 = vld [vmem:[#allocation10 + $0x608] sm:$0xff]
        %v3084 = vld [vmem:[#allocation10 + $0x610] sm:$0xff]
        %v3085 = vld [vmem:[#allocation10 + $0x618] sm:$0xff]
        %v3086 = vld [vmem:[#allocation10 + $0x620] sm:$0xff]
        %v3087 = vld [vmem:[#allocation10 + $0x628] sm:$0xff]
        %v3088 = vld [vmem:[#allocation10 + $0x630] sm:$0xff]
        %v3089 = vld [vmem:[#allocation10 + $0x638] sm:$0xff]
        %v3090 = vld [vmem:[#allocation10 + $0x640] sm:$0xff]
        %v3091 = vld [vmem:[#allocation10 + $0x648] sm:$0xff]
        %v3092 = vld [vmem:[#allocation10 + $0x650] sm:$0xff]
        %v3093 = vld [vmem:[#allocation10 + $0x658] sm:$0xff]
        %v3094 = vld [vmem:[#allocation10 + $0x660] sm:$0xff]
        %v3095 = vld [vmem:[#allocation10 + $0x668] sm:$0xff]
        %v3096 = vld [vmem:[#allocation10 + $0x670] sm:$0xff]
        %v3097 = vld [vmem:[#allocation10 + $0x678] sm:$0xff]
        %v3098 = vld [vmem:[#allocation10 + $0x680] sm:$0xff]
        %v3099 = vld [vmem:[#allocation10 + $0x688] sm:$0xff]
        %v3100 = vld [vmem:[#allocation10 + $0x690] sm:$0xff]
        %v3101 = vld [vmem:[#allocation10 + $0x698] sm:$0xff]
        %v3102 = vld [vmem:[#allocation10 + $0x6a0] sm:$0xff]
        %v3103 = vld [vmem:[#allocation10 + $0x6a8] sm:$0xff]
        %v3104 = vld [vmem:[#allocation10 + $0x6b0] sm:$0xff]
        %v3105 = vld [vmem:[#allocation10 + $0x6b8] sm:$0xff]
        %v3106 = vld [vmem:[#allocation10 + $0x6c0] sm:$0xff]
        %v3107 = vld [vmem:[#allocation10 + $0x6c8] sm:$0xff]
        %v3108 = vld [vmem:[#allocation10 + $0x6d0] sm:$0xff]
        %v3109 = vld [vmem:[#allocation10 + $0x6d8] sm:$0xff]
        %v3110 = vld [vmem:[#allocation10 + $0x6e0] sm:$0xff]
        %v3111 = vld [vmem:[#allocation10 + $0x6e8] sm:$0xff]
        %v3112 = vld [vmem:[#allocation10 + $0x6f0] sm:$0xff]
        %v3113 = vld [vmem:[#allocation10 + $0x6f8] sm:$0xff]
        %v3114 = vld [vmem:[#allocation10 + $0x700] sm:$0xff]
        %v3115 = vld [vmem:[#allocation10 + $0x708] sm:$0xff]
        %v3116 = vld [vmem:[#allocation10 + $0x710] sm:$0xff]
        %v3117 = vld [vmem:[#allocation10 + $0x718] sm:$0xff]
        %v3118 = vld [vmem:[#allocation10 + $0x720] sm:$0xff]
        %v3119 = vld [vmem:[#allocation10 + $0x728] sm:$0xff]
        %v3120 = vld [vmem:[#allocation10 + $0x730] sm:$0xff]
        %v3121 = vld [vmem:[#allocation10 + $0x738] sm:$0xff]
        %v3122 = vld [vmem:[#allocation10 + $0x740] sm:$0xff]
        %v3123 = vld [vmem:[#allocation10 + $0x748] sm:$0xff]
        %v3124 = vld [vmem:[#allocation10 + $0x750] sm:$0xff]
        %v3125 = vld [vmem:[#allocation10 + $0x758] sm:$0xff]
        %v3126 = vld [vmem:[#allocation10 + $0x760] sm:$0xff]
        %v3127 = vld [vmem:[#allocation10 + $0x768] sm:$0xff]
        %v3128 = vld [vmem:[#allocation10 + $0x770] sm:$0xff]
        %v3129 = vld [vmem:[#allocation10 + $0x778] sm:$0xff]
        %v3130 = vld [vmem:[#allocation10 + $0x780] sm:$0xff]
        %v3131 = vld [vmem:[#allocation10 + $0x788] sm:$0xff]
        %v3132 = vld [vmem:[#allocation10 + $0x790] sm:$0xff]
        %v3133 = vld [vmem:[#allocation10 + $0x798] sm:$0xff]
        %v3134 = vld [vmem:[#allocation10 + $0x7a0] sm:$0xff]
        %v3135 = vld [vmem:[#allocation10 + $0x7a8] sm:$0xff]
        %v3136 = vld [vmem:[#allocation10 + $0x7b0] sm:$0xff]
        %v3137 = vld [vmem:[#allocation10 + $0x7b8] sm:$0xff]
        %v3138 = vld [vmem:[#allocation10 + $0x7c0] sm:$0xff]
        %v3139 = vld [vmem:[#allocation10 + $0x7c8] sm:$0xff]
        %v3140 = vld [vmem:[#allocation10 + $0x7d0] sm:$0xff]
        %v3141 = vld [vmem:[#allocation10 + $0x7d8] sm:$0xff]
        %v3142 = vld [vmem:[#allocation10 + $0x7e0] sm:$0xff]
        %v3143 = vld [vmem:[#allocation10 + $0x7e8] sm:$0xff]
        %v3144 = vld [vmem:[#allocation10 + $0x7f0] sm:$0xff]
        %v3145 = vld [vmem:[#allocation10 + $0x7f8] sm:$0xff]
        %3146 = vmatprep.subr.mxu0 0.0
        %3147 = vmatpush1.msra.mxu0 %v2905
        %3148 = vmatprep.subr.mxu0 0.0
        %3149 = vmatpush1.msra.mxu0 %v2904
        %3150 = vmatprep.subr.mxu0 0.0
        %3151 = vmatpush1.msra.mxu0 %v2903
        %3152 = vmatprep.subr.mxu0 0.0
        %3153 = vmatpush1.msra.mxu0 %v2902
        %3154 = vmatprep.subr.mxu0 0.0
        %3155 = vmatpush1.msra.mxu0 %v2901
        %3156 = vmatprep.subr.mxu0 0.0
        %3157 = vmatpush1.msra.mxu0 %v2900
        %3158 = vmatprep.subr.mxu0 0.0
        %3159 = vmatpush1.msra.mxu0 %v2899
        %3160 = vmatprep.subr.mxu0 0.0
        %3161 = vmatpush1.msra.mxu0 %v2898
        %3162 = vmatprep.subr.mxu0 0.0
        %3163 = vmatpush1.msra.mxu0 %v2897
        %3164 = vmatprep.subr.mxu0 0.0
        %3165 = vmatpush1.msra.mxu0 %v2896
        %3166 = vmatprep.subr.mxu0 0.0
        %3167 = vmatpush1.msra.mxu0 %v2895
        %3168 = vmatprep.subr.mxu0 0.0
        %3169 = vmatpush1.msra.mxu0 %v2894
        %3170 = vmatprep.subr.mxu0 0.0
        %3171 = vmatpush1.msra.mxu0 %v2893
        %3172 = vmatprep.subr.mxu0 0.0
        %3173 = vmatpush1.msra.mxu0 %v2892
        %3174 = vmatprep.subr.mxu0 0.0
        %3175 = vmatpush1.msra.mxu0 %v2891
        %3176 = vmatprep.subr.mxu0 0.0
        %3177 = vmatpush1.msra.mxu0 %v2890
        %3178 = vmatprep.subr.mxu0 0.0
        %3179 = vmatpush2.msra.mxu0 %v2921
        %3180 = vmatprep.subr.mxu0 0.0
        %3181 = vmatpush2.msra.mxu0 %v2920
        %3182 = vmatprep.subr.mxu0 0.0
        %3183 = vmatpush2.msra.mxu0 %v2919
        %3184 = vmatprep.subr.mxu0 0.0
        %3185 = vmatpush2.msra.mxu0 %v2918
        %3186 = vmatprep.subr.mxu0 0.0
        %3187 = vmatpush2.msra.mxu0 %v2917
        %3188 = vmatprep.subr.mxu0 0.0
        %3189 = vmatpush2.msra.mxu0 %v2916
        %3190 = vmatprep.subr.mxu0 0.0
        %3191 = vmatpush2.msra.mxu0 %v2915
        %3192 = vmatprep.subr.mxu0 0.0
        %3193 = vmatpush2.msra.mxu0 %v2914
        %3194 = vmatprep.subr.mxu0 0.0
        %3195 = vmatpush2.msra.mxu0 %v2913
        %3196 = vmatprep.subr.mxu0 0.0
        %3197 = vmatpush2.msra.mxu0 %v2912
        %3198 = vmatprep.subr.mxu0 0.0
        %3199 = vmatpush2.msra.mxu0 %v2911
        %3200 = vmatprep.subr.mxu0 0.0
        %3201 = vmatpush2.msra.mxu0 %v2910
        %3202 = vmatprep.subr.mxu0 0.0
        %3203 = vmatpush2.msra.mxu0 %v2909
        %3204 = vmatprep.subr.mxu0 0.0
        %3205 = vmatpush2.msra.mxu0 %v2908
        %3206 = vmatprep.subr.mxu0 0.0
        %3207 = vmatpush2.msra.mxu0 %v2907
        %3208 = vmatprep.subr.mxu0 0.0
        %3209 = vmatpush2.msra.mxu0 %v2906
        %3210 = vmatprep.mubr.f32.mxu0 %v2875
        %3211 = vmatmul.mubr.f32.gmra.mxu0 %v2874
        %v3212 = vpop.f32.mrf.mxu0
        %v3213 = vadd.f32 0.0, %v3212
        %v3214 = vpop.f32.mrf.mxu0
        %3215 = vdwg.mxu0
        %3216 = vmatprep.subr.mxu0 0.0
        %3217 = vmatpush1.msra.mxu0 %v2937
        %3218 = vmatprep.subr.mxu0 0.0
        %3219 = vmatpush1.msra.mxu0 %v2936
        %3220 = vmatprep.subr.mxu0 0.0
        %3221 = vmatpush1.msra.mxu0 %v2935
        %3222 = vmatprep.subr.mxu0 0.0
        %3223 = vmatpush1.msra.mxu0 %v2934
        %3224 = vmatprep.subr.mxu0 0.0
        %3225 = vmatpush1.msra.mxu0 %v2933
        %3226 = vmatprep.subr.mxu0 0.0
        %3227 = vmatpush1.msra.mxu0 %v2932
        %3228 = vmatprep.subr.mxu0 0.0
        %3229 = vmatpush1.msra.mxu0 %v2931
        %3230 = vmatprep.subr.mxu0 0.0
        %3231 = vmatpush1.msra.mxu0 %v2930
        %3232 = vmatprep.subr.mxu0 0.0
        %3233 = vmatpush1.msra.mxu0 %v2929
        %3234 = vmatprep.subr.mxu0 0.0
        %3235 = vmatpush1.msra.mxu0 %v2928
        %3236 = vmatprep.subr.mxu0 0.0
        %3237 = vmatpush1.msra.mxu0 %v2927
        %3238 = vmatprep.subr.mxu0 0.0
        %3239 = vmatpush1.msra.mxu0 %v2926
        %3240 = vmatprep.subr.mxu0 0.0
        %3241 = vmatpush1.msra.mxu0 %v2925
        %3242 = vmatprep.subr.mxu0 0.0
        %3243 = vmatpush1.msra.mxu0 %v2924
        %3244 = vmatprep.subr.mxu0 0.0
        %3245 = vmatpush1.msra.mxu0 %v2923
        %3246 = vmatprep.subr.mxu0 0.0
        %3247 = vmatpush1.msra.mxu0 %v2922
        %3248 = vmatprep.subr.mxu0 0.0
        %3249 = vmatpush2.msra.mxu0 %v2953
        %3250 = vmatprep.subr.mxu0 0.0
        %3251 = vmatpush2.msra.mxu0 %v2952
        %3252 = vmatprep.subr.mxu0 0.0
        %3253 = vmatpush2.msra.mxu0 %v2951
        %3254 = vmatprep.subr.mxu0 0.0
        %3255 = vmatpush2.msra.mxu0 %v2950
        %3256 = vmatprep.subr.mxu0 0.0
        %3257 = vmatpush2.msra.mxu0 %v2949
        %3258 = vmatprep.subr.mxu0 0.0
        %3259 = vmatpush2.msra.mxu0 %v2948
        %3260 = vmatprep.subr.mxu0 0.0
        %3261 = vmatpush2.msra.mxu0 %v2947
        %3262 = vmatprep.subr.mxu0 0.0
        %3263 = vmatpush2.msra.mxu0 %v2946
        %3264 = vmatprep.subr.mxu0 0.0
        %3265 = vmatpush2.msra.mxu0 %v2945
        %3266 = vmatprep.subr.mxu0 0.0
        %3267 = vmatpush2.msra.mxu0 %v2944
        %3268 = vmatprep.subr.mxu0 0.0
        %3269 = vmatpush2.msra.mxu0 %v2943
        %3270 = vmatprep.subr.mxu0 0.0
        %3271 = vmatpush2.msra.mxu0 %v2942
        %3272 = vmatprep.subr.mxu0 0.0
        %3273 = vmatpush2.msra.mxu0 %v2941
        %3274 = vmatprep.subr.mxu0 0.0
        %3275 = vmatpush2.msra.mxu0 %v2940
        %3276 = vmatprep.subr.mxu0 0.0
        %3277 = vmatpush2.msra.mxu0 %v2939
        %3278 = vmatprep.subr.mxu0 0.0
        %3279 = vmatpush2.msra.mxu0 %v2938
        %3280 = vmatprep.mubr.f32.mxu0 %v2877
        %3281 = vmatmul.mubr.f32.gmra.mxu0 %v2876
        %v3282 = vpop.f32.mrf.mxu0
        %v3283 = vadd.f32 %v3213, %v3282
        %v3284 = vpop.f32.mrf.mxu0
        %3285 = vdwg.mxu0
        %3286 = vmatprep.subr.mxu0 0.0
        %3287 = vmatpush1.msra.mxu0 %v2969
        %3288 = vmatprep.subr.mxu0 0.0
        %3289 = vmatpush1.msra.mxu0 %v2968
        %3290 = vmatprep.subr.mxu0 0.0
        %3291 = vmatpush1.msra.mxu0 %v2967
        %3292 = vmatprep.subr.mxu0 0.0
        %3293 = vmatpush1.msra.mxu0 %v2966
        %3294 = vmatprep.subr.mxu0 0.0
        %3295 = vmatpush1.msra.mxu0 %v2965
        %3296 = vmatprep.subr.mxu0 0.0
        %3297 = vmatpush1.msra.mxu0 %v2964
        %3298 = vmatprep.subr.mxu0 0.0
        %3299 = vmatpush1.msra.mxu0 %v2963
        %3300 = vmatprep.subr.mxu0 0.0
        %3301 = vmatpush1.msra.mxu0 %v2962
        %3302 = vmatprep.subr.mxu0 0.0
        %3303 = vmatpush1.msra.mxu0 %v2961
        %3304 = vmatprep.subr.mxu0 0.0
        %3305 = vmatpush1.msra.mxu0 %v2960
        %3306 = vmatprep.subr.mxu0 0.0
        %3307 = vmatpush1.msra.mxu0 %v2959
        %3308 = vmatprep.subr.mxu0 0.0
        %3309 = vmatpush1.msra.mxu0 %v2958
        %3310 = vmatprep.subr.mxu0 0.0
        %3311 = vmatpush1.msra.mxu0 %v2957
        %3312 = vmatprep.subr.mxu0 0.0
        %3313 = vmatpush1.msra.mxu0 %v2956
        %3314 = vmatprep.subr.mxu0 0.0
        %3315 = vmatpush1.msra.mxu0 %v2955
        %3316 = vmatprep.subr.mxu0 0.0
        %3317 = vmatpush1.msra.mxu0 %v2954
        %3318 = vmatprep.subr.mxu0 0.0
        %3319 = vmatpush2.msra.mxu0 %v2985
        %3320 = vmatprep.subr.mxu0 0.0
        %3321 = vmatpush2.msra.mxu0 %v2984
        %3322 = vmatprep.subr.mxu0 0.0
        %3323 = vmatpush2.msra.mxu0 %v2983
        %3324 = vmatprep.subr.mxu0 0.0
        %3325 = vmatpush2.msra.mxu0 %v2982
        %3326 = vmatprep.subr.mxu0 0.0
        %3327 = vmatpush2.msra.mxu0 %v2981
        %3328 = vmatprep.subr.mxu0 0.0
        %3329 = vmatpush2.msra.mxu0 %v2980
        %3330 = vmatprep.subr.mxu0 0.0
        %3331 = vmatpush2.msra.mxu0 %v2979
        %3332 = vmatprep.subr.mxu0 0.0
        %3333 = vmatpush2.msra.mxu0 %v2978
        %3334 = vmatprep.subr.mxu0 0.0
        %3335 = vmatpush2.msra.mxu0 %v2977
        %3336 = vmatprep.subr.mxu0 0.0
        %3337 = vmatpush2.msra.mxu0 %v2976
        %3338 = vmatprep.subr.mxu0 0.0
        %3339 = vmatpush2.msra.mxu0 %v2975
        %3340 = vmatprep.subr.mxu0 0.0
        %3341 = vmatpush2.msra.mxu0 %v2974
        %3342 = vmatprep.subr.mxu0 0.0
        %3343 = vmatpush2.msra.mxu0 %v2973
        %3344 = vmatprep.subr.mxu0 0.0
        %3345 = vmatpush2.msra.mxu0 %v2972
        %3346 = vmatprep.subr.mxu0 0.0
        %3347 = vmatpush2.msra.mxu0 %v2971
        %3348 = vmatprep.subr.mxu0 0.0
        %3349 = vmatpush2.msra.mxu0 %v2970
        %3350 = vmatprep.mubr.f32.mxu0 %v2879
        %3351 = vmatmul.mubr.f32.gmra.mxu0 %v2878
        %v3352 = vpop.f32.mrf.mxu0
        %v3353 = vadd.f32 %v3283, %v3352
        %v3354 = vpop.f32.mrf.mxu0
        %3355 = vdwg.mxu0
        %3356 = vmatprep.subr.mxu0 0.0
        %3357 = vmatpush1.msra.mxu0 %v3001
        %3358 = vmatprep.subr.mxu0 0.0
        %3359 = vmatpush1.msra.mxu0 %v3000
        %3360 = vmatprep.subr.mxu0 0.0
        %3361 = vmatpush1.msra.mxu0 %v2999
        %3362 = vmatprep.subr.mxu0 0.0
        %3363 = vmatpush1.msra.mxu0 %v2998
        %3364 = vmatprep.subr.mxu0 0.0
        %3365 = vmatpush1.msra.mxu0 %v2997
        %3366 = vmatprep.subr.mxu0 0.0
        %3367 = vmatpush1.msra.mxu0 %v2996
        %3368 = vmatprep.subr.mxu0 0.0
        %3369 = vmatpush1.msra.mxu0 %v2995
        %3370 = vmatprep.subr.mxu0 0.0
        %3371 = vmatpush1.msra.mxu0 %v2994
        %3372 = vmatprep.subr.mxu0 0.0
        %3373 = vmatpush1.msra.mxu0 %v2993
        %3374 = vmatprep.subr.mxu0 0.0
        %3375 = vmatpush1.msra.mxu0 %v2992
        %3376 = vmatprep.subr.mxu0 0.0
        %3377 = vmatpush1.msra.mxu0 %v2991
        %3378 = vmatprep.subr.mxu0 0.0
        %3379 = vmatpush1.msra.mxu0 %v2990
        %3380 = vmatprep.subr.mxu0 0.0
        %3381 = vmatpush1.msra.mxu0 %v2989
        %3382 = vmatprep.subr.mxu0 0.0
        %3383 = vmatpush1.msra.mxu0 %v2988
        %3384 = vmatprep.subr.mxu0 0.0
        %3385 = vmatpush1.msra.mxu0 %v2987
        %3386 = vmatprep.subr.mxu0 0.0
        %3387 = vmatpush1.msra.mxu0 %v2986
        %3388 = vmatprep.subr.mxu0 0.0
        %3389 = vmatpush2.msra.mxu0 %v3017
        %3390 = vmatprep.subr.mxu0 0.0
        %3391 = vmatpush2.msra.mxu0 %v3016
        %3392 = vmatprep.subr.mxu0 0.0
        %3393 = vmatpush2.msra.mxu0 %v3015
        %3394 = vmatprep.subr.mxu0 0.0
        %3395 = vmatpush2.msra.mxu0 %v3014
        %3396 = vmatprep.subr.mxu0 0.0
        %3397 = vmatpush2.msra.mxu0 %v3013
        %3398 = vmatprep.subr.mxu0 0.0
        %3399 = vmatpush2.msra.mxu0 %v3012
        %3400 = vmatprep.subr.mxu0 0.0
        %3401 = vmatpush2.msra.mxu0 %v3011
        %3402 = vmatprep.subr.mxu0 0.0
        %3403 = vmatpush2.msra.mxu0 %v3010
        %3404 = vmatprep.subr.mxu0 0.0
        %3405 = vmatpush2.msra.mxu0 %v3009
        %3406 = vmatprep.subr.mxu0 0.0
        %3407 = vmatpush2.msra.mxu0 %v3008
        %3408 = vmatprep.subr.mxu0 0.0
        %3409 = vmatpush2.msra.mxu0 %v3007
        %3410 = vmatprep.subr.mxu0 0.0
        %3411 = vmatpush2.msra.mxu0 %v3006
        %3412 = vmatprep.subr.mxu0 0.0
        %3413 = vmatpush2.msra.mxu0 %v3005
        %3414 = vmatprep.subr.mxu0 0.0
        %3415 = vmatpush2.msra.mxu0 %v3004
        %3416 = vmatprep.subr.mxu0 0.0
        %3417 = vmatpush2.msra.mxu0 %v3003
        %3418 = vmatprep.subr.mxu0 0.0
        %3419 = vmatpush2.msra.mxu0 %v3002
        %3420 = vmatprep.mubr.f32.mxu0 %v2881
        %3421 = vmatmul.mubr.f32.gmra.mxu0 %v2880
        %v3422 = vpop.f32.mrf.mxu0
        %v3423 = vadd.f32 %v3353, %v3422
        %v3424 = vpop.f32.mrf.mxu0
        %3425 = vdwg.mxu0
        %3426 = vmatprep.subr.mxu0 0.0
        %3427 = vmatpush1.msra.mxu0 %v3033
        %3428 = vmatprep.subr.mxu0 0.0
        %3429 = vmatpush1.msra.mxu0 %v3032
        %3430 = vmatprep.subr.mxu0 0.0
        %3431 = vmatpush1.msra.mxu0 %v3031
        %3432 = vmatprep.subr.mxu0 0.0
        %3433 = vmatpush1.msra.mxu0 %v3030
        %3434 = vmatprep.subr.mxu0 0.0
        %3435 = vmatpush1.msra.mxu0 %v3029
        %3436 = vmatprep.subr.mxu0 0.0
        %3437 = vmatpush1.msra.mxu0 %v3028
        %3438 = vmatprep.subr.mxu0 0.0
        %3439 = vmatpush1.msra.mxu0 %v3027
        %3440 = vmatprep.subr.mxu0 0.0
        %3441 = vmatpush1.msra.mxu0 %v3026
        %3442 = vmatprep.subr.mxu0 0.0
        %3443 = vmatpush1.msra.mxu0 %v3025
        %3444 = vmatprep.subr.mxu0 0.0
        %3445 = vmatpush1.msra.mxu0 %v3024
        %3446 = vmatprep.subr.mxu0 0.0
        %3447 = vmatpush1.msra.mxu0 %v3023
        %3448 = vmatprep.subr.mxu0 0.0
        %3449 = vmatpush1.msra.mxu0 %v3022
        %3450 = vmatprep.subr.mxu0 0.0
        %3451 = vmatpush1.msra.mxu0 %v3021
        %3452 = vmatprep.subr.mxu0 0.0
        %3453 = vmatpush1.msra.mxu0 %v3020
        %3454 = vmatprep.subr.mxu0 0.0
        %3455 = vmatpush1.msra.mxu0 %v3019
        %3456 = vmatprep.subr.mxu0 0.0
        %3457 = vmatpush1.msra.mxu0 %v3018
        %3458 = vmatprep.subr.mxu0 0.0
        %3459 = vmatpush2.msra.mxu0 %v3049
        %3460 = vmatprep.subr.mxu0 0.0
        %3461 = vmatpush2.msra.mxu0 %v3048
        %3462 = vmatprep.subr.mxu0 0.0
        %3463 = vmatpush2.msra.mxu0 %v3047
        %3464 = vmatprep.subr.mxu0 0.0
        %3465 = vmatpush2.msra.mxu0 %v3046
        %3466 = vmatprep.subr.mxu0 0.0
        %3467 = vmatpush2.msra.mxu0 %v3045
        %3468 = vmatprep.subr.mxu0 0.0
        %3469 = vmatpush2.msra.mxu0 %v3044
        %3470 = vmatprep.subr.mxu0 0.0
        %3471 = vmatpush2.msra.mxu0 %v3043
        %3472 = vmatprep.subr.mxu0 0.0
        %3473 = vmatpush2.msra.mxu0 %v3042
        %3474 = vmatprep.subr.mxu0 0.0
        %3475 = vmatpush2.msra.mxu0 %v3041
        %3476 = vmatprep.subr.mxu0 0.0
        %3477 = vmatpush2.msra.mxu0 %v3040
        %3478 = vmatprep.subr.mxu0 0.0
        %3479 = vmatpush2.msra.mxu0 %v3039
        %3480 = vmatprep.subr.mxu0 0.0
        %3481 = vmatpush2.msra.mxu0 %v3038
        %3482 = vmatprep.subr.mxu0 0.0
        %3483 = vmatpush2.msra.mxu0 %v3037
        %3484 = vmatprep.subr.mxu0 0.0
        %3485 = vmatpush2.msra.mxu0 %v3036
        %3486 = vmatprep.subr.mxu0 0.0
        %3487 = vmatpush2.msra.mxu0 %v3035
        %3488 = vmatprep.subr.mxu0 0.0
        %3489 = vmatpush2.msra.mxu0 %v3034
        %3490 = vmatprep.mubr.f32.mxu0 %v2883
        %3491 = vmatmul.mubr.f32.gmra.mxu0 %v2882
        %v3492 = vpop.f32.mrf.mxu0
        %v3493 = vadd.f32 %v3423, %v3492
        %v3494 = vpop.f32.mrf.mxu0
        %3495 = vdwg.mxu0
        %3496 = vmatprep.subr.mxu0 0.0
        %3497 = vmatpush1.msra.mxu0 %v3065
        %3498 = vmatprep.subr.mxu0 0.0
        %3499 = vmatpush1.msra.mxu0 %v3064
        %3500 = vmatprep.subr.mxu0 0.0
        %3501 = vmatpush1.msra.mxu0 %v3063
        %3502 = vmatprep.subr.mxu0 0.0
        %3503 = vmatpush1.msra.mxu0 %v3062
        %3504 = vmatprep.subr.mxu0 0.0
        %3505 = vmatpush1.msra.mxu0 %v3061
        %3506 = vmatprep.subr.mxu0 0.0
        %3507 = vmatpush1.msra.mxu0 %v3060
        %3508 = vmatprep.subr.mxu0 0.0
        %3509 = vmatpush1.msra.mxu0 %v3059
        %3510 = vmatprep.subr.mxu0 0.0
        %3511 = vmatpush1.msra.mxu0 %v3058
        %3512 = vmatprep.subr.mxu0 0.0
        %3513 = vmatpush1.msra.mxu0 %v3057
        %3514 = vmatprep.subr.mxu0 0.0
        %3515 = vmatpush1.msra.mxu0 %v3056
        %3516 = vmatprep.subr.mxu0 0.0
        %3517 = vmatpush1.msra.mxu0 %v3055
        %3518 = vmatprep.subr.mxu0 0.0
        %3519 = vmatpush1.msra.mxu0 %v3054
        %3520 = vmatprep.subr.mxu0 0.0
        %3521 = vmatpush1.msra.mxu0 %v3053
        %3522 = vmatprep.subr.mxu0 0.0
        %3523 = vmatpush1.msra.mxu0 %v3052
        %3524 = vmatprep.subr.mxu0 0.0
        %3525 = vmatpush1.msra.mxu0 %v3051
        %3526 = vmatprep.subr.mxu0 0.0
        %3527 = vmatpush1.msra.mxu0 %v3050
        %3528 = vmatprep.subr.mxu0 0.0
        %3529 = vmatpush2.msra.mxu0 %v3081
        %3530 = vmatprep.subr.mxu0 0.0
        %3531 = vmatpush2.msra.mxu0 %v3080
        %3532 = vmatprep.subr.mxu0 0.0
        %3533 = vmatpush2.msra.mxu0 %v3079
        %3534 = vmatprep.subr.mxu0 0.0
        %3535 = vmatpush2.msra.mxu0 %v3078
        %3536 = vmatprep.subr.mxu0 0.0
        %3537 = vmatpush2.msra.mxu0 %v3077
        %3538 = vmatprep.subr.mxu0 0.0
        %3539 = vmatpush2.msra.mxu0 %v3076
        %3540 = vmatprep.subr.mxu0 0.0
        %3541 = vmatpush2.msra.mxu0 %v3075
        %3542 = vmatprep.subr.mxu0 0.0
        %3543 = vmatpush2.msra.mxu0 %v3074
        %3544 = vmatprep.subr.mxu0 0.0
        %3545 = vmatpush2.msra.mxu0 %v3073
        %3546 = vmatprep.subr.mxu0 0.0
        %3547 = vmatpush2.msra.mxu0 %v3072
        %3548 = vmatprep.subr.mxu0 0.0
        %3549 = vmatpush2.msra.mxu0 %v3071
        %3550 = vmatprep.subr.mxu0 0.0
        %3551 = vmatpush2.msra.mxu0 %v3070
        %3552 = vmatprep.subr.mxu0 0.0
        %3553 = vmatpush2.msra.mxu0 %v3069
        %3554 = vmatprep.subr.mxu0 0.0
        %3555 = vmatpush2.msra.mxu0 %v3068
        %3556 = vmatprep.subr.mxu0 0.0
        %3557 = vmatpush2.msra.mxu0 %v3067
        %3558 = vmatprep.subr.mxu0 0.0
        %3559 = vmatpush2.msra.mxu0 %v3066
        %3560 = vmatprep.mubr.f32.mxu0 %v2885
        %3561 = vmatmul.mubr.f32.gmra.mxu0 %v2884
        %v3562 = vpop.f32.mrf.mxu0
        %v3563 = vadd.f32 %v3493, %v3562
        %v3564 = vpop.f32.mrf.mxu0
        %3565 = vdwg.mxu0
        %3566 = vmatprep.subr.mxu0 0.0
        %3567 = vmatpush1.msra.mxu0 %v3097
        %3568 = vmatprep.subr.mxu0 0.0
        %3569 = vmatpush1.msra.mxu0 %v3096
        %3570 = vmatprep.subr.mxu0 0.0
        %3571 = vmatpush1.msra.mxu0 %v3095
        %3572 = vmatprep.subr.mxu0 0.0
        %3573 = vmatpush1.msra.mxu0 %v3094
        %3574 = vmatprep.subr.mxu0 0.0
        %3575 = vmatpush1.msra.mxu0 %v3093
        %3576 = vmatprep.subr.mxu0 0.0
        %3577 = vmatpush1.msra.mxu0 %v3092
        %3578 = vmatprep.subr.mxu0 0.0
        %3579 = vmatpush1.msra.mxu0 %v3091
        %3580 = vmatprep.subr.mxu0 0.0
        %3581 = vmatpush1.msra.mxu0 %v3090
        %3582 = vmatprep.subr.mxu0 0.0
        %3583 = vmatpush1.msra.mxu0 %v3089
        %3584 = vmatprep.subr.mxu0 0.0
        %3585 = vmatpush1.msra.mxu0 %v3088
        %3586 = vmatprep.subr.mxu0 0.0
        %3587 = vmatpush1.msra.mxu0 %v3087
        %3588 = vmatprep.subr.mxu0 0.0
        %3589 = vmatpush1.msra.mxu0 %v3086
        %3590 = vmatprep.subr.mxu0 0.0
        %3591 = vmatpush1.msra.mxu0 %v3085
        %3592 = vmatprep.subr.mxu0 0.0
        %3593 = vmatpush1.msra.mxu0 %v3084
        %3594 = vmatprep.subr.mxu0 0.0
        %3595 = vmatpush1.msra.mxu0 %v3083
        %3596 = vmatprep.subr.mxu0 0.0
        %3597 = vmatpush1.msra.mxu0 %v3082
        %3598 = vmatprep.subr.mxu0 0.0
        %3599 = vmatpush2.msra.mxu0 %v3113
        %3600 = vmatprep.subr.mxu0 0.0
        %3601 = vmatpush2.msra.mxu0 %v3112
        %3602 = vmatprep.subr.mxu0 0.0
        %3603 = vmatpush2.msra.mxu0 %v3111
        %3604 = vmatprep.subr.mxu0 0.0
        %3605 = vmatpush2.msra.mxu0 %v3110
        %3606 = vmatprep.subr.mxu0 0.0
        %3607 = vmatpush2.msra.mxu0 %v3109
        %3608 = vmatprep.subr.mxu0 0.0
        %3609 = vmatpush2.msra.mxu0 %v3108
        %3610 = vmatprep.subr.mxu0 0.0
        %3611 = vmatpush2.msra.mxu0 %v3107
        %3612 = vmatprep.subr.mxu0 0.0
        %3613 = vmatpush2.msra.mxu0 %v3106
        %3614 = vmatprep.subr.mxu0 0.0
        %3615 = vmatpush2.msra.mxu0 %v3105
        %3616 = vmatprep.subr.mxu0 0.0
        %3617 = vmatpush2.msra.mxu0 %v3104
        %3618 = vmatprep.subr.mxu0 0.0
        %3619 = vmatpush2.msra.mxu0 %v3103
        %3620 = vmatprep.subr.mxu0 0.0
        %3621 = vmatpush2.msra.mxu0 %v3102
        %3622 = vmatprep.subr.mxu0 0.0
        %3623 = vmatpush2.msra.mxu0 %v3101
        %3624 = vmatprep.subr.mxu0 0.0
        %3625 = vmatpush2.msra.mxu0 %v3100
        %3626 = vmatprep.subr.mxu0 0.0
        %3627 = vmatpush2.msra.mxu0 %v3099
        %3628 = vmatprep.subr.mxu0 0.0
        %3629 = vmatpush2.msra.mxu0 %v3098
        %3630 = vmatprep.mubr.f32.mxu0 %v2887
        %3631 = vmatmul.mubr.f32.gmra.mxu0 %v2886
        %v3632 = vpop.f32.mrf.mxu0
        %v3633 = vadd.f32 %v3563, %v3632
        %v3634 = vpop.f32.mrf.mxu0
        %3635 = vdwg.mxu0
        %3636 = vmatprep.subr.mxu0 0.0
        %3637 = vmatpush1.msra.mxu0 %v3129
        %3638 = vmatprep.subr.mxu0 0.0
        %3639 = vmatpush1.msra.mxu0 %v3128
        %3640 = vmatprep.subr.mxu0 0.0
        %3641 = vmatpush1.msra.mxu0 %v3127
        %3642 = vmatprep.subr.mxu0 0.0
        %3643 = vmatpush1.msra.mxu0 %v3126
        %3644 = vmatprep.subr.mxu0 0.0
        %3645 = vmatpush1.msra.mxu0 %v3125
        %3646 = vmatprep.subr.mxu0 0.0
        %3647 = vmatpush1.msra.mxu0 %v3124
        %3648 = vmatprep.subr.mxu0 0.0
        %3649 = vmatpush1.msra.mxu0 %v3123
        %3650 = vmatprep.subr.mxu0 0.0
        %3651 = vmatpush1.msra.mxu0 %v3122
        %3652 = vmatprep.subr.mxu0 0.0
        %3653 = vmatpush1.msra.mxu0 %v3121
        %3654 = vmatprep.subr.mxu0 0.0
        %3655 = vmatpush1.msra.mxu0 %v3120
        %3656 = vmatprep.subr.mxu0 0.0
        %3657 = vmatpush1.msra.mxu0 %v3119
        %3658 = vmatprep.subr.mxu0 0.0
        %3659 = vmatpush1.msra.mxu0 %v3118
        %3660 = vmatprep.subr.mxu0 0.0
        %3661 = vmatpush1.msra.mxu0 %v3117
        %3662 = vmatprep.subr.mxu0 0.0
        %3663 = vmatpush1.msra.mxu0 %v3116
        %3664 = vmatprep.subr.mxu0 0.0
        %3665 = vmatpush1.msra.mxu0 %v3115
        %3666 = vmatprep.subr.mxu0 0.0
        %3667 = vmatpush1.msra.mxu0 %v3114
        %3668 = vmatprep.subr.mxu0 0.0
        %3669 = vmatpush2.msra.mxu0 %v3145
        %3670 = vmatprep.subr.mxu0 0.0
        %3671 = vmatpush2.msra.mxu0 %v3144
        %3672 = vmatprep.subr.mxu0 0.0
        %3673 = vmatpush2.msra.mxu0 %v3143
        %3674 = vmatprep.subr.mxu0 0.0
        %3675 = vmatpush2.msra.mxu0 %v3142
        %3676 = vmatprep.subr.mxu0 0.0
        %3677 = vmatpush2.msra.mxu0 %v3141
        %3678 = vmatprep.subr.mxu0 0.0
        %3679 = vmatpush2.msra.mxu0 %v3140
        %3680 = vmatprep.subr.mxu0 0.0
        %3681 = vmatpush2.msra.mxu0 %v3139
        %3682 = vmatprep.subr.mxu0 0.0
        %3683 = vmatpush2.msra.mxu0 %v3138
        %3684 = vmatprep.subr.mxu0 0.0
        %3685 = vmatpush2.msra.mxu0 %v3137
        %3686 = vmatprep.subr.mxu0 0.0
        %3687 = vmatpush2.msra.mxu0 %v3136
        %3688 = vmatprep.subr.mxu0 0.0
        %3689 = vmatpush2.msra.mxu0 %v3135
        %3690 = vmatprep.subr.mxu0 0.0
        %3691 = vmatpush2.msra.mxu0 %v3134
        %3692 = vmatprep.subr.mxu0 0.0
        %3693 = vmatpush2.msra.mxu0 %v3133
        %3694 = vmatprep.subr.mxu0 0.0
        %3695 = vmatpush2.msra.mxu0 %v3132
        %3696 = vmatprep.subr.mxu0 0.0
        %3697 = vmatpush2.msra.mxu0 %v3131
        %3698 = vmatprep.subr.mxu0 0.0
        %3699 = vmatpush2.msra.mxu0 %v3130
        %3700 = vmatprep.mubr.f32.mxu0 %v2889
        %3701 = vmatmul.mubr.f32.gmra.mxu0 %v2888
        %v3702 = vpop.f32.mrf.mxu0
        %v3703 = vadd.f32 %v3633, %v3702
        %v3704 = vpop.f32.mrf.mxu0
        %3705 = vdwg.mxu0
        %v3706 = vadd.f32 %v476, %v3703
        %v3707 = vld [vmem:[%s9] sm:$0x1]
        %v3709 = vlaneseq
        %v3710 = vshrl.u32 %v3709, 7
        %v3711 = vsub.s32 0, %v3710
        %v3712 = vrot.slane %v3707, %v3711
        %v3714 = vadd.f32 %v3706, %v3712
        %3715 = vst [vmem:[%s470] sm:$0xff] %v3714
        %s3716 = sand.u32 %s264, 1
        %s3717 = scalar_lea.sflag [#allocation4], %s3716
        %s3718 = sand.u32 %s264, 1
        %s3719 = smul.addr %s3718, 8
        %s3720 = scalar_lea.vmem [#allocation11], %s3719
        // Predicated region
        $region81: #{tpu_custom_call.1} parent=59 // pred_check
          %p3721 = pneg %p274
        $region82: #{tpu_custom_call.1} parent=59 // pred_check_branch
          %3723 = sbr.rel (%p3721) target = $region84
        $region83: #{tpu_custom_call.1} parent=59 // pred_region
          %s3725 = ssub.s32 128, 128
          %3726 = vsyncadd %s3717, %s3725
          %s3727 = smul.addr %s31, 128
          %s3728 = scalar_lea.hbm %s10, %s3727
          %s3730 = sshll.u32 %s3720, 4
          %s3731 = int_to_ptr.vmem [resolvable:$true] %s3730
          %3733 = dma.vmem_to_hbm [thread:$0]  %s3731, 128, %s3728, %s3717
        $region84: #{tpu_custom_call.1} parent=59 // pred_fallthru
          _
      $region60: #{tpu_custom_call.1} parent=5 // pred_fallthru
        _
      %p3734 = scmp.le.s32.totalorder 2, %s26
      // Predicated region
      $region85: #{tpu_custom_call.1} parent=5 // pred_check
        %p3735 = pneg %p3734
      $region86: #{tpu_custom_call.1} parent=5 // pred_check_branch
        %3737 = sbr.rel (%p3735) target = $region88
      $region87: #{tpu_custom_call.1} parent=5 // pred_region
        %s3738 = ssub.s32 %s26, 2
        // Predicated region
        $region89: #{tpu_custom_call.1} parent=87 // pred_check
          %p3739 = pneg %p280
        $region90: #{tpu_custom_call.1} parent=87 // pred_check_branch
          %3741 = sbr.rel (%p3739) target = $region92
        $region91: #{tpu_custom_call.1} parent=87 // pred_region
          %s3742 = sand.u32 %s265, 1
          %s3743 = scalar_lea.sflag [#allocation4], %s3742
          %s3744 = sand.u32 %s265, 1
          %s3745 = smul.addr %s3744, 8
          %s3746 = scalar_lea.vmem [#allocation11], %s3745
          %3747 = dma.done %s3743, 128
        $region92: #{tpu_custom_call.1} parent=87 // pred_fallthru
          _
      $region88: #{tpu_custom_call.1} parent=5 // pred_fallthru
        _
    $region6: #{tpu_custom_call.1} parent=1 // loop_footer
      %s30 = sadd.s32 1, %s26
    $region7: #{tpu_custom_call.1} parent=1 // loop_footer_branch
      %25 = sbr.rel target = $region3
    $region8: #{tpu_custom_call.1} parent=1 // loop_exit
      _
    %3748 = vsyncpa [#allocation3], 1
    %s3749 = scalar_lea.sflag [#allocation3], 1
    %3750 = vsyncpa %s3749, 1
    %3751 = vsyncpa [#allocation6], 1
    %s3752 = scalar_lea.sflag [#allocation6], 1
    %3753 = vsyncpa %s3752, 1
    %3754 = vsyncpa [#allocation9], 1
    %3755 = vsyncpa [#allocation4], 1
    %s3756 = scalar_lea.sflag [#allocation4], 1
    %3757 = vsyncpa %s3756, 1

</llo_original>
